<compile_context>
chip_gen: v7x
topology: tpu7x:2x2x1
jax: 0.10.0
libtpu: 0.0.40
codegen_flags: <defaults>
</compile_context>

<pallas_src>
import functools

import numpy as np
import jax
import jax.numpy as jnp
from jax.experimental import pallas as pl
from jax.experimental.pallas import tpu as pltpu

_EPS = 1e-5                      # default eps of nn.GroupNorm / nn.LayerNorm
_MM_DTYPE = jnp.float32          # set to jnp.bfloat16 on v6e/v7x for 2x MXU rate


# ----------------------------------------------------------------------------
# Elementwise helpers (only ops that lower cleanly on Mosaic).
# ----------------------------------------------------------------------------
def _erf(x):
    # Abramowitz & Stegun 7.1.26, |err| < 1.5e-7 (float32-exact), so GELU
    # matches PyTorch's exact-erf nn.GELU() / F.gelu semantics.
    a1, a2, a3, a4, a5 = 0.254829592, -0.284496736, 1.421413741, -1.453152027, 1.061405429
    p = 0.3275911
    s = jnp.where(x >= 0.0, 1.0, -1.0)
    ax = jnp.abs(x)
    t = 1.0 / (1.0 + p * ax)
    poly = ((((a5 * t + a4) * t + a3) * t + a2) * t + a1) * t
    return s * (1.0 - poly * jnp.exp(-ax * ax))


def _gelu(x):
    return 0.5 * x * (1.0 + _erf(x * 0.7071067811865476))


def _dot(a, b):
    # MXU matmul with f32 accumulation; operands optionally cast to bf16.
    return jnp.dot(a.astype(_MM_DTYPE), b.astype(_MM_DTYPE),
                   preferred_element_type=jnp.float32)


# ----------------------------------------------------------------------------
# Host-side constants / parameter prep.
# ----------------------------------------------------------------------------
def _bilinear_matrix(n_in, n_out):
    # Bilinear interpolation matrix, align_corners=True (PyTorch semantics).
    i = np.arange(n_out)
    src = np.zeros(n_out) if n_out == 1 else i * (n_in - 1) / (n_out - 1)
    i0 = np.clip(np.floor(src).astype(np.int64), 0, n_in - 1)
    i1 = np.minimum(i0 + 1, n_in - 1)
    frac = src - i0
    m = np.zeros((n_out, n_in), np.float32)
    m[np.arange(n_out), i0] += (1.0 - frac)
    m[np.arange(n_out), i1] += frac
    return m


def _upsample_matrix(h, w):
    # out_flat = x_flat @ U  with U = kron(Uh, Uw).T  (shape (H*W, 4*H*W)).
    uh = _bilinear_matrix(h, 2 * h)
    uw = _bilinear_matrix(w, 2 * w)
    return np.kron(uh, uw).T.astype(np.float32)


def _conv_masks(h2, w2):
    # Edge-validity masks for the nine 3x3 taps on the flattened spatial dim.
    q = np.arange(h2 * w2)
    qy, qx = q // w2, q % w2
    m = np.zeros((9, 1, h2 * w2), np.float32)
    for ky in range(3):
        for kx in range(3):
            dy, dx = ky - 1, kx - 1
            valid = (qy + dy >= 0) & (qy + dy < h2) & (qx + dx >= 0) & (qx + dx < w2)
            m[ky * 3 + kx, 0] = valid
    return m


def _im2col_weight(w):
    # (3, 3, cin, cout) -> (cout, 9*cin); row (ky*3+kx)*cin+ci matches the
    # kernel's tap-stacking order.
    kh, kw, cin, cout = w.shape
    return jnp.reshape(w, (kh * kw * cin, cout)).T


def _col(v):
    return jnp.reshape(v, (-1, 1)).astype(jnp.float32)


def prepare_upconv_params(p1, p2, ln_g, ln_b, lin_w, lin_b):
    """Host-side prep: conv weights to im2col layout, affines to columns/rows."""
    out = {}
    for tag, p in (("1", p1), ("2", p2)):
        out[f"g{tag}1"] = _col(p["g1"]); out[f"b{tag}1"] = _col(p["b1"])
        out[f"w{tag}1"] = _im2col_weight(p["w1"]); out[f"c{tag}1"] = _col(p["cb1"])
        out[f"g{tag}2"] = _col(p["g2"]); out[f"b{tag}2"] = _col(p["b2"])
        out[f"w{tag}2"] = _im2col_weight(p["w2"]); out[f"c{tag}2"] = _col(p["cb2"])
    out["ln_g"] = jnp.reshape(ln_g, (1, -1)).astype(jnp.float32)   # (1, E)
    out["ln_b"] = jnp.reshape(ln_b, (1, -1)).astype(jnp.float32)   # (1, E)
    out["lin_wT"] = jnp.asarray(lin_w, jnp.float32).T              # (Cout, E)
    out["lin_b"] = _col(lin_b)                                     # (Cout, 1)
    return out


# ----------------------------------------------------------------------------
# Fused UpConv kernel: upsample + concat + Convs + Convs + time_net + add.
# ----------------------------------------------------------------------------
def _upconv_kernel(x_ref, res_ref, u_ref, masks_ref,
                   g11_ref, b11_ref, w11_ref, c11_ref,
                   g12_ref, b12_ref, w12_ref, c12_ref,
                   g21_ref, b21_ref, w21_ref, c21_ref,
                   g22_ref, b22_ref, w22_ref, c22_ref,
                   t_ref, lng_ref, lnb_ref, lw_ref, lb_ref,
                   o_ref, *, w_img):
    hw2 = o_ref.shape[-1]

    def group_norm(v, g_ref, b_ref):
        # GroupNorm(num_groups=1): single-pass stats over the whole (C, HW) tile.
        n = float(v.shape[0] * v.shape[1])
        s = jnp.sum(v, keepdims=True)                     # (1, 1)
        ss = jnp.sum(v * v, keepdims=True)                # (1, 1)
        mu = s / n
        var = jnp.maximum(ss / n - mu * mu, 0.0)
        return (v - mu) * jax.lax.rsqrt(var + _EPS) * g_ref[...] + b_ref[...]

    def conv3x3(v, w_ref, b_ref):
        # 3x3 / pad-1 conv as ONE im2col matmul: nine rolled + edge-masked taps
        # stacked on the contraction axis, then (Cout, 9*C) @ (9*C, HW2).
        taps = []
        for ky in range(3):
            for kx in range(3):
                off = (ky - 1) * w_img + (kx - 1)
                if off == 0:
                    taps.append(v)
                else:
                    tap = pltpu.roll(v, (-off) % hw2, 1)       # XLU lane rotate
                    taps.append(tap * masks_ref[ky * 3 + kx])  # (1, HW2) mask
        xcol = jnp.concatenate(taps, axis=0)                   # (9*C, HW2)
        return _dot(w_ref[...], xcol) + b_ref[...]             # lane-dense (Cout, HW2)

    def convs_block(v, g1, b1, cw1, cb1, g2, b2, cw2, cb2):
        h = group_norm(v, g1, b1)
        h = _gelu(conv3x3(h, cw1, cb1))
        h = group_norm(h, g2, b2)
        return _gelu(conv3x3(h, cw2, cb2))

    # --- time_net: LayerNorm(E) -> Linear(E, Cout) -> SiLU, fully in-kernel ---
    trow = t_ref[0]                                        # (1, E) row, lane-dense
    mu_t = jnp.mean(trow, axis=-1, keepdims=True)
    var_t = jnp.mean(jnp.square(trow - mu_t), axis=-1, keepdims=True)
    tn = (trow - mu_t) * jax.lax.rsqrt(var_t + _EPS) * lng_ref[...] + lnb_ref[...]
    # Linear to a (Cout, 1) column without any transpose / tiny-lane matmul:
    # (Cout, E) * (1, E) broadcast, then lane-reduce.
    y = jnp.sum(lw_ref[...] * tn, axis=1, keepdims=True) + lb_ref[...]   # (Cout, 1)
    temb = y * (1.0 / (1.0 + jnp.exp(-y)))                 # SiLU

    # --- bilinear upsample (align_corners=True) as one matmul, then concat ---
    xu = _dot(x_ref[0], u_ref[...])                        # (Cx, HW2)
    a = jnp.concatenate([xu, res_ref[0]], axis=0)          # channel concat -> (Cin, HW2)

    h = convs_block(a, g11_ref, b11_ref, w11_ref, c11_ref,
                    g12_ref, b12_ref, w12_ref, c12_ref)
    h = convs_block(h, g21_ref, b21_ref, w21_ref, c21_ref,
                    g22_ref, b22_ref, w22_ref, c22_ref)

    o_ref[0] = h + temb                                    # + time emb (Cout, 1) bcast


# ----------------------------------------------------------------------------
# Wrapper: PyTorch-style NCHW API, everything fused into one pallas_call.
# ----------------------------------------------------------------------------
@jax.jit
def upconv_forward(x, t, residual, params):
    """UpConv.forward: x (N,Cx,H,W), t (N,E), residual (N,Cr,2H,2W) -> (N,Cout,2H,2W)."""
    n, cx, h, w = x.shape
    _, cr, h2, w2 = residual.shape
    assert (h2, w2) == (2 * h, 2 * w)
    hw, hw2 = h * w, h2 * w2
    cin = cx + cr
    cout = params["c11"].shape[0]
    e = t.shape[1]

    u = jnp.asarray(_upsample_matrix(h, w))                # (HW, HW2)
    masks = jnp.asarray(_conv_masks(h2, w2))               # (9, 1, HW2)

    x_flat = x.reshape(n, cx, hw)                          # free reshapes, no transpose
    res_flat = residual.reshape(n, cr, hw2)
    t3 = t.reshape(n, 1, e).astype(jnp.float32)            # (N, 1, E) rows

    def pspec(shape):   # small parameter: full array, same block every grid step
        if len(shape) == 2:
            return pl.BlockSpec(shape, lambda i: (0, 0))
        return pl.BlockSpec(shape, lambda i: (0, 0, 0))

    out_flat = pl.pallas_call(
        functools.partial(_upconv_kernel, w_img=w2),
        out_shape=jax.ShapeDtypeStruct((n, cout, hw2), jnp.float32),
        grid_spec=pltpu.PrefetchScalarGridSpec(
            num_scalar_prefetch=0,
            grid=(n,),                                     # one batch sample per step
            in_specs=[
                pl.BlockSpec((1, cx, hw), lambda i: (i, 0, 0)),
                pl.BlockSpec((1, cr, hw2), lambda i: (i, 0, 0)),
                pspec((hw, hw2)),
                pspec((9, 1, hw2)),
                pspec((cin, 1)), pspec((cin, 1)),
                pspec((cout, 9 * cin)), pspec((cout, 1)),
                pspec((cout, 1)), pspec((cout, 1)),
                pspec((cout, 9 * cout)), pspec((cout, 1)),
                pspec((cout, 1)), pspec((cout, 1)),
                pspec((cout, 9 * cout)), pspec((cout, 1)),
                pspec((cout, 1)), pspec((cout, 1)),
                pspec((cout, 9 * cout)), pspec((cout, 1)),
                pl.BlockSpec((1, 1, e), lambda i: (i, 0, 0)),
                pspec((1, e)), pspec((1, e)),
                pspec((cout, e)), pspec((cout, 1)),
            ],
            out_specs=pl.BlockSpec((1, cout, hw2), lambda i: (i, 0, 0)),
        ),
        compiler_params=pltpu.CompilerParams(dimension_semantics=("parallel",)),
    )(x_flat, res_flat, u, masks,
      params["g11"], params["b11"], params["w11"], params["c11"],
      params["g12"], params["b12"], params["w12"], params["c12"],
      params["g21"], params["b21"], params["w21"], params["c21"],
      params["g22"], params["b22"], params["w22"], params["c22"],
      t3, params["ln_g"], params["ln_b"], params["lin_wT"], params["lin_b"])

    return out_flat.reshape(n, cout, h2, w2)               # already NCHW, no transpose


# ----------------------------------------------------------------------------
if __name__ == "__main__":
    # UpConv(in_channels=16, out_channels=8, n_embd=32):
    # x has 8 channels at 8x8, residual has 8 channels at 16x16 -> concat = 16.
    # (channel counts are multiples of 8 so all sublane concats stay tile-aligned)
    N, Cx, Cr, H, W, E = 2, 8, 8, 8, 8, 32
    Cin, Cout = Cx + Cr, 8
    H2, W2 = 2 * H, 2 * W

    key = jax.random.PRNGKey(0)
    ks = jax.random.split(key, 16)
    x = jax.random.normal(ks[0], (N, Cx, H, W), jnp.float32)
    residual = jax.random.normal(ks[1], (N, Cr, H2, W2), jnp.float32)
    t = jax.random.normal(ks[2], (N, E), jnp.float32)

    def winit(k, shape, scale=0.1):
        return scale * jax.random.normal(k, shape, jnp.float32)

    # Synthetic parameters.  Conv weights are stored as (kh, kw, cin, cout)
    # (PyTorch stores (cout, cin, kh, kw) -> transpose(2,3,1,0) to convert);
    # the Linear weight is stored already transposed as (E, Cout).  Norm
    # affines use PyTorch defaults gamma=1, beta=0.
    p1 = dict(g1=jnp.ones(Cin), b1=jnp.zeros(Cin),
              w1=winit(ks[3], (3, 3, Cin, Cout)), cb1=winit(ks[4], (Cout,)),
              g2=jnp.ones(Cout), b2=jnp.zeros(Cout),
              w2=winit(ks[5], (3, 3, Cout, Cout)), cb2=winit(ks[6], (Cout,)))
    p2 = dict(g1=jnp.ones(Cout), b1=jnp.zeros(Cout),
              w1=winit(ks[7], (3, 3, Cout, Cout)), cb1=winit(ks[8], (Cout,)),
              g2=jnp.ones(Cout), b2=jnp.zeros(Cout),
              w2=winit(ks[9], (3, 3, Cout, Cout)), cb2=winit(ks[10], (Cout,)))
    ln_g, ln_b = jnp.ones(E), jnp.zeros(E)
    lin_w = winit(ks[11], (E, Cout))
    lin_b = winit(ks[12], (Cout,))

    params = prepare_upconv_params(p1, p2, ln_g, ln_b, lin_w, lin_b)

    out = upconv_forward(x, t, residual, params)
    out = jax.block_until_ready(out)

    assert out.shape == (N, Cout, H2, W2), out.shape
    assert bool(jnp.all(jnp.isfinite(out)))
    print("KERNEL_OK")
</pallas_src>

<mosaic_0001>
module attributes {stable_mosaic.version = 11 : i64} {
  func.func @_upconv_kernel(%arg0: i32, %arg1: memref<1x8x64xf32, #tpu.memory_space<vmem>>, %arg2: memref<1x8x256xf32, #tpu.memory_space<vmem>>, %arg3: memref<64x256xf32, #tpu.memory_space<vmem>>, %arg4: memref<9x1x256xf32, #tpu.memory_space<vmem>>, %arg5: memref<16x1xf32, #tpu.memory_space<vmem>>, %arg6: memref<16x1xf32, #tpu.memory_space<vmem>>, %arg7: memref<8x144xf32, #tpu.memory_space<vmem>>, %arg8: memref<8x1xf32, #tpu.memory_space<vmem>>, %arg9: memref<8x1xf32, #tpu.memory_space<vmem>>, %arg10: memref<8x1xf32, #tpu.memory_space<vmem>>, %arg11: memref<8x72xf32, #tpu.memory_space<vmem>>, %arg12: memref<8x1xf32, #tpu.memory_space<vmem>>, %arg13: memref<8x1xf32, #tpu.memory_space<vmem>>, %arg14: memref<8x1xf32, #tpu.memory_space<vmem>>, %arg15: memref<8x72xf32, #tpu.memory_space<vmem>>, %arg16: memref<8x1xf32, #tpu.memory_space<vmem>>, %arg17: memref<8x1xf32, #tpu.memory_space<vmem>>, %arg18: memref<8x1xf32, #tpu.memory_space<vmem>>, %arg19: memref<8x72xf32, #tpu.memory_space<vmem>>, %arg20: memref<8x1xf32, #tpu.memory_space<vmem>>, %arg21: memref<1x1x32xf32, #tpu.memory_space<vmem>>, %arg22: memref<1x32xf32, #tpu.memory_space<vmem>>, %arg23: memref<1x32xf32, #tpu.memory_space<vmem>>, %arg24: memref<8x32xf32, #tpu.memory_space<vmem>>, %arg25: memref<8x1xf32, #tpu.memory_space<vmem>>, %arg26: memref<1x8x256xf32, #tpu.memory_space<vmem>>) attributes {dimension_semantics = [#tpu.dimension_semantics<parallel>], iteration_bounds = array<i64: 2>, scalar_prefetch = 0 : i64, scratch_operands = 0 : i64, tpu.core_type = #tpu.core_type<tc>, window_params = [{transform_indices = @transform_0, window_bounds = array<i64: 1, 8, 64>}, {transform_indices = @transform_1, window_bounds = array<i64: 1, 8, 256>}, {pipeline_mode = #tpu.pipeline_mode<synchronous>, transform_indices = @transform_2, window_bounds = array<i64: 64, 256>}, {pipeline_mode = #tpu.pipeline_mode<synchronous>, transform_indices = @transform_3, window_bounds = array<i64: 9, 1, 256>}, {pipeline_mode = #tpu.pipeline_mode<synchronous>, transform_indices = @transform_4, window_bounds = array<i64: 16, 1>}, {pipeline_mode = #tpu.pipeline_mode<synchronous>, transform_indices = @transform_5, window_bounds = array<i64: 16, 1>}, {pipeline_mode = #tpu.pipeline_mode<synchronous>, transform_indices = @transform_6, window_bounds = array<i64: 8, 144>}, {pipeline_mode = #tpu.pipeline_mode<synchronous>, transform_indices = @transform_7, window_bounds = array<i64: 8, 1>}, {pipeline_mode = #tpu.pipeline_mode<synchronous>, transform_indices = @transform_8, window_bounds = array<i64: 8, 1>}, {pipeline_mode = #tpu.pipeline_mode<synchronous>, transform_indices = @transform_9, window_bounds = array<i64: 8, 1>}, {pipeline_mode = #tpu.pipeline_mode<synchronous>, transform_indices = @transform_10, window_bounds = array<i64: 8, 72>}, {pipeline_mode = #tpu.pipeline_mode<synchronous>, transform_indices = @transform_11, window_bounds = array<i64: 8, 1>}, {pipeline_mode = #tpu.pipeline_mode<synchronous>, transform_indices = @transform_12, window_bounds = array<i64: 8, 1>}, {pipeline_mode = #tpu.pipeline_mode<synchronous>, transform_indices = @transform_13, window_bounds = array<i64: 8, 1>}, {pipeline_mode = #tpu.pipeline_mode<synchronous>, transform_indices = @transform_14, window_bounds = array<i64: 8, 72>}, {pipeline_mode = #tpu.pipeline_mode<synchronous>, transform_indices = @transform_15, window_bounds = array<i64: 8, 1>}, {pipeline_mode = #tpu.pipeline_mode<synchronous>, transform_indices = @transform_16, window_bounds = array<i64: 8, 1>}, {pipeline_mode = #tpu.pipeline_mode<synchronous>, transform_indices = @transform_17, window_bounds = array<i64: 8, 1>}, {pipeline_mode = #tpu.pipeline_mode<synchronous>, transform_indices = @transform_18, window_bounds = array<i64: 8, 72>}, {pipeline_mode = #tpu.pipeline_mode<synchronous>, transform_indices = @transform_19, window_bounds = array<i64: 8, 1>}, {transform_indices = @transform_20, window_bounds = array<i64: 1, 1, 32>}, {pipeline_mode = #tpu.pipeline_mode<synchronous>, transform_indices = @transform_21, window_bounds = array<i64: 1, 32>}, {pipeline_mode = #tpu.pipeline_mode<synchronous>, transform_indices = @transform_22, window_bounds = array<i64: 1, 32>}, {pipeline_mode = #tpu.pipeline_mode<synchronous>, transform_indices = @transform_23, window_bounds = array<i64: 8, 32>}, {pipeline_mode = #tpu.pipeline_mode<synchronous>, transform_indices = @transform_24, window_bounds = array<i64: 8, 1>}, {transform_indices = @transform_25, window_bounds = array<i64: 1, 8, 256>}]} {
    %c0 = arith.constant 0 : index
    %c0_0 = arith.constant 0 : index
    %c0_1 = arith.constant 0 : index
    %0 = vector.load %arg21[%c0, %c0_0, %c0_1] : memref<1x1x32xf32, #tpu.memory_space<vmem>>, vector<1x1x32xf32>
    %1 = vector.shape_cast %0 : vector<1x1x32xf32> to vector<1x32xf32>
    %cst = arith.constant dense<0.000000e+00> : vector<1xf32>
    %2 = vector.multi_reduction <add>, %1, %cst [1] : vector<1x32xf32> to vector<1xf32>
    %3 = vector.shape_cast %2 : vector<1xf32> to vector<1x1xf32>
    %cst_2 = arith.constant 3.200000e+01 : f32
    %4 = vector.broadcast %cst_2 : f32 to vector<1x1xf32>
    %5 = arith.divf %3, %4 : vector<1x1xf32>
    %6 = vector.broadcast %5 : vector<1x1xf32> to vector<1x32xf32>
    %7 = arith.subf %1, %6 : vector<1x32xf32>
    %8 = arith.mulf %7, %7 : vector<1x32xf32>
    %cst_3 = arith.constant dense<0.000000e+00> : vector<1xf32>
    %9 = vector.multi_reduction <add>, %8, %cst_3 [1] : vector<1x32xf32> to vector<1xf32>
    %10 = vector.shape_cast %9 : vector<1xf32> to vector<1x1xf32>
    %cst_4 = arith.constant 3.200000e+01 : f32
    %11 = vector.broadcast %cst_4 : f32 to vector<1x1xf32>
    %12 = arith.divf %10, %11 : vector<1x1xf32>
    %13 = vector.broadcast %5 : vector<1x1xf32> to vector<1x32xf32>
    %14 = arith.subf %1, %13 : vector<1x32xf32>
    %cst_5 = arith.constant 9.99999974E-6 : f32
    %15 = vector.broadcast %cst_5 : f32 to vector<1x1xf32>
    %16 = arith.addf %12, %15 : vector<1x1xf32>
    %17 = math.rsqrt %16 : vector<1x1xf32>
    %18 = vector.broadcast %17 : vector<1x1xf32> to vector<1x32xf32>
    %19 = arith.mulf %14, %18 : vector<1x32xf32>
    %c0_6 = arith.constant 0 : index
    %c0_7 = arith.constant 0 : index
    %20 = vector.load %arg22[%c0_6, %c0_7] : memref<1x32xf32, #tpu.memory_space<vmem>>, vector<1x32xf32>
    %21 = arith.mulf %19, %20 : vector<1x32xf32>
    %c0_8 = arith.constant 0 : index
    %c0_9 = arith.constant 0 : index
    %22 = vector.load %arg23[%c0_8, %c0_9] : memref<1x32xf32, #tpu.memory_space<vmem>>, vector<1x32xf32>
    %23 = arith.addf %21, %22 : vector<1x32xf32>
    %c0_10 = arith.constant 0 : index
    %c0_11 = arith.constant 0 : index
    %24 = vector.load %arg24[%c0_10, %c0_11] : memref<8x32xf32, #tpu.memory_space<vmem>>, vector<8x32xf32>
    %25 = vector.broadcast %23 : vector<1x32xf32> to vector<8x32xf32>
    %26 = arith.mulf %24, %25 : vector<8x32xf32>
    %cst_12 = arith.constant dense<0.000000e+00> : vector<8xf32>
    %27 = vector.multi_reduction <add>, %26, %cst_12 [1] : vector<8x32xf32> to vector<8xf32>
    %28 = vector.shape_cast %27 : vector<8xf32> to vector<8x1xf32>
    %c0_13 = arith.constant 0 : index
    %c0_14 = arith.constant 0 : index
    %29 = vector.load %arg25[%c0_13, %c0_14] : memref<8x1xf32, #tpu.memory_space<vmem>>, vector<8x1xf32>
    %30 = arith.addf %28, %29 : vector<8x1xf32>
    %cst_15 = arith.constant 0.000000e+00 : f32
    %31 = vector.broadcast %cst_15 : f32 to vector<8x1xf32>
    %32 = arith.subf %31, %30 : vector<8x1xf32>
    %33 = math.exp %32 : vector<8x1xf32>
    %cst_16 = arith.constant 1.000000e+00 : f32
    %34 = vector.broadcast %cst_16 : f32 to vector<8x1xf32>
    %35 = arith.addf %34, %33 : vector<8x1xf32>
    %cst_17 = arith.constant 1.000000e+00 : f32
    %36 = vector.broadcast %cst_17 : f32 to vector<8x1xf32>
    %37 = arith.divf %36, %35 : vector<8x1xf32>
    %38 = arith.mulf %30, %37 : vector<8x1xf32>
    %c0_18 = arith.constant 0 : index
    %c0_19 = arith.constant 0 : index
    %c0_20 = arith.constant 0 : index
    %39 = vector.load %arg1[%c0_18, %c0_19, %c0_20] : memref<1x8x64xf32, #tpu.memory_space<vmem>>, vector<1x8x64xf32>
    %40 = vector.shape_cast %39 : vector<1x8x64xf32> to vector<8x64xf32>
    %c0_21 = arith.constant 0 : index
    %c0_22 = arith.constant 0 : index
    %41 = vector.load %arg3[%c0_21, %c0_22] : memref<64x256xf32, #tpu.memory_space<vmem>>, vector<64x256xf32>
    %cst_23 = arith.constant dense<0.000000e+00> : vector<8x256xf32>
    %42 = tpu.matmul %40, %41, %cst_23 {dimension_numbers = #tpu.dot_dimension_numbers<[1], [0], [0], [1], [0, 0, 1, 1], [], []>} : vector<8x64xf32>, vector<64x256xf32>, vector<8x256xf32> -> vector<8x256xf32>
    %c0_24 = arith.constant 0 : index
    %c0_25 = arith.constant 0 : index
    %c0_26 = arith.constant 0 : index
    %43 = vector.load %arg2[%c0_24, %c0_25, %c0_26] : memref<1x8x256xf32, #tpu.memory_space<vmem>>, vector<1x8x256xf32>
    %44 = vector.shape_cast %43 : vector<1x8x256xf32> to vector<8x256xf32>
    %45 = tpu.concatenate %42, %44 in 0 : vector<8x256xf32>, vector<8x256xf32> -> vector<16x256xf32>
    %46 = vector.shape_cast %45 : vector<16x256xf32> to vector<1x16x256xf32>
    %cst_27 = arith.constant dense<0.000000e+00> : vector<1xf32>
    %47 = vector.multi_reduction <add>, %46, %cst_27 [1, 2] : vector<1x16x256xf32> to vector<1xf32>
    %48 = vector.shape_cast %47 : vector<1xf32> to vector<1x1x1xf32>
    %49 = vector.extract %48[0, 0, 0] : f32 from vector<1x1x1xf32>
    %50 = vector.broadcast %49 : f32 to vector<1x1xf32>
    %51 = arith.mulf %45, %45 : vector<16x256xf32>
    %52 = vector.shape_cast %51 : vector<16x256xf32> to vector<1x16x256xf32>
    %cst_28 = arith.constant dense<0.000000e+00> : vector<1xf32>
    %53 = vector.multi_reduction <add>, %52, %cst_28 [1, 2] : vector<1x16x256xf32> to vector<1xf32>
    %54 = vector.shape_cast %53 : vector<1xf32> to vector<1x1x1xf32>
    %55 = vector.extract %54[0, 0, 0] : f32 from vector<1x1x1xf32>
    %56 = vector.broadcast %55 : f32 to vector<1x1xf32>
    %cst_29 = arith.constant 4.096000e+03 : f32
    %57 = vector.broadcast %cst_29 : f32 to vector<1x1xf32>
    %58 = arith.divf %50, %57 : vector<1x1xf32>
    %cst_30 = arith.constant 4.096000e+03 : f32
    %59 = vector.broadcast %cst_30 : f32 to vector<1x1xf32>
    %60 = arith.divf %56, %59 : vector<1x1xf32>
    %61 = arith.mulf %58, %58 : vector<1x1xf32>
    %62 = arith.subf %60, %61 : vector<1x1xf32>
    %cst_31 = arith.constant 0.000000e+00 : f32
    %63 = vector.broadcast %cst_31 : f32 to vector<1x1xf32>
    %64 = arith.maximumf %62, %63 : vector<1x1xf32>
    %65 = vector.broadcast %58 : vector<1x1xf32> to vector<16x256xf32>
    %66 = arith.subf %45, %65 : vector<16x256xf32>
    %cst_32 = arith.constant 9.99999974E-6 : f32
    %67 = vector.broadcast %cst_32 : f32 to vector<1x1xf32>
    %68 = arith.addf %64, %67 : vector<1x1xf32>
    %69 = math.rsqrt %68 : vector<1x1xf32>
    %70 = vector.broadcast %69 : vector<1x1xf32> to vector<16x256xf32>
    %71 = arith.mulf %66, %70 : vector<16x256xf32>
    %c0_33 = arith.constant 0 : index
    %c0_34 = arith.constant 0 : index
    %72 = vector.load %arg5[%c0_33, %c0_34] : memref<16x1xf32, #tpu.memory_space<vmem>>, vector<16x1xf32>
    %73 = vector.broadcast %72 : vector<16x1xf32> to vector<16x256xf32>
    %74 = arith.mulf %71, %73 : vector<16x256xf32>
    %c0_35 = arith.constant 0 : index
    %c0_36 = arith.constant 0 : index
    %75 = vector.load %arg6[%c0_35, %c0_36] : memref<16x1xf32, #tpu.memory_space<vmem>>, vector<16x1xf32>
    %76 = vector.broadcast %75 : vector<16x1xf32> to vector<16x256xf32>
    %77 = arith.addf %74, %76 : vector<16x256xf32>
    %c17_i32 = arith.constant 17 : i32
    %78 = tpu.dynamic_rotate %77 by %c17_i32 dim 1 : vector<16x256xf32>, i32 -> vector<16x256xf32>
    %c0_37 = arith.constant 0 : index
    %c0_38 = arith.constant 0 : index
    %c0_39 = arith.constant 0 : index
    %79 = vector.load %arg4[%c0_37, %c0_38, %c0_39] : memref<9x1x256xf32, #tpu.memory_space<vmem>>, vector<1x1x256xf32>
    %80 = vector.shape_cast %79 : vector<1x1x256xf32> to vector<1x256xf32>
    %81 = vector.broadcast %80 : vector<1x256xf32> to vector<16x256xf32>
    %82 = arith.mulf %78, %81 : vector<16x256xf32>
    %c16_i32 = arith.constant 16 : i32
    %83 = tpu.dynamic_rotate %77 by %c16_i32 dim 1 : vector<16x256xf32>, i32 -> vector<16x256xf32>
    %c1 = arith.constant 1 : index
    %c0_40 = arith.constant 0 : index
    %c0_41 = arith.constant 0 : index
    %84 = vector.load %arg4[%c1, %c0_40, %c0_41] : memref<9x1x256xf32, #tpu.memory_space<vmem>>, vector<1x1x256xf32>
    %85 = vector.shape_cast %84 : vector<1x1x256xf32> to vector<1x256xf32>
    %86 = vector.broadcast %85 : vector<1x256xf32> to vector<16x256xf32>
    %87 = arith.mulf %83, %86 : vector<16x256xf32>
    %c15_i32 = arith.constant 15 : i32
    %88 = tpu.dynamic_rotate %77 by %c15_i32 dim 1 : vector<16x256xf32>, i32 -> vector<16x256xf32>
    %c2 = arith.constant 2 : index
    %c0_42 = arith.constant 0 : index
    %c0_43 = arith.constant 0 : index
    %89 = vector.load %arg4[%c2, %c0_42, %c0_43] : memref<9x1x256xf32, #tpu.memory_space<vmem>>, vector<1x1x256xf32>
    %90 = vector.shape_cast %89 : vector<1x1x256xf32> to vector<1x256xf32>
    %91 = vector.broadcast %90 : vector<1x256xf32> to vector<16x256xf32>
    %92 = arith.mulf %88, %91 : vector<16x256xf32>
    %c1_i32 = arith.constant 1 : i32
    %93 = tpu.dynamic_rotate %77 by %c1_i32 dim 1 : vector<16x256xf32>, i32 -> vector<16x256xf32>
    %c3 = arith.constant 3 : index
    %c0_44 = arith.constant 0 : index
    %c0_45 = arith.constant 0 : index
    %94 = vector.load %arg4[%c3, %c0_44, %c0_45] : memref<9x1x256xf32, #tpu.memory_space<vmem>>, vector<1x1x256xf32>
    %95 = vector.shape_cast %94 : vector<1x1x256xf32> to vector<1x256xf32>
    %96 = vector.broadcast %95 : vector<1x256xf32> to vector<16x256xf32>
    %97 = arith.mulf %93, %96 : vector<16x256xf32>
    %c255_i32 = arith.constant 255 : i32
    %98 = tpu.dynamic_rotate %77 by %c255_i32 dim 1 : vector<16x256xf32>, i32 -> vector<16x256xf32>
    %c5 = arith.constant 5 : index
    %c0_46 = arith.constant 0 : index
    %c0_47 = arith.constant 0 : index
    %99 = vector.load %arg4[%c5, %c0_46, %c0_47] : memref<9x1x256xf32, #tpu.memory_space<vmem>>, vector<1x1x256xf32>
    %100 = vector.shape_cast %99 : vector<1x1x256xf32> to vector<1x256xf32>
    %101 = vector.broadcast %100 : vector<1x256xf32> to vector<16x256xf32>
    %102 = arith.mulf %98, %101 : vector<16x256xf32>
    %c241_i32 = arith.constant 241 : i32
    %103 = tpu.dynamic_rotate %77 by %c241_i32 dim 1 : vector<16x256xf32>, i32 -> vector<16x256xf32>
    %c6 = arith.constant 6 : index
    %c0_48 = arith.constant 0 : index
    %c0_49 = arith.constant 0 : index
    %104 = vector.load %arg4[%c6, %c0_48, %c0_49] : memref<9x1x256xf32, #tpu.memory_space<vmem>>, vector<1x1x256xf32>
    %105 = vector.shape_cast %104 : vector<1x1x256xf32> to vector<1x256xf32>
    %106 = vector.broadcast %105 : vector<1x256xf32> to vector<16x256xf32>
    %107 = arith.mulf %103, %106 : vector<16x256xf32>
    %c240_i32 = arith.constant 240 : i32
    %108 = tpu.dynamic_rotate %77 by %c240_i32 dim 1 : vector<16x256xf32>, i32 -> vector<16x256xf32>
    %c7 = arith.constant 7 : index
    %c0_50 = arith.constant 0 : index
    %c0_51 = arith.constant 0 : index
    %109 = vector.load %arg4[%c7, %c0_50, %c0_51] : memref<9x1x256xf32, #tpu.memory_space<vmem>>, vector<1x1x256xf32>
    %110 = vector.shape_cast %109 : vector<1x1x256xf32> to vector<1x256xf32>
    %111 = vector.broadcast %110 : vector<1x256xf32> to vector<16x256xf32>
    %112 = arith.mulf %108, %111 : vector<16x256xf32>
    %c239_i32 = arith.constant 239 : i32
    %113 = tpu.dynamic_rotate %77 by %c239_i32 dim 1 : vector<16x256xf32>, i32 -> vector<16x256xf32>
    %c8 = arith.constant 8 : index
    %c0_52 = arith.constant 0 : index
    %c0_53 = arith.constant 0 : index
    %114 = vector.load %arg4[%c8, %c0_52, %c0_53] : memref<9x1x256xf32, #tpu.memory_space<vmem>>, vector<1x1x256xf32>
    %115 = vector.shape_cast %114 : vector<1x1x256xf32> to vector<1x256xf32>
    %116 = vector.broadcast %115 : vector<1x256xf32> to vector<16x256xf32>
    %117 = arith.mulf %113, %116 : vector<16x256xf32>
    %118 = tpu.concatenate %82, %87, %92, %97, %77, %102, %107, %112, %117 in 0 : vector<16x256xf32>, vector<16x256xf32>, vector<16x256xf32>, vector<16x256xf32>, vector<16x256xf32>, vector<16x256xf32>, vector<16x256xf32>, vector<16x256xf32>, vector<16x256xf32> -> vector<144x256xf32>
    %c0_54 = arith.constant 0 : index
    %c0_55 = arith.constant 0 : index
    %119 = vector.load %arg7[%c0_54, %c0_55] : memref<8x144xf32, #tpu.memory_space<vmem>>, vector<8x144xf32>
    %cst_56 = arith.constant dense<0.000000e+00> : vector<8x256xf32>
    %120 = tpu.matmul %119, %118, %cst_56 {dimension_numbers = #tpu.dot_dimension_numbers<[1], [0], [0], [1], [0, 0, 1, 1], [], []>} : vector<8x144xf32>, vector<144x256xf32>, vector<8x256xf32> -> vector<8x256xf32>
    %c0_57 = arith.constant 0 : index
    %c0_58 = arith.constant 0 : index
    %121 = vector.load %arg8[%c0_57, %c0_58] : memref<8x1xf32, #tpu.memory_space<vmem>>, vector<8x1xf32>
    %122 = vector.broadcast %121 : vector<8x1xf32> to vector<8x256xf32>
    %123 = arith.addf %120, %122 : vector<8x256xf32>
    %cst_59 = arith.constant 5.000000e-01 : f32
    %124 = vector.broadcast %cst_59 : f32 to vector<8x256xf32>
    %125 = arith.mulf %124, %123 : vector<8x256xf32>
    %cst_60 = arith.constant 0.707106769 : f32
    %126 = vector.broadcast %cst_60 : f32 to vector<8x256xf32>
    %127 = arith.mulf %123, %126 : vector<8x256xf32>
    %cst_61 = arith.constant 0.000000e+00 : f32
    %128 = vector.broadcast %cst_61 : f32 to vector<8x256xf32>
    %129 = arith.cmpf oge, %127, %128 : vector<8x256xf32>
    %cst_62 = arith.constant 1.000000e+00 : f32
    %cst_63 = arith.constant -1.000000e+00 : f32
    %130 = vector.broadcast %cst_62 : f32 to vector<8x256xf32>
    %131 = vector.broadcast %cst_63 : f32 to vector<8x256xf32>
    %132 = arith.select %129, %130, %131 : vector<8x256xi1>, vector<8x256xf32>
    %133 = math.absf %127 : vector<8x256xf32>
    %cst_64 = arith.constant 0.327591091 : f32
    %134 = vector.broadcast %cst_64 : f32 to vector<8x256xf32>
    %135 = arith.mulf %134, %133 : vector<8x256xf32>
    %cst_65 = arith.constant 1.000000e+00 : f32
    %136 = vector.broadcast %cst_65 : f32 to vector<8x256xf32>
    %137 = arith.addf %136, %135 : vector<8x256xf32>
    %cst_66 = arith.constant 1.000000e+00 : f32
    %138 = vector.broadcast %cst_66 : f32 to vector<8x256xf32>
    %139 = arith.divf %138, %137 : vector<8x256xf32>
    %cst_67 = arith.constant 1.06140542 : f32
    %140 = vector.broadcast %cst_67 : f32 to vector<8x256xf32>
    %141 = arith.mulf %140, %139 : vector<8x256xf32>
    %cst_68 = arith.constant -1.45315206 : f32
    %142 = vector.broadcast %cst_68 : f32 to vector<8x256xf32>
    %143 = arith.addf %141, %142 : vector<8x256xf32>
    %144 = arith.mulf %143, %139 : vector<8x256xf32>
    %cst_69 = arith.constant 1.42141378 : f32
    %145 = vector.broadcast %cst_69 : f32 to vector<8x256xf32>
    %146 = arith.addf %144, %145 : vector<8x256xf32>
    %147 = arith.mulf %146, %139 : vector<8x256xf32>
    %cst_70 = arith.constant -0.284496725 : f32
    %148 = vector.broadcast %cst_70 : f32 to vector<8x256xf32>
    %149 = arith.addf %147, %148 : vector<8x256xf32>
    %150 = arith.mulf %149, %139 : vector<8x256xf32>
    %cst_71 = arith.constant 0.254829586 : f32
    %151 = vector.broadcast %cst_71 : f32 to vector<8x256xf32>
    %152 = arith.addf %150, %151 : vector<8x256xf32>
    %153 = arith.mulf %152, %139 : vector<8x256xf32>
    %cst_72 = arith.constant 0.000000e+00 : f32
    %154 = vector.broadcast %cst_72 : f32 to vector<8x256xf32>
    %155 = arith.subf %154, %133 : vector<8x256xf32>
    %156 = arith.mulf %155, %133 : vector<8x256xf32>
    %157 = math.exp %156 : vector<8x256xf32>
    %158 = arith.mulf %153, %157 : vector<8x256xf32>
    %cst_73 = arith.constant 1.000000e+00 : f32
    %159 = vector.broadcast %cst_73 : f32 to vector<8x256xf32>
    %160 = arith.subf %159, %158 : vector<8x256xf32>
    %161 = arith.mulf %132, %160 : vector<8x256xf32>
    %cst_74 = arith.constant 1.000000e+00 : f32
    %162 = vector.broadcast %cst_74 : f32 to vector<8x256xf32>
    %163 = arith.addf %162, %161 : vector<8x256xf32>
    %164 = arith.mulf %125, %163 : vector<8x256xf32>
    %165 = vector.shape_cast %164 : vector<8x256xf32> to vector<1x8x256xf32>
    %cst_75 = arith.constant dense<0.000000e+00> : vector<1xf32>
    %166 = vector.multi_reduction <add>, %165, %cst_75 [1, 2] : vector<1x8x256xf32> to vector<1xf32>
    %167 = vector.shape_cast %166 : vector<1xf32> to vector<1x1x1xf32>
    %168 = vector.extract %167[0, 0, 0] : f32 from vector<1x1x1xf32>
    %169 = vector.broadcast %168 : f32 to vector<1x1xf32>
    %170 = arith.mulf %164, %164 : vector<8x256xf32>
    %171 = vector.shape_cast %170 : vector<8x256xf32> to vector<1x8x256xf32>
    %cst_76 = arith.constant dense<0.000000e+00> : vector<1xf32>
    %172 = vector.multi_reduction <add>, %171, %cst_76 [1, 2] : vector<1x8x256xf32> to vector<1xf32>
    %173 = vector.shape_cast %172 : vector<1xf32> to vector<1x1x1xf32>
    %174 = vector.extract %173[0, 0, 0] : f32 from vector<1x1x1xf32>
    %175 = vector.broadcast %174 : f32 to vector<1x1xf32>
    %cst_77 = arith.constant 2.048000e+03 : f32
    %176 = vector.broadcast %cst_77 : f32 to vector<1x1xf32>
    %177 = arith.divf %169, %176 : vector<1x1xf32>
    %cst_78 = arith.constant 2.048000e+03 : f32
    %178 = vector.broadcast %cst_78 : f32 to vector<1x1xf32>
    %179 = arith.divf %175, %178 : vector<1x1xf32>
    %180 = arith.mulf %177, %177 : vector<1x1xf32>
    %181 = arith.subf %179, %180 : vector<1x1xf32>
    %cst_79 = arith.constant 0.000000e+00 : f32
    %182 = vector.broadcast %cst_79 : f32 to vector<1x1xf32>
    %183 = arith.maximumf %181, %182 : vector<1x1xf32>
    %184 = vector.broadcast %177 : vector<1x1xf32> to vector<8x256xf32>
    %185 = arith.subf %164, %184 : vector<8x256xf32>
    %cst_80 = arith.constant 9.99999974E-6 : f32
    %186 = vector.broadcast %cst_80 : f32 to vector<1x1xf32>
    %187 = arith.addf %183, %186 : vector<1x1xf32>
    %188 = math.rsqrt %187 : vector<1x1xf32>
    %189 = vector.broadcast %188 : vector<1x1xf32> to vector<8x256xf32>
    %190 = arith.mulf %185, %189 : vector<8x256xf32>
    %c0_81 = arith.constant 0 : index
    %c0_82 = arith.constant 0 : index
    %191 = vector.load %arg9[%c0_81, %c0_82] : memref<8x1xf32, #tpu.memory_space<vmem>>, vector<8x1xf32>
    %192 = vector.broadcast %191 : vector<8x1xf32> to vector<8x256xf32>
    %193 = arith.mulf %190, %192 : vector<8x256xf32>
    %c0_83 = arith.constant 0 : index
    %c0_84 = arith.constant 0 : index
    %194 = vector.load %arg10[%c0_83, %c0_84] : memref<8x1xf32, #tpu.memory_space<vmem>>, vector<8x1xf32>
    %195 = vector.broadcast %194 : vector<8x1xf32> to vector<8x256xf32>
    %196 = arith.addf %193, %195 : vector<8x256xf32>
    %c17_i32_85 = arith.constant 17 : i32
    %197 = tpu.dynamic_rotate %196 by %c17_i32_85 dim 1 : vector<8x256xf32>, i32 -> vector<8x256xf32>
    %c0_86 = arith.constant 0 : index
    %c0_87 = arith.constant 0 : index
    %c0_88 = arith.constant 0 : index
    %198 = vector.load %arg4[%c0_86, %c0_87, %c0_88] : memref<9x1x256xf32, #tpu.memory_space<vmem>>, vector<1x1x256xf32>
    %199 = vector.shape_cast %198 : vector<1x1x256xf32> to vector<1x256xf32>
    %200 = vector.broadcast %199 : vector<1x256xf32> to vector<8x256xf32>
    %201 = arith.mulf %197, %200 : vector<8x256xf32>
    %c16_i32_89 = arith.constant 16 : i32
    %202 = tpu.dynamic_rotate %196 by %c16_i32_89 dim 1 : vector<8x256xf32>, i32 -> vector<8x256xf32>
    %c1_90 = arith.constant 1 : index
    %c0_91 = arith.constant 0 : index
    %c0_92 = arith.constant 0 : index
    %203 = vector.load %arg4[%c1_90, %c0_91, %c0_92] : memref<9x1x256xf32, #tpu.memory_space<vmem>>, vector<1x1x256xf32>
    %204 = vector.shape_cast %203 : vector<1x1x256xf32> to vector<1x256xf32>
    %205 = vector.broadcast %204 : vector<1x256xf32> to vector<8x256xf32>
    %206 = arith.mulf %202, %205 : vector<8x256xf32>
    %c15_i32_93 = arith.constant 15 : i32
    %207 = tpu.dynamic_rotate %196 by %c15_i32_93 dim 1 : vector<8x256xf32>, i32 -> vector<8x256xf32>
    %c2_94 = arith.constant 2 : index
    %c0_95 = arith.constant 0 : index
    %c0_96 = arith.constant 0 : index
    %208 = vector.load %arg4[%c2_94, %c0_95, %c0_96] : memref<9x1x256xf32, #tpu.memory_space<vmem>>, vector<1x1x256xf32>
    %209 = vector.shape_cast %208 : vector<1x1x256xf32> to vector<1x256xf32>
    %210 = vector.broadcast %209 : vector<1x256xf32> to vector<8x256xf32>
    %211 = arith.mulf %207, %210 : vector<8x256xf32>
    %c1_i32_97 = arith.constant 1 : i32
    %212 = tpu.dynamic_rotate %196 by %c1_i32_97 dim 1 : vector<8x256xf32>, i32 -> vector<8x256xf32>
    %c3_98 = arith.constant 3 : index
    %c0_99 = arith.constant 0 : index
    %c0_100 = arith.constant 0 : index
    %213 = vector.load %arg4[%c3_98, %c0_99, %c0_100] : memref<9x1x256xf32, #tpu.memory_space<vmem>>, vector<1x1x256xf32>
    %214 = vector.shape_cast %213 : vector<1x1x256xf32> to vector<1x256xf32>
    %215 = vector.broadcast %214 : vector<1x256xf32> to vector<8x256xf32>
    %216 = arith.mulf %212, %215 : vector<8x256xf32>
    %c255_i32_101 = arith.constant 255 : i32
    %217 = tpu.dynamic_rotate %196 by %c255_i32_101 dim 1 : vector<8x256xf32>, i32 -> vector<8x256xf32>
    %c5_102 = arith.constant 5 : index
    %c0_103 = arith.constant 0 : index
    %c0_104 = arith.constant 0 : index
    %218 = vector.load %arg4[%c5_102, %c0_103, %c0_104] : memref<9x1x256xf32, #tpu.memory_space<vmem>>, vector<1x1x256xf32>
    %219 = vector.shape_cast %218 : vector<1x1x256xf32> to vector<1x256xf32>
    %220 = vector.broadcast %219 : vector<1x256xf32> to vector<8x256xf32>
    %221 = arith.mulf %217, %220 : vector<8x256xf32>
    %c241_i32_105 = arith.constant 241 : i32
    %222 = tpu.dynamic_rotate %196 by %c241_i32_105 dim 1 : vector<8x256xf32>, i32 -> vector<8x256xf32>
    %c6_106 = arith.constant 6 : index
    %c0_107 = arith.constant 0 : index
    %c0_108 = arith.constant 0 : index
    %223 = vector.load %arg4[%c6_106, %c0_107, %c0_108] : memref<9x1x256xf32, #tpu.memory_space<vmem>>, vector<1x1x256xf32>
    %224 = vector.shape_cast %223 : vector<1x1x256xf32> to vector<1x256xf32>
    %225 = vector.broadcast %224 : vector<1x256xf32> to vector<8x256xf32>
    %226 = arith.mulf %222, %225 : vector<8x256xf32>
    %c240_i32_109 = arith.constant 240 : i32
    %227 = tpu.dynamic_rotate %196 by %c240_i32_109 dim 1 : vector<8x256xf32>, i32 -> vector<8x256xf32>
    %c7_110 = arith.constant 7 : index
    %c0_111 = arith.constant 0 : index
    %c0_112 = arith.constant 0 : index
    %228 = vector.load %arg4[%c7_110, %c0_111, %c0_112] : memref<9x1x256xf32, #tpu.memory_space<vmem>>, vector<1x1x256xf32>
    %229 = vector.shape_cast %228 : vector<1x1x256xf32> to vector<1x256xf32>
    %230 = vector.broadcast %229 : vector<1x256xf32> to vector<8x256xf32>
    %231 = arith.mulf %227, %230 : vector<8x256xf32>
    %c239_i32_113 = arith.constant 239 : i32
    %232 = tpu.dynamic_rotate %196 by %c239_i32_113 dim 1 : vector<8x256xf32>, i32 -> vector<8x256xf32>
    %c8_114 = arith.constant 8 : index
    %c0_115 = arith.constant 0 : index
    %c0_116 = arith.constant 0 : index
    %233 = vector.load %arg4[%c8_114, %c0_115, %c0_116] : memref<9x1x256xf32, #tpu.memory_space<vmem>>, vector<1x1x256xf32>
    %234 = vector.shape_cast %233 : vector<1x1x256xf32> to vector<1x256xf32>
    %235 = vector.broadcast %234 : vector<1x256xf32> to vector<8x256xf32>
    %236 = arith.mulf %232, %235 : vector<8x256xf32>
    %237 = tpu.concatenate %201, %206, %211, %216, %196, %221, %226, %231, %236 in 0 : vector<8x256xf32>, vector<8x256xf32>, vector<8x256xf32>, vector<8x256xf32>, vector<8x256xf32>, vector<8x256xf32>, vector<8x256xf32>, vector<8x256xf32>, vector<8x256xf32> -> vector<72x256xf32>
    %c0_117 = arith.constant 0 : index
    %c0_118 = arith.constant 0 : index
    %238 = vector.load %arg11[%c0_117, %c0_118] : memref<8x72xf32, #tpu.memory_space<vmem>>, vector<8x72xf32>
    %cst_119 = arith.constant dense<0.000000e+00> : vector<8x256xf32>
    %239 = tpu.matmul %238, %237, %cst_119 {dimension_numbers = #tpu.dot_dimension_numbers<[1], [0], [0], [1], [0, 0, 1, 1], [], []>} : vector<8x72xf32>, vector<72x256xf32>, vector<8x256xf32> -> vector<8x256xf32>
    %c0_120 = arith.constant 0 : index
    %c0_121 = arith.constant 0 : index
    %240 = vector.load %arg12[%c0_120, %c0_121] : memref<8x1xf32, #tpu.memory_space<vmem>>, vector<8x1xf32>
    %241 = vector.broadcast %240 : vector<8x1xf32> to vector<8x256xf32>
    %242 = arith.addf %239, %241 : vector<8x256xf32>
    %cst_122 = arith.constant 5.000000e-01 : f32
    %243 = vector.broadcast %cst_122 : f32 to vector<8x256xf32>
    %244 = arith.mulf %243, %242 : vector<8x256xf32>
    %cst_123 = arith.constant 0.707106769 : f32
    %245 = vector.broadcast %cst_123 : f32 to vector<8x256xf32>
    %246 = arith.mulf %242, %245 : vector<8x256xf32>
    %cst_124 = arith.constant 0.000000e+00 : f32
    %247 = vector.broadcast %cst_124 : f32 to vector<8x256xf32>
    %248 = arith.cmpf oge, %246, %247 : vector<8x256xf32>
    %cst_125 = arith.constant 1.000000e+00 : f32
    %cst_126 = arith.constant -1.000000e+00 : f32
    %249 = vector.broadcast %cst_125 : f32 to vector<8x256xf32>
    %250 = vector.broadcast %cst_126 : f32 to vector<8x256xf32>
    %251 = arith.select %248, %249, %250 : vector<8x256xi1>, vector<8x256xf32>
    %252 = math.absf %246 : vector<8x256xf32>
    %cst_127 = arith.constant 0.327591091 : f32
    %253 = vector.broadcast %cst_127 : f32 to vector<8x256xf32>
    %254 = arith.mulf %253, %252 : vector<8x256xf32>
    %cst_128 = arith.constant 1.000000e+00 : f32
    %255 = vector.broadcast %cst_128 : f32 to vector<8x256xf32>
    %256 = arith.addf %255, %254 : vector<8x256xf32>
    %cst_129 = arith.constant 1.000000e+00 : f32
    %257 = vector.broadcast %cst_129 : f32 to vector<8x256xf32>
    %258 = arith.divf %257, %256 : vector<8x256xf32>
    %cst_130 = arith.constant 1.06140542 : f32
    %259 = vector.broadcast %cst_130 : f32 to vector<8x256xf32>
    %260 = arith.mulf %259, %258 : vector<8x256xf32>
    %cst_131 = arith.constant -1.45315206 : f32
    %261 = vector.broadcast %cst_131 : f32 to vector<8x256xf32>
    %262 = arith.addf %260, %261 : vector<8x256xf32>
    %263 = arith.mulf %262, %258 : vector<8x256xf32>
    %cst_132 = arith.constant 1.42141378 : f32
    %264 = vector.broadcast %cst_132 : f32 to vector<8x256xf32>
    %265 = arith.addf %263, %264 : vector<8x256xf32>
    %266 = arith.mulf %265, %258 : vector<8x256xf32>
    %cst_133 = arith.constant -0.284496725 : f32
    %267 = vector.broadcast %cst_133 : f32 to vector<8x256xf32>
    %268 = arith.addf %266, %267 : vector<8x256xf32>
    %269 = arith.mulf %268, %258 : vector<8x256xf32>
    %cst_134 = arith.constant 0.254829586 : f32
    %270 = vector.broadcast %cst_134 : f32 to vector<8x256xf32>
    %271 = arith.addf %269, %270 : vector<8x256xf32>
    %272 = arith.mulf %271, %258 : vector<8x256xf32>
    %cst_135 = arith.constant 0.000000e+00 : f32
    %273 = vector.broadcast %cst_135 : f32 to vector<8x256xf32>
    %274 = arith.subf %273, %252 : vector<8x256xf32>
    %275 = arith.mulf %274, %252 : vector<8x256xf32>
    %276 = math.exp %275 : vector<8x256xf32>
    %277 = arith.mulf %272, %276 : vector<8x256xf32>
    %cst_136 = arith.constant 1.000000e+00 : f32
    %278 = vector.broadcast %cst_136 : f32 to vector<8x256xf32>
    %279 = arith.subf %278, %277 : vector<8x256xf32>
    %280 = arith.mulf %251, %279 : vector<8x256xf32>
    %cst_137 = arith.constant 1.000000e+00 : f32
    %281 = vector.broadcast %cst_137 : f32 to vector<8x256xf32>
    %282 = arith.addf %281, %280 : vector<8x256xf32>
    %283 = arith.mulf %244, %282 : vector<8x256xf32>
    %284 = vector.shape_cast %283 : vector<8x256xf32> to vector<1x8x256xf32>
    %cst_138 = arith.constant dense<0.000000e+00> : vector<1xf32>
    %285 = vector.multi_reduction <add>, %284, %cst_138 [1, 2] : vector<1x8x256xf32> to vector<1xf32>
    %286 = vector.shape_cast %285 : vector<1xf32> to vector<1x1x1xf32>
    %287 = vector.extract %286[0, 0, 0] : f32 from vector<1x1x1xf32>
    %288 = vector.broadcast %287 : f32 to vector<1x1xf32>
    %289 = arith.mulf %283, %283 : vector<8x256xf32>
    %290 = vector.shape_cast %289 : vector<8x256xf32> to vector<1x8x256xf32>
    %cst_139 = arith.constant dense<0.000000e+00> : vector<1xf32>
    %291 = vector.multi_reduction <add>, %290, %cst_139 [1, 2] : vector<1x8x256xf32> to vector<1xf32>
    %292 = vector.shape_cast %291 : vector<1xf32> to vector<1x1x1xf32>
    %293 = vector.extract %292[0, 0, 0] : f32 from vector<1x1x1xf32>
    %294 = vector.broadcast %293 : f32 to vector<1x1xf32>
    %cst_140 = arith.constant 2.048000e+03 : f32
    %295 = vector.broadcast %cst_140 : f32 to vector<1x1xf32>
    %296 = arith.divf %288, %295 : vector<1x1xf32>
    %cst_141 = arith.constant 2.048000e+03 : f32
    %297 = vector.broadcast %cst_141 : f32 to vector<1x1xf32>
    %298 = arith.divf %294, %297 : vector<1x1xf32>
    %299 = arith.mulf %296, %296 : vector<1x1xf32>
    %300 = arith.subf %298, %299 : vector<1x1xf32>
    %cst_142 = arith.constant 0.000000e+00 : f32
    %301 = vector.broadcast %cst_142 : f32 to vector<1x1xf32>
    %302 = arith.maximumf %300, %301 : vector<1x1xf32>
    %303 = vector.broadcast %296 : vector<1x1xf32> to vector<8x256xf32>
    %304 = arith.subf %283, %303 : vector<8x256xf32>
    %cst_143 = arith.constant 9.99999974E-6 : f32
    %305 = vector.broadcast %cst_143 : f32 to vector<1x1xf32>
    %306 = arith.addf %302, %305 : vector<1x1xf32>
    %307 = math.rsqrt %306 : vector<1x1xf32>
    %308 = vector.broadcast %307 : vector<1x1xf32> to vector<8x256xf32>
    %309 = arith.mulf %304, %308 : vector<8x256xf32>
    %c0_144 = arith.constant 0 : index
    %c0_145 = arith.constant 0 : index
    %310 = vector.load %arg13[%c0_144, %c0_145] : memref<8x1xf32, #tpu.memory_space<vmem>>, vector<8x1xf32>
    %311 = vector.broadcast %310 : vector<8x1xf32> to vector<8x256xf32>
    %312 = arith.mulf %309, %311 : vector<8x256xf32>
    %c0_146 = arith.constant 0 : index
    %c0_147 = arith.constant 0 : index
    %313 = vector.load %arg14[%c0_146, %c0_147] : memref<8x1xf32, #tpu.memory_space<vmem>>, vector<8x1xf32>
    %314 = vector.broadcast %313 : vector<8x1xf32> to vector<8x256xf32>
    %315 = arith.addf %312, %314 : vector<8x256xf32>
    %c17_i32_148 = arith.constant 17 : i32
    %316 = tpu.dynamic_rotate %315 by %c17_i32_148 dim 1 : vector<8x256xf32>, i32 -> vector<8x256xf32>
    %c0_149 = arith.constant 0 : index
    %c0_150 = arith.constant 0 : index
    %c0_151 = arith.constant 0 : index
    %317 = vector.load %arg4[%c0_149, %c0_150, %c0_151] : memref<9x1x256xf32, #tpu.memory_space<vmem>>, vector<1x1x256xf32>
    %318 = vector.shape_cast %317 : vector<1x1x256xf32> to vector<1x256xf32>
    %319 = vector.broadcast %318 : vector<1x256xf32> to vector<8x256xf32>
    %320 = arith.mulf %316, %319 : vector<8x256xf32>
    %c16_i32_152 = arith.constant 16 : i32
    %321 = tpu.dynamic_rotate %315 by %c16_i32_152 dim 1 : vector<8x256xf32>, i32 -> vector<8x256xf32>
    %c1_153 = arith.constant 1 : index
    %c0_154 = arith.constant 0 : index
    %c0_155 = arith.constant 0 : index
    %322 = vector.load %arg4[%c1_153, %c0_154, %c0_155] : memref<9x1x256xf32, #tpu.memory_space<vmem>>, vector<1x1x256xf32>
    %323 = vector.shape_cast %322 : vector<1x1x256xf32> to vector<1x256xf32>
    %324 = vector.broadcast %323 : vector<1x256xf32> to vector<8x256xf32>
    %325 = arith.mulf %321, %324 : vector<8x256xf32>
    %c15_i32_156 = arith.constant 15 : i32
    %326 = tpu.dynamic_rotate %315 by %c15_i32_156 dim 1 : vector<8x256xf32>, i32 -> vector<8x256xf32>
    %c2_157 = arith.constant 2 : index
    %c0_158 = arith.constant 0 : index
    %c0_159 = arith.constant 0 : index
    %327 = vector.load %arg4[%c2_157, %c0_158, %c0_159] : memref<9x1x256xf32, #tpu.memory_space<vmem>>, vector<1x1x256xf32>
    %328 = vector.shape_cast %327 : vector<1x1x256xf32> to vector<1x256xf32>
    %329 = vector.broadcast %328 : vector<1x256xf32> to vector<8x256xf32>
    %330 = arith.mulf %326, %329 : vector<8x256xf32>
    %c1_i32_160 = arith.constant 1 : i32
    %331 = tpu.dynamic_rotate %315 by %c1_i32_160 dim 1 : vector<8x256xf32>, i32 -> vector<8x256xf32>
    %c3_161 = arith.constant 3 : index
    %c0_162 = arith.constant 0 : index
    %c0_163 = arith.constant 0 : index
    %332 = vector.load %arg4[%c3_161, %c0_162, %c0_163] : memref<9x1x256xf32, #tpu.memory_space<vmem>>, vector<1x1x256xf32>
    %333 = vector.shape_cast %332 : vector<1x1x256xf32> to vector<1x256xf32>
    %334 = vector.broadcast %333 : vector<1x256xf32> to vector<8x256xf32>
    %335 = arith.mulf %331, %334 : vector<8x256xf32>
    %c255_i32_164 = arith.constant 255 : i32
    %336 = tpu.dynamic_rotate %315 by %c255_i32_164 dim 1 : vector<8x256xf32>, i32 -> vector<8x256xf32>
    %c5_165 = arith.constant 5 : index
    %c0_166 = arith.constant 0 : index
    %c0_167 = arith.constant 0 : index
    %337 = vector.load %arg4[%c5_165, %c0_166, %c0_167] : memref<9x1x256xf32, #tpu.memory_space<vmem>>, vector<1x1x256xf32>
    %338 = vector.shape_cast %337 : vector<1x1x256xf32> to vector<1x256xf32>
    %339 = vector.broadcast %338 : vector<1x256xf32> to vector<8x256xf32>
    %340 = arith.mulf %336, %339 : vector<8x256xf32>
    %c241_i32_168 = arith.constant 241 : i32
    %341 = tpu.dynamic_rotate %315 by %c241_i32_168 dim 1 : vector<8x256xf32>, i32 -> vector<8x256xf32>
    %c6_169 = arith.constant 6 : index
    %c0_170 = arith.constant 0 : index
    %c0_171 = arith.constant 0 : index
    %342 = vector.load %arg4[%c6_169, %c0_170, %c0_171] : memref<9x1x256xf32, #tpu.memory_space<vmem>>, vector<1x1x256xf32>
    %343 = vector.shape_cast %342 : vector<1x1x256xf32> to vector<1x256xf32>
    %344 = vector.broadcast %343 : vector<1x256xf32> to vector<8x256xf32>
    %345 = arith.mulf %341, %344 : vector<8x256xf32>
    %c240_i32_172 = arith.constant 240 : i32
    %346 = tpu.dynamic_rotate %315 by %c240_i32_172 dim 1 : vector<8x256xf32>, i32 -> vector<8x256xf32>
    %c7_173 = arith.constant 7 : index
    %c0_174 = arith.constant 0 : index
    %c0_175 = arith.constant 0 : index
    %347 = vector.load %arg4[%c7_173, %c0_174, %c0_175] : memref<9x1x256xf32, #tpu.memory_space<vmem>>, vector<1x1x256xf32>
    %348 = vector.shape_cast %347 : vector<1x1x256xf32> to vector<1x256xf32>
    %349 = vector.broadcast %348 : vector<1x256xf32> to vector<8x256xf32>
    %350 = arith.mulf %346, %349 : vector<8x256xf32>
    %c239_i32_176 = arith.constant 239 : i32
    %351 = tpu.dynamic_rotate %315 by %c239_i32_176 dim 1 : vector<8x256xf32>, i32 -> vector<8x256xf32>
    %c8_177 = arith.constant 8 : index
    %c0_178 = arith.constant 0 : index
    %c0_179 = arith.constant 0 : index
    %352 = vector.load %arg4[%c8_177, %c0_178, %c0_179] : memref<9x1x256xf32, #tpu.memory_space<vmem>>, vector<1x1x256xf32>
    %353 = vector.shape_cast %352 : vector<1x1x256xf32> to vector<1x256xf32>
    %354 = vector.broadcast %353 : vector<1x256xf32> to vector<8x256xf32>
    %355 = arith.mulf %351, %354 : vector<8x256xf32>
    %356 = tpu.concatenate %320, %325, %330, %335, %315, %340, %345, %350, %355 in 0 : vector<8x256xf32>, vector<8x256xf32>, vector<8x256xf32>, vector<8x256xf32>, vector<8x256xf32>, vector<8x256xf32>, vector<8x256xf32>, vector<8x256xf32>, vector<8x256xf32> -> vector<72x256xf32>
    %c0_180 = arith.constant 0 : index
    %c0_181 = arith.constant 0 : index
    %357 = vector.load %arg15[%c0_180, %c0_181] : memref<8x72xf32, #tpu.memory_space<vmem>>, vector<8x72xf32>
    %cst_182 = arith.constant dense<0.000000e+00> : vector<8x256xf32>
    %358 = tpu.matmul %357, %356, %cst_182 {dimension_numbers = #tpu.dot_dimension_numbers<[1], [0], [0], [1], [0, 0, 1, 1], [], []>} : vector<8x72xf32>, vector<72x256xf32>, vector<8x256xf32> -> vector<8x256xf32>
    %c0_183 = arith.constant 0 : index
    %c0_184 = arith.constant 0 : index
    %359 = vector.load %arg16[%c0_183, %c0_184] : memref<8x1xf32, #tpu.memory_space<vmem>>, vector<8x1xf32>
    %360 = vector.broadcast %359 : vector<8x1xf32> to vector<8x256xf32>
    %361 = arith.addf %358, %360 : vector<8x256xf32>
    %cst_185 = arith.constant 5.000000e-01 : f32
    %362 = vector.broadcast %cst_185 : f32 to vector<8x256xf32>
    %363 = arith.mulf %362, %361 : vector<8x256xf32>
    %cst_186 = arith.constant 0.707106769 : f32
    %364 = vector.broadcast %cst_186 : f32 to vector<8x256xf32>
    %365 = arith.mulf %361, %364 : vector<8x256xf32>
    %cst_187 = arith.constant 0.000000e+00 : f32
    %366 = vector.broadcast %cst_187 : f32 to vector<8x256xf32>
    %367 = arith.cmpf oge, %365, %366 : vector<8x256xf32>
    %cst_188 = arith.constant 1.000000e+00 : f32
    %cst_189 = arith.constant -1.000000e+00 : f32
    %368 = vector.broadcast %cst_188 : f32 to vector<8x256xf32>
    %369 = vector.broadcast %cst_189 : f32 to vector<8x256xf32>
    %370 = arith.select %367, %368, %369 : vector<8x256xi1>, vector<8x256xf32>
    %371 = math.absf %365 : vector<8x256xf32>
    %cst_190 = arith.constant 0.327591091 : f32
    %372 = vector.broadcast %cst_190 : f32 to vector<8x256xf32>
    %373 = arith.mulf %372, %371 : vector<8x256xf32>
    %cst_191 = arith.constant 1.000000e+00 : f32
    %374 = vector.broadcast %cst_191 : f32 to vector<8x256xf32>
    %375 = arith.addf %374, %373 : vector<8x256xf32>
    %cst_192 = arith.constant 1.000000e+00 : f32
    %376 = vector.broadcast %cst_192 : f32 to vector<8x256xf32>
    %377 = arith.divf %376, %375 : vector<8x256xf32>
    %cst_193 = arith.constant 1.06140542 : f32
    %378 = vector.broadcast %cst_193 : f32 to vector<8x256xf32>
    %379 = arith.mulf %378, %377 : vector<8x256xf32>
    %cst_194 = arith.constant -1.45315206 : f32
    %380 = vector.broadcast %cst_194 : f32 to vector<8x256xf32>
    %381 = arith.addf %379, %380 : vector<8x256xf32>
    %382 = arith.mulf %381, %377 : vector<8x256xf32>
    %cst_195 = arith.constant 1.42141378 : f32
    %383 = vector.broadcast %cst_195 : f32 to vector<8x256xf32>
    %384 = arith.addf %382, %383 : vector<8x256xf32>
    %385 = arith.mulf %384, %377 : vector<8x256xf32>
    %cst_196 = arith.constant -0.284496725 : f32
    %386 = vector.broadcast %cst_196 : f32 to vector<8x256xf32>
    %387 = arith.addf %385, %386 : vector<8x256xf32>
    %388 = arith.mulf %387, %377 : vector<8x256xf32>
    %cst_197 = arith.constant 0.254829586 : f32
    %389 = vector.broadcast %cst_197 : f32 to vector<8x256xf32>
    %390 = arith.addf %388, %389 : vector<8x256xf32>
    %391 = arith.mulf %390, %377 : vector<8x256xf32>
    %cst_198 = arith.constant 0.000000e+00 : f32
    %392 = vector.broadcast %cst_198 : f32 to vector<8x256xf32>
    %393 = arith.subf %392, %371 : vector<8x256xf32>
    %394 = arith.mulf %393, %371 : vector<8x256xf32>
    %395 = math.exp %394 : vector<8x256xf32>
    %396 = arith.mulf %391, %395 : vector<8x256xf32>
    %cst_199 = arith.constant 1.000000e+00 : f32
    %397 = vector.broadcast %cst_199 : f32 to vector<8x256xf32>
    %398 = arith.subf %397, %396 : vector<8x256xf32>
    %399 = arith.mulf %370, %398 : vector<8x256xf32>
    %cst_200 = arith.constant 1.000000e+00 : f32
    %400 = vector.broadcast %cst_200 : f32 to vector<8x256xf32>
    %401 = arith.addf %400, %399 : vector<8x256xf32>
    %402 = arith.mulf %363, %401 : vector<8x256xf32>
    %403 = vector.shape_cast %402 : vector<8x256xf32> to vector<1x8x256xf32>
    %cst_201 = arith.constant dense<0.000000e+00> : vector<1xf32>
    %404 = vector.multi_reduction <add>, %403, %cst_201 [1, 2] : vector<1x8x256xf32> to vector<1xf32>
    %405 = vector.shape_cast %404 : vector<1xf32> to vector<1x1x1xf32>
    %406 = vector.extract %405[0, 0, 0] : f32 from vector<1x1x1xf32>
    %407 = vector.broadcast %406 : f32 to vector<1x1xf32>
    %408 = arith.mulf %402, %402 : vector<8x256xf32>
    %409 = vector.shape_cast %408 : vector<8x256xf32> to vector<1x8x256xf32>
    %cst_202 = arith.constant dense<0.000000e+00> : vector<1xf32>
    %410 = vector.multi_reduction <add>, %409, %cst_202 [1, 2] : vector<1x8x256xf32> to vector<1xf32>
    %411 = vector.shape_cast %410 : vector<1xf32> to vector<1x1x1xf32>
    %412 = vector.extract %411[0, 0, 0] : f32 from vector<1x1x1xf32>
    %413 = vector.broadcast %412 : f32 to vector<1x1xf32>
    %cst_203 = arith.constant 2.048000e+03 : f32
    %414 = vector.broadcast %cst_203 : f32 to vector<1x1xf32>
    %415 = arith.divf %407, %414 : vector<1x1xf32>
    %cst_204 = arith.constant 2.048000e+03 : f32
    %416 = vector.broadcast %cst_204 : f32 to vector<1x1xf32>
    %417 = arith.divf %413, %416 : vector<1x1xf32>
    %418 = arith.mulf %415, %415 : vector<1x1xf32>
    %419 = arith.subf %417, %418 : vector<1x1xf32>
    %cst_205 = arith.constant 0.000000e+00 : f32
    %420 = vector.broadcast %cst_205 : f32 to vector<1x1xf32>
    %421 = arith.maximumf %419, %420 : vector<1x1xf32>
    %422 = vector.broadcast %415 : vector<1x1xf32> to vector<8x256xf32>
    %423 = arith.subf %402, %422 : vector<8x256xf32>
    %cst_206 = arith.constant 9.99999974E-6 : f32
    %424 = vector.broadcast %cst_206 : f32 to vector<1x1xf32>
    %425 = arith.addf %421, %424 : vector<1x1xf32>
    %426 = math.rsqrt %425 : vector<1x1xf32>
    %427 = vector.broadcast %426 : vector<1x1xf32> to vector<8x256xf32>
    %428 = arith.mulf %423, %427 : vector<8x256xf32>
    %c0_207 = arith.constant 0 : index
    %c0_208 = arith.constant 0 : index
    %429 = vector.load %arg17[%c0_207, %c0_208] : memref<8x1xf32, #tpu.memory_space<vmem>>, vector<8x1xf32>
    %430 = vector.broadcast %429 : vector<8x1xf32> to vector<8x256xf32>
    %431 = arith.mulf %428, %430 : vector<8x256xf32>
    %c0_209 = arith.constant 0 : index
    %c0_210 = arith.constant 0 : index
    %432 = vector.load %arg18[%c0_209, %c0_210] : memref<8x1xf32, #tpu.memory_space<vmem>>, vector<8x1xf32>
    %433 = vector.broadcast %432 : vector<8x1xf32> to vector<8x256xf32>
    %434 = arith.addf %431, %433 : vector<8x256xf32>
    %c17_i32_211 = arith.constant 17 : i32
    %435 = tpu.dynamic_rotate %434 by %c17_i32_211 dim 1 : vector<8x256xf32>, i32 -> vector<8x256xf32>
    %c0_212 = arith.constant 0 : index
    %c0_213 = arith.constant 0 : index
    %c0_214 = arith.constant 0 : index
    %436 = vector.load %arg4[%c0_212, %c0_213, %c0_214] : memref<9x1x256xf32, #tpu.memory_space<vmem>>, vector<1x1x256xf32>
    %437 = vector.shape_cast %436 : vector<1x1x256xf32> to vector<1x256xf32>
    %438 = vector.broadcast %437 : vector<1x256xf32> to vector<8x256xf32>
    %439 = arith.mulf %435, %438 : vector<8x256xf32>
    %c16_i32_215 = arith.constant 16 : i32
    %440 = tpu.dynamic_rotate %434 by %c16_i32_215 dim 1 : vector<8x256xf32>, i32 -> vector<8x256xf32>
    %c1_216 = arith.constant 1 : index
    %c0_217 = arith.constant 0 : index
    %c0_218 = arith.constant 0 : index
    %441 = vector.load %arg4[%c1_216, %c0_217, %c0_218] : memref<9x1x256xf32, #tpu.memory_space<vmem>>, vector<1x1x256xf32>
    %442 = vector.shape_cast %441 : vector<1x1x256xf32> to vector<1x256xf32>
    %443 = vector.broadcast %442 : vector<1x256xf32> to vector<8x256xf32>
    %444 = arith.mulf %440, %443 : vector<8x256xf32>
    %c15_i32_219 = arith.constant 15 : i32
    %445 = tpu.dynamic_rotate %434 by %c15_i32_219 dim 1 : vector<8x256xf32>, i32 -> vector<8x256xf32>
    %c2_220 = arith.constant 2 : index
    %c0_221 = arith.constant 0 : index
    %c0_222 = arith.constant 0 : index
    %446 = vector.load %arg4[%c2_220, %c0_221, %c0_222] : memref<9x1x256xf32, #tpu.memory_space<vmem>>, vector<1x1x256xf32>
    %447 = vector.shape_cast %446 : vector<1x1x256xf32> to vector<1x256xf32>
    %448 = vector.broadcast %447 : vector<1x256xf32> to vector<8x256xf32>
    %449 = arith.mulf %445, %448 : vector<8x256xf32>
    %c1_i32_223 = arith.constant 1 : i32
    %450 = tpu.dynamic_rotate %434 by %c1_i32_223 dim 1 : vector<8x256xf32>, i32 -> vector<8x256xf32>
    %c3_224 = arith.constant 3 : index
    %c0_225 = arith.constant 0 : index
    %c0_226 = arith.constant 0 : index
    %451 = vector.load %arg4[%c3_224, %c0_225, %c0_226] : memref<9x1x256xf32, #tpu.memory_space<vmem>>, vector<1x1x256xf32>
    %452 = vector.shape_cast %451 : vector<1x1x256xf32> to vector<1x256xf32>
    %453 = vector.broadcast %452 : vector<1x256xf32> to vector<8x256xf32>
    %454 = arith.mulf %450, %453 : vector<8x256xf32>
    %c255_i32_227 = arith.constant 255 : i32
    %455 = tpu.dynamic_rotate %434 by %c255_i32_227 dim 1 : vector<8x256xf32>, i32 -> vector<8x256xf32>
    %c5_228 = arith.constant 5 : index
    %c0_229 = arith.constant 0 : index
    %c0_230 = arith.constant 0 : index
    %456 = vector.load %arg4[%c5_228, %c0_229, %c0_230] : memref<9x1x256xf32, #tpu.memory_space<vmem>>, vector<1x1x256xf32>
    %457 = vector.shape_cast %456 : vector<1x1x256xf32> to vector<1x256xf32>
    %458 = vector.broadcast %457 : vector<1x256xf32> to vector<8x256xf32>
    %459 = arith.mulf %455, %458 : vector<8x256xf32>
    %c241_i32_231 = arith.constant 241 : i32
    %460 = tpu.dynamic_rotate %434 by %c241_i32_231 dim 1 : vector<8x256xf32>, i32 -> vector<8x256xf32>
    %c6_232 = arith.constant 6 : index
    %c0_233 = arith.constant 0 : index
    %c0_234 = arith.constant 0 : index
    %461 = vector.load %arg4[%c6_232, %c0_233, %c0_234] : memref<9x1x256xf32, #tpu.memory_space<vmem>>, vector<1x1x256xf32>
    %462 = vector.shape_cast %461 : vector<1x1x256xf32> to vector<1x256xf32>
    %463 = vector.broadcast %462 : vector<1x256xf32> to vector<8x256xf32>
    %464 = arith.mulf %460, %463 : vector<8x256xf32>
    %c240_i32_235 = arith.constant 240 : i32
    %465 = tpu.dynamic_rotate %434 by %c240_i32_235 dim 1 : vector<8x256xf32>, i32 -> vector<8x256xf32>
    %c7_236 = arith.constant 7 : index
    %c0_237 = arith.constant 0 : index
    %c0_238 = arith.constant 0 : index
    %466 = vector.load %arg4[%c7_236, %c0_237, %c0_238] : memref<9x1x256xf32, #tpu.memory_space<vmem>>, vector<1x1x256xf32>
    %467 = vector.shape_cast %466 : vector<1x1x256xf32> to vector<1x256xf32>
    %468 = vector.broadcast %467 : vector<1x256xf32> to vector<8x256xf32>
    %469 = arith.mulf %465, %468 : vector<8x256xf32>
    %c239_i32_239 = arith.constant 239 : i32
    %470 = tpu.dynamic_rotate %434 by %c239_i32_239 dim 1 : vector<8x256xf32>, i32 -> vector<8x256xf32>
    %c8_240 = arith.constant 8 : index
    %c0_241 = arith.constant 0 : index
    %c0_242 = arith.constant 0 : index
    %471 = vector.load %arg4[%c8_240, %c0_241, %c0_242] : memref<9x1x256xf32, #tpu.memory_space<vmem>>, vector<1x1x256xf32>
    %472 = vector.shape_cast %471 : vector<1x1x256xf32> to vector<1x256xf32>
    %473 = vector.broadcast %472 : vector<1x256xf32> to vector<8x256xf32>
    %474 = arith.mulf %470, %473 : vector<8x256xf32>
    %475 = tpu.concatenate %439, %444, %449, %454, %434, %459, %464, %469, %474 in 0 : vector<8x256xf32>, vector<8x256xf32>, vector<8x256xf32>, vector<8x256xf32>, vector<8x256xf32>, vector<8x256xf32>, vector<8x256xf32>, vector<8x256xf32>, vector<8x256xf32> -> vector<72x256xf32>
    %c0_243 = arith.constant 0 : index
    %c0_244 = arith.constant 0 : index
    %476 = vector.load %arg19[%c0_243, %c0_244] : memref<8x72xf32, #tpu.memory_space<vmem>>, vector<8x72xf32>
    %cst_245 = arith.constant dense<0.000000e+00> : vector<8x256xf32>
    %477 = tpu.matmul %476, %475, %cst_245 {dimension_numbers = #tpu.dot_dimension_numbers<[1], [0], [0], [1], [0, 0, 1, 1], [], []>} : vector<8x72xf32>, vector<72x256xf32>, vector<8x256xf32> -> vector<8x256xf32>
    %c0_246 = arith.constant 0 : index
    %c0_247 = arith.constant 0 : index
    %478 = vector.load %arg20[%c0_246, %c0_247] : memref<8x1xf32, #tpu.memory_space<vmem>>, vector<8x1xf32>
    %479 = vector.broadcast %478 : vector<8x1xf32> to vector<8x256xf32>
    %480 = arith.addf %477, %479 : vector<8x256xf32>
    %cst_248 = arith.constant 5.000000e-01 : f32
    %481 = vector.broadcast %cst_248 : f32 to vector<8x256xf32>
    %482 = arith.mulf %481, %480 : vector<8x256xf32>
    %cst_249 = arith.constant 0.707106769 : f32
    %483 = vector.broadcast %cst_249 : f32 to vector<8x256xf32>
    %484 = arith.mulf %480, %483 : vector<8x256xf32>
    %cst_250 = arith.constant 0.000000e+00 : f32
    %485 = vector.broadcast %cst_250 : f32 to vector<8x256xf32>
    %486 = arith.cmpf oge, %484, %485 : vector<8x256xf32>
    %cst_251 = arith.constant 1.000000e+00 : f32
    %cst_252 = arith.constant -1.000000e+00 : f32
    %487 = vector.broadcast %cst_251 : f32 to vector<8x256xf32>
    %488 = vector.broadcast %cst_252 : f32 to vector<8x256xf32>
    %489 = arith.select %486, %487, %488 : vector<8x256xi1>, vector<8x256xf32>
    %490 = math.absf %484 : vector<8x256xf32>
    %cst_253 = arith.constant 0.327591091 : f32
    %491 = vector.broadcast %cst_253 : f32 to vector<8x256xf32>
    %492 = arith.mulf %491, %490 : vector<8x256xf32>
    %cst_254 = arith.constant 1.000000e+00 : f32
    %493 = vector.broadcast %cst_254 : f32 to vector<8x256xf32>
    %494 = arith.addf %493, %492 : vector<8x256xf32>
    %cst_255 = arith.constant 1.000000e+00 : f32
    %495 = vector.broadcast %cst_255 : f32 to vector<8x256xf32>
    %496 = arith.divf %495, %494 : vector<8x256xf32>
    %cst_256 = arith.constant 1.06140542 : f32
    %497 = vector.broadcast %cst_256 : f32 to vector<8x256xf32>
    %498 = arith.mulf %497, %496 : vector<8x256xf32>
    %cst_257 = arith.constant -1.45315206 : f32
    %499 = vector.broadcast %cst_257 : f32 to vector<8x256xf32>
    %500 = arith.addf %498, %499 : vector<8x256xf32>
    %501 = arith.mulf %500, %496 : vector<8x256xf32>
    %cst_258 = arith.constant 1.42141378 : f32
    %502 = vector.broadcast %cst_258 : f32 to vector<8x256xf32>
    %503 = arith.addf %501, %502 : vector<8x256xf32>
    %504 = arith.mulf %503, %496 : vector<8x256xf32>
    %cst_259 = arith.constant -0.284496725 : f32
    %505 = vector.broadcast %cst_259 : f32 to vector<8x256xf32>
    %506 = arith.addf %504, %505 : vector<8x256xf32>
    %507 = arith.mulf %506, %496 : vector<8x256xf32>
    %cst_260 = arith.constant 0.254829586 : f32
    %508 = vector.broadcast %cst_260 : f32 to vector<8x256xf32>
    %509 = arith.addf %507, %508 : vector<8x256xf32>
    %510 = arith.mulf %509, %496 : vector<8x256xf32>
    %cst_261 = arith.constant 0.000000e+00 : f32
    %511 = vector.broadcast %cst_261 : f32 to vector<8x256xf32>
    %512 = arith.subf %511, %490 : vector<8x256xf32>
    %513 = arith.mulf %512, %490 : vector<8x256xf32>
    %514 = math.exp %513 : vector<8x256xf32>
    %515 = arith.mulf %510, %514 : vector<8x256xf32>
    %cst_262 = arith.constant 1.000000e+00 : f32
    %516 = vector.broadcast %cst_262 : f32 to vector<8x256xf32>
    %517 = arith.subf %516, %515 : vector<8x256xf32>
    %518 = arith.mulf %489, %517 : vector<8x256xf32>
    %cst_263 = arith.constant 1.000000e+00 : f32
    %519 = vector.broadcast %cst_263 : f32 to vector<8x256xf32>
    %520 = arith.addf %519, %518 : vector<8x256xf32>
    %521 = arith.mulf %482, %520 : vector<8x256xf32>
    %522 = vector.broadcast %38 : vector<8x1xf32> to vector<8x256xf32>
    %523 = arith.addf %521, %522 : vector<8x256xf32>
    %c0_264 = arith.constant 0 : index
    %c0_265 = arith.constant 0 : index
    %c0_266 = arith.constant 0 : index
    %524 = vector.load %arg26[%c0_264, %c0_265, %c0_266] : memref<1x8x256xf32, #tpu.memory_space<vmem>>, vector<1x8x256xf32>
    %525 = vector.shape_cast %524 : vector<1x8x256xf32> to vector<8x256xf32>
    %526 = vector.shape_cast %523 : vector<8x256xf32> to vector<1x8x256xf32>
    tpu.vector_store %arg26[%c0_264, %c0_265, %c0_266], %526 {strides = array<i32>} : memref<1x8x256xf32, #tpu.memory_space<vmem>>, vector<1x8x256xf32>,
    return
  }
  func.func @transform_0(%arg0: i32) -> (i32, i32, i32) {
    %c0_i32 = arith.constant 0 : i32
    %c0_i32_0 = arith.constant 0 : i32
    %c0_i32_1 = arith.constant 0 : i32
    return %arg0, %c0_i32, %c0_i32_0 : i32, i32, i32
  }
  func.func @transform_1(%arg0: i32) -> (i32, i32, i32) {
    %c0_i32 = arith.constant 0 : i32
    %c0_i32_0 = arith.constant 0 : i32
    %c0_i32_1 = arith.constant 0 : i32
    return %arg0, %c0_i32, %c0_i32_0 : i32, i32, i32
  }
  func.func @transform_2(%arg0: i32) -> (i32, i32) {
    %c0_i32 = arith.constant 0 : i32
    %c0_i32_0 = arith.constant 0 : i32
    %c0_i32_1 = arith.constant 0 : i32
    return %c0_i32, %c0_i32_0 : i32, i32
  }
  func.func @transform_3(%arg0: i32) -> (i32, i32, i32) {
    %c0_i32 = arith.constant 0 : i32
    %c0_i32_0 = arith.constant 0 : i32
    %c0_i32_1 = arith.constant 0 : i32
    %c0_i32_2 = arith.constant 0 : i32
    return %c0_i32, %c0_i32_0, %c0_i32_1 : i32, i32, i32
  }
  func.func @transform_4(%arg0: i32) -> (i32, i32) {
    %c0_i32 = arith.constant 0 : i32
    %c0_i32_0 = arith.constant 0 : i32
    %c0_i32_1 = arith.constant 0 : i32
    return %c0_i32, %c0_i32_0 : i32, i32
  }
  func.func @transform_5(%arg0: i32) -> (i32, i32) {
    %c0_i32 = arith.constant 0 : i32
    %c0_i32_0 = arith.constant 0 : i32
    %c0_i32_1 = arith.constant 0 : i32
    return %c0_i32, %c0_i32_0 : i32, i32
  }
  func.func @transform_6(%arg0: i32) -> (i32, i32) {
    %c0_i32 = arith.constant 0 : i32
    %c0_i32_0 = arith.constant 0 : i32
    %c0_i32_1 = arith.constant 0 : i32
    return %c0_i32, %c0_i32_0 : i32, i32
  }
  func.func @transform_7(%arg0: i32) -> (i32, i32) {
    %c0_i32 = arith.constant 0 : i32
    %c0_i32_0 = arith.constant 0 : i32
    %c0_i32_1 = arith.constant 0 : i32
    return %c0_i32, %c0_i32_0 : i32, i32
  }
  func.func @transform_8(%arg0: i32) -> (i32, i32) {
    %c0_i32 = arith.constant 0 : i32
    %c0_i32_0 = arith.constant 0 : i32
    %c0_i32_1 = arith.constant 0 : i32
    return %c0_i32, %c0_i32_0 : i32, i32
  }
  func.func @transform_9(%arg0: i32) -> (i32, i32) {
    %c0_i32 = arith.constant 0 : i32
    %c0_i32_0 = arith.constant 0 : i32
    %c0_i32_1 = arith.constant 0 : i32
    return %c0_i32, %c0_i32_0 : i32, i32
  }
  func.func @transform_10(%arg0: i32) -> (i32, i32) {
    %c0_i32 = arith.constant 0 : i32
    %c0_i32_0 = arith.constant 0 : i32
    %c0_i32_1 = arith.constant 0 : i32
    return %c0_i32, %c0_i32_0 : i32, i32
  }
  func.func @transform_11(%arg0: i32) -> (i32, i32) {
    %c0_i32 = arith.constant 0 : i32
    %c0_i32_0 = arith.constant 0 : i32
    %c0_i32_1 = arith.constant 0 : i32
    return %c0_i32, %c0_i32_0 : i32, i32
  }
  func.func @transform_12(%arg0: i32) -> (i32, i32) {
    %c0_i32 = arith.constant 0 : i32
    %c0_i32_0 = arith.constant 0 : i32
    %c0_i32_1 = arith.constant 0 : i32
    return %c0_i32, %c0_i32_0 : i32, i32
  }
  func.func @transform_13(%arg0: i32) -> (i32, i32) {
    %c0_i32 = arith.constant 0 : i32
    %c0_i32_0 = arith.constant 0 : i32
    %c0_i32_1 = arith.constant 0 : i32
    return %c0_i32, %c0_i32_0 : i32, i32
  }
  func.func @transform_14(%arg0: i32) -> (i32, i32) {
    %c0_i32 = arith.constant 0 : i32
    %c0_i32_0 = arith.constant 0 : i32
    %c0_i32_1 = arith.constant 0 : i32
    return %c0_i32, %c0_i32_0 : i32, i32
  }
  func.func @transform_15(%arg0: i32) -> (i32, i32) {
    %c0_i32 = arith.constant 0 : i32
    %c0_i32_0 = arith.constant 0 : i32
    %c0_i32_1 = arith.constant 0 : i32
    return %c0_i32, %c0_i32_0 : i32, i32
  }
  func.func @transform_16(%arg0: i32) -> (i32, i32) {
    %c0_i32 = arith.constant 0 : i32
    %c0_i32_0 = arith.constant 0 : i32
    %c0_i32_1 = arith.constant 0 : i32
    return %c0_i32, %c0_i32_0 : i32, i32
  }
  func.func @transform_17(%arg0: i32) -> (i32, i32) {
    %c0_i32 = arith.constant 0 : i32
    %c0_i32_0 = arith.constant 0 : i32
    %c0_i32_1 = arith.constant 0 : i32
    return %c0_i32, %c0_i32_0 : i32, i32
  }
  func.func @transform_18(%arg0: i32) -> (i32, i32) {
    %c0_i32 = arith.constant 0 : i32
    %c0_i32_0 = arith.constant 0 : i32
    %c0_i32_1 = arith.constant 0 : i32
    return %c0_i32, %c0_i32_0 : i32, i32
  }
  func.func @transform_19(%arg0: i32) -> (i32, i32) {
    %c0_i32 = arith.constant 0 : i32
    %c0_i32_0 = arith.constant 0 : i32
    %c0_i32_1 = arith.constant 0 : i32
    return %c0_i32, %c0_i32_0 : i32, i32
  }
  func.func @transform_20(%arg0: i32) -> (i32, i32, i32) {
    %c0_i32 = arith.constant 0 : i32
    %c0_i32_0 = arith.constant 0 : i32
    %c0_i32_1 = arith.constant 0 : i32
    return %arg0, %c0_i32, %c0_i32_0 : i32, i32, i32
  }
  func.func @transform_21(%arg0: i32) -> (i32, i32) {
    %c0_i32 = arith.constant 0 : i32
    %c0_i32_0 = arith.constant 0 : i32
    %c0_i32_1 = arith.constant 0 : i32
    return %c0_i32, %c0_i32_0 : i32, i32
  }
  func.func @transform_22(%arg0: i32) -> (i32, i32) {
    %c0_i32 = arith.constant 0 : i32
    %c0_i32_0 = arith.constant 0 : i32
    %c0_i32_1 = arith.constant 0 : i32
    return %c0_i32, %c0_i32_0 : i32, i32
  }
  func.func @transform_23(%arg0: i32) -> (i32, i32) {
    %c0_i32 = arith.constant 0 : i32
    %c0_i32_0 = arith.constant 0 : i32
    %c0_i32_1 = arith.constant 0 : i32
    return %c0_i32, %c0_i32_0 : i32, i32
  }
  func.func @transform_24(%arg0: i32) -> (i32, i32) {
    %c0_i32 = arith.constant 0 : i32
    %c0_i32_0 = arith.constant 0 : i32
    %c0_i32_1 = arith.constant 0 : i32
    return %c0_i32, %c0_i32_0 : i32, i32
  }
  func.func @transform_25(%arg0: i32) -> (i32, i32, i32) {
    %c0_i32 = arith.constant 0 : i32
    %c0_i32_0 = arith.constant 0 : i32
    %c0_i32_1 = arith.constant 0 : i32
    return %arg0, %c0_i32, %c0_i32_0 : i32, i32, i32
  }
}

</mosaic_0001>

<llo_original>
// kernel: upconv_forward.1
$region0: #{upconv_forward.1}
  #allocation0 [shape = 'u32[]', space=smem, size = 0x4, offset = 0x4, fixed_abs, tag = 'smem constant byte address 0x4 - core index']
  #allocation1 [shape = 'u32[144,128]{1,0:T(1,128)}', space=vmem, size = 0x12000, scoped, tag = 'internal scratch']
  %s0 = inlined_call_operand.vmem [shape: f32[2,8,64], index: 0, kind: input, shape index: {}]
  %s1 = inlined_call_operand.vmem [shape: f32[2,8,256], index: 1, kind: input, shape index: {}]
  %s2 = inlined_call_operand.vmem [shape: f32[64,256], index: 2, kind: input, shape index: {}]
  %s3 = inlined_call_operand.vmem [shape: f32[9,1,256], index: 3, kind: input, shape index: {}]
  %s4 = inlined_call_operand.vmem [shape: f32[16,1], index: 4, kind: input, shape index: {}]
  %s5 = inlined_call_operand.vmem [shape: f32[16,1], index: 5, kind: input, shape index: {}]
  %s6 = inlined_call_operand.vmem [shape: f32[8,144], index: 6, kind: input, shape index: {}]
  %s7 = inlined_call_operand.vmem [shape: f32[8,1], index: 7, kind: input, shape index: {}]
  %s8 = inlined_call_operand.vmem [shape: f32[8,1], index: 8, kind: input, shape index: {}]
  %s9 = inlined_call_operand.vmem [shape: f32[8,1], index: 9, kind: input, shape index: {}]
  %s10 = inlined_call_operand.vmem [shape: f32[8,72], index: 10, kind: input, shape index: {}]
  %s11 = inlined_call_operand.vmem [shape: f32[8,1], index: 11, kind: input, shape index: {}]
  %s12 = inlined_call_operand.vmem [shape: f32[8,1], index: 12, kind: input, shape index: {}]
  %s13 = inlined_call_operand.vmem [shape: f32[8,1], index: 13, kind: input, shape index: {}]
  %s14 = inlined_call_operand.vmem [shape: f32[8,72], index: 14, kind: input, shape index: {}]
  %s15 = inlined_call_operand.vmem [shape: f32[8,1], index: 15, kind: input, shape index: {}]
  %s16 = inlined_call_operand.vmem [shape: f32[8,1], index: 16, kind: input, shape index: {}]
  %s17 = inlined_call_operand.vmem [shape: f32[8,1], index: 17, kind: input, shape index: {}]
  %s18 = inlined_call_operand.vmem [shape: f32[8,72], index: 18, kind: input, shape index: {}]
  %s19 = inlined_call_operand.vmem [shape: f32[8,1], index: 19, kind: input, shape index: {}]
  %s20 = inlined_call_operand.vmem [shape: f32[2,1,32], index: 20, kind: input, shape index: {}]
  %s21 = inlined_call_operand.vmem [shape: f32[1,32], index: 21, kind: input, shape index: {}]
  %s22 = inlined_call_operand.vmem [shape: f32[1,32], index: 22, kind: input, shape index: {}]
  %s23 = inlined_call_operand.vmem [shape: f32[8,32], index: 23, kind: input, shape index: {}]
  %s24 = inlined_call_operand.vmem [shape: f32[8,1], index: 24, kind: input, shape index: {}]
  %s25 = inlined_call_operand.vmem [shape: f32[2,8,256], index: 25, kind: output, shape index: {}]
  %s26 = sld [smem:[#allocation0]]
  $region133: #{upconv_forward.1} parent=0
    _
  %s28 = ssub.s32 1, %s26
  %s29 = scalar_select 0, %s28, %s26
  loop: start=0, step=1, limit=4
  $region2: #{upconv_forward.1} parent=0 // loop_pre_header
    _
  $region3: #{upconv_forward.1} parent=0 // loop_header
    %s31 = sphi 0, %s35
    %p32 = scmp.ge.s32.totalorder %s31, 4
    %s41 = sphi 0, %s43
    %s44 = sphi 0, %s41
    %s45 = sphi 0, %s44
    %s61 = sphi 0, %s45
    %s67 = sphi 0, %s69
    %s70 = sphi 0, %s67
    %s71 = sphi 0, %s70
    %s87 = sphi 0, %s71
    %s91 = sphi 0, %s91
    %s93 = sphi 0, %s91
    %s94 = sphi 0, %s93
    %s108 = sphi 0, %s94
    %s112 = sphi 0, %s112
    %s114 = sphi 0, %s112
    %s115 = sphi 0, %s114
    %s129 = sphi 0, %s115
    %s133 = sphi 0, %s133
    %s135 = sphi 0, %s133
    %s136 = sphi 0, %s135
    %s150 = sphi 0, %s136
    %s154 = sphi 0, %s154
    %s156 = sphi 0, %s154
    %s157 = sphi 0, %s156
    %s171 = sphi 0, %s157
    %s175 = sphi 0, %s175
    %s177 = sphi 0, %s175
    %s178 = sphi 0, %s177
    %s192 = sphi 0, %s178
    %s196 = sphi 0, %s196
    %s198 = sphi 0, %s196
    %s199 = sphi 0, %s198
    %s213 = sphi 0, %s199
    %s217 = sphi 0, %s217
    %s219 = sphi 0, %s217
    %s220 = sphi 0, %s219
    %s234 = sphi 0, %s220
    %s238 = sphi 0, %s238
    %s240 = sphi 0, %s238
    %s241 = sphi 0, %s240
    %s255 = sphi 0, %s241
    %s259 = sphi 0, %s259
    %s261 = sphi 0, %s259
    %s262 = sphi 0, %s261
    %s276 = sphi 0, %s262
    %s280 = sphi 0, %s280
    %s282 = sphi 0, %s280
    %s283 = sphi 0, %s282
    %s297 = sphi 0, %s283
    %s301 = sphi 0, %s301
    %s303 = sphi 0, %s301
    %s304 = sphi 0, %s303
    %s318 = sphi 0, %s304
    %s322 = sphi 0, %s322
    %s324 = sphi 0, %s322
    %s325 = sphi 0, %s324
    %s339 = sphi 0, %s325
    %s343 = sphi 0, %s343
    %s345 = sphi 0, %s343
    %s346 = sphi 0, %s345
    %s360 = sphi 0, %s346
    %s364 = sphi 0, %s364
    %s366 = sphi 0, %s364
    %s367 = sphi 0, %s366
    %s381 = sphi 0, %s367
    %s385 = sphi 0, %s385
    %s387 = sphi 0, %s385
    %s388 = sphi 0, %s387
    %s402 = sphi 0, %s388
    %s406 = sphi 0, %s406
    %s408 = sphi 0, %s406
    %s409 = sphi 0, %s408
    %s423 = sphi 0, %s409
    %s427 = sphi 0, %s427
    %s429 = sphi 0, %s427
    %s430 = sphi 0, %s429
    %s444 = sphi 0, %s430
    %s448 = sphi 0, %s448
    %s450 = sphi 0, %s448
    %s451 = sphi 0, %s450
    %s465 = sphi 0, %s451
    %s471 = sphi 0, %s473
    %s474 = sphi 0, %s471
    %s475 = sphi 0, %s474
    %s491 = sphi 0, %s475
    %s495 = sphi 0, %s495
    %s497 = sphi 0, %s495
    %s498 = sphi 0, %s497
    %s512 = sphi 0, %s498
    %s516 = sphi 0, %s516
    %s518 = sphi 0, %s516
    %s519 = sphi 0, %s518
    %s533 = sphi 0, %s519
    %s537 = sphi 0, %s537
    %s539 = sphi 0, %s537
    %s540 = sphi 0, %s539
    %s554 = sphi 0, %s540
    %s558 = sphi 0, %s558
    %s560 = sphi 0, %s558
    %s561 = sphi 0, %s560
    %s575 = sphi 0, %s561
    %s581 = sphi 0, %s583
    %s584 = sphi 0, %s581
    %s585 = sphi 0, %s584
    %s601 = sphi 0, %s585
  $region4: #{upconv_forward.1} parent=0 // loop_header_branch
    %34 = sbr.rel (%p32) target = $region8
  $region5: #{upconv_forward.1} parent=0 // loop_body
    %s36 = ssub.s32 %s31, 1
    %s37 = ssub.s32 %s31, 2
    %s38 = sadd.s32 %s31, 1
    %s39 = ssub.s32 %s31, %s38
    %p40 = scmp.eq.s32.totalorder %s39, 0
    %s42 = sadd.s32 %s41, 1
    %s43 = scalar_select %p40, %s41, %s42
    %p46 = pneg %p40
    %p47 = scmp.eq.s32.totalorder %s31, 1
    %p48 = por %p46, %p47
    %p49 = scmp.ne.s32.totalorder %s41, %s44
    %p50 = scmp.eq.s32.totalorder %s31, 0
    %p51 = por %p49, %p50
    %p52 = scmp.ne.s32.totalorder %s41, %s44
    %p53 = scmp.eq.s32.totalorder %s36, 1
    %p54 = por %p52, %p53
    %p55 = scmp.ne.s32.totalorder %s44, %s45
    %p56 = scmp.eq.s32.totalorder %s36, 0
    %p57 = por %p55, %p56
    %p58 = scmp.ne.s32.totalorder %s44, %s45
    %p59 = scmp.eq.s32.totalorder %s37, 1
    %p60 = por %p58, %p59
    %p62 = scmp.ne.s32.totalorder %s45, %s61
    %p63 = scmp.eq.s32.totalorder %s37, 0
    %p64 = por %p62, %p63
    %s65 = ssub.s32 %s31, %s38
    %p66 = scmp.eq.s32.totalorder %s65, 0
    %s68 = sadd.s32 %s67, 1
    %s69 = scalar_select %p66, %s67, %s68
    %p72 = pneg %p66
    %p73 = scmp.eq.s32.totalorder %s31, 1
    %p74 = por %p72, %p73
    %p75 = scmp.ne.s32.totalorder %s67, %s70
    %p76 = scmp.eq.s32.totalorder %s31, 0
    %p77 = por %p75, %p76
    %p78 = scmp.ne.s32.totalorder %s67, %s70
    %p79 = scmp.eq.s32.totalorder %s36, 1
    %p80 = por %p78, %p79
    %p81 = scmp.ne.s32.totalorder %s70, %s71
    %p82 = scmp.eq.s32.totalorder %s36, 0
    %p83 = por %p81, %p82
    %p84 = scmp.ne.s32.totalorder %s70, %s71
    %p85 = scmp.eq.s32.totalorder %s37, 1
    %p86 = por %p84, %p85
    %p88 = scmp.ne.s32.totalorder %s71, %s87
    %p89 = scmp.eq.s32.totalorder %s37, 0
    %p90 = por %p88, %p89
    %s92 = sadd.s32 %s91, 1
    %p95 = scmp.eq.s32.totalorder %s31, 1
    %p96 = scmp.ne.s32.totalorder %s91, %s93
    %p97 = scmp.eq.s32.totalorder %s31, 0
    %p98 = por %p96, %p97
    %p99 = scmp.ne.s32.totalorder %s91, %s93
    %p100 = scmp.eq.s32.totalorder %s36, 1
    %p101 = por %p99, %p100
    %p102 = scmp.ne.s32.totalorder %s93, %s94
    %p103 = scmp.eq.s32.totalorder %s36, 0
    %p104 = por %p102, %p103
    %p105 = scmp.ne.s32.totalorder %s93, %s94
    %p106 = scmp.eq.s32.totalorder %s37, 1
    %p107 = por %p105, %p106
    %p109 = scmp.ne.s32.totalorder %s94, %s108
    %p110 = scmp.eq.s32.totalorder %s37, 0
    %p111 = por %p109, %p110
    %s113 = sadd.s32 %s112, 1
    %p116 = scmp.eq.s32.totalorder %s31, 1
    %p117 = scmp.ne.s32.totalorder %s112, %s114
    %p118 = scmp.eq.s32.totalorder %s31, 0
    %p119 = por %p117, %p118
    %p120 = scmp.ne.s32.totalorder %s112, %s114
    %p121 = scmp.eq.s32.totalorder %s36, 1
    %p122 = por %p120, %p121
    %p123 = scmp.ne.s32.totalorder %s114, %s115
    %p124 = scmp.eq.s32.totalorder %s36, 0
    %p125 = por %p123, %p124
    %p126 = scmp.ne.s32.totalorder %s114, %s115
    %p127 = scmp.eq.s32.totalorder %s37, 1
    %p128 = por %p126, %p127
    %p130 = scmp.ne.s32.totalorder %s115, %s129
    %p131 = scmp.eq.s32.totalorder %s37, 0
    %p132 = por %p130, %p131
    %s134 = sadd.s32 %s133, 1
    %p137 = scmp.eq.s32.totalorder %s31, 1
    %p138 = scmp.ne.s32.totalorder %s133, %s135
    %p139 = scmp.eq.s32.totalorder %s31, 0
    %p140 = por %p138, %p139
    %p141 = scmp.ne.s32.totalorder %s133, %s135
    %p142 = scmp.eq.s32.totalorder %s36, 1
    %p143 = por %p141, %p142
    %p144 = scmp.ne.s32.totalorder %s135, %s136
    %p145 = scmp.eq.s32.totalorder %s36, 0
    %p146 = por %p144, %p145
    %p147 = scmp.ne.s32.totalorder %s135, %s136
    %p148 = scmp.eq.s32.totalorder %s37, 1
    %p149 = por %p147, %p148
    %p151 = scmp.ne.s32.totalorder %s136, %s150
    %p152 = scmp.eq.s32.totalorder %s37, 0
    %p153 = por %p151, %p152
    %s155 = sadd.s32 %s154, 1
    %p158 = scmp.eq.s32.totalorder %s31, 1
    %p159 = scmp.ne.s32.totalorder %s154, %s156
    %p160 = scmp.eq.s32.totalorder %s31, 0
    %p161 = por %p159, %p160
    %p162 = scmp.ne.s32.totalorder %s154, %s156
    %p163 = scmp.eq.s32.totalorder %s36, 1
    %p164 = por %p162, %p163
    %p165 = scmp.ne.s32.totalorder %s156, %s157
    %p166 = scmp.eq.s32.totalorder %s36, 0
    %p167 = por %p165, %p166
    %p168 = scmp.ne.s32.totalorder %s156, %s157
    %p169 = scmp.eq.s32.totalorder %s37, 1
    %p170 = por %p168, %p169
    %p172 = scmp.ne.s32.totalorder %s157, %s171
    %p173 = scmp.eq.s32.totalorder %s37, 0
    %p174 = por %p172, %p173
    %s176 = sadd.s32 %s175, 1
    %p179 = scmp.eq.s32.totalorder %s31, 1
    %p180 = scmp.ne.s32.totalorder %s175, %s177
    %p181 = scmp.eq.s32.totalorder %s31, 0
    %p182 = por %p180, %p181
    %p183 = scmp.ne.s32.totalorder %s175, %s177
    %p184 = scmp.eq.s32.totalorder %s36, 1
    %p185 = por %p183, %p184
    %p186 = scmp.ne.s32.totalorder %s177, %s178
    %p187 = scmp.eq.s32.totalorder %s36, 0
    %p188 = por %p186, %p187
    %p189 = scmp.ne.s32.totalorder %s177, %s178
    %p190 = scmp.eq.s32.totalorder %s37, 1
    %p191 = por %p189, %p190
    %p193 = scmp.ne.s32.totalorder %s178, %s192
    %p194 = scmp.eq.s32.totalorder %s37, 0
    %p195 = por %p193, %p194
    %s197 = sadd.s32 %s196, 1
    %p200 = scmp.eq.s32.totalorder %s31, 1
    %p201 = scmp.ne.s32.totalorder %s196, %s198
    %p202 = scmp.eq.s32.totalorder %s31, 0
    %p203 = por %p201, %p202
    %p204 = scmp.ne.s32.totalorder %s196, %s198
    %p205 = scmp.eq.s32.totalorder %s36, 1
    %p206 = por %p204, %p205
    %p207 = scmp.ne.s32.totalorder %s198, %s199
    %p208 = scmp.eq.s32.totalorder %s36, 0
    %p209 = por %p207, %p208
    %p210 = scmp.ne.s32.totalorder %s198, %s199
    %p211 = scmp.eq.s32.totalorder %s37, 1
    %p212 = por %p210, %p211
    %p214 = scmp.ne.s32.totalorder %s199, %s213
    %p215 = scmp.eq.s32.totalorder %s37, 0
    %p216 = por %p214, %p215
    %s218 = sadd.s32 %s217, 1
    %p221 = scmp.eq.s32.totalorder %s31, 1
    %p222 = scmp.ne.s32.totalorder %s217, %s219
    %p223 = scmp.eq.s32.totalorder %s31, 0
    %p224 = por %p222, %p223
    %p225 = scmp.ne.s32.totalorder %s217, %s219
    %p226 = scmp.eq.s32.totalorder %s36, 1
    %p227 = por %p225, %p226
    %p228 = scmp.ne.s32.totalorder %s219, %s220
    %p229 = scmp.eq.s32.totalorder %s36, 0
    %p230 = por %p228, %p229
    %p231 = scmp.ne.s32.totalorder %s219, %s220
    %p232 = scmp.eq.s32.totalorder %s37, 1
    %p233 = por %p231, %p232
    %p235 = scmp.ne.s32.totalorder %s220, %s234
    %p236 = scmp.eq.s32.totalorder %s37, 0
    %p237 = por %p235, %p236
    %s239 = sadd.s32 %s238, 1
    %p242 = scmp.eq.s32.totalorder %s31, 1
    %p243 = scmp.ne.s32.totalorder %s238, %s240
    %p244 = scmp.eq.s32.totalorder %s31, 0
    %p245 = por %p243, %p244
    %p246 = scmp.ne.s32.totalorder %s238, %s240
    %p247 = scmp.eq.s32.totalorder %s36, 1
    %p248 = por %p246, %p247
    %p249 = scmp.ne.s32.totalorder %s240, %s241
    %p250 = scmp.eq.s32.totalorder %s36, 0
    %p251 = por %p249, %p250
    %p252 = scmp.ne.s32.totalorder %s240, %s241
    %p253 = scmp.eq.s32.totalorder %s37, 1
    %p254 = por %p252, %p253
    %p256 = scmp.ne.s32.totalorder %s241, %s255
    %p257 = scmp.eq.s32.totalorder %s37, 0
    %p258 = por %p256, %p257
    %s260 = sadd.s32 %s259, 1
    %p263 = scmp.eq.s32.totalorder %s31, 1
    %p264 = scmp.ne.s32.totalorder %s259, %s261
    %p265 = scmp.eq.s32.totalorder %s31, 0
    %p266 = por %p264, %p265
    %p267 = scmp.ne.s32.totalorder %s259, %s261
    %p268 = scmp.eq.s32.totalorder %s36, 1
    %p269 = por %p267, %p268
    %p270 = scmp.ne.s32.totalorder %s261, %s262
    %p271 = scmp.eq.s32.totalorder %s36, 0
    %p272 = por %p270, %p271
    %p273 = scmp.ne.s32.totalorder %s261, %s262
    %p274 = scmp.eq.s32.totalorder %s37, 1
    %p275 = por %p273, %p274
    %p277 = scmp.ne.s32.totalorder %s262, %s276
    %p278 = scmp.eq.s32.totalorder %s37, 0
    %p279 = por %p277, %p278
    %s281 = sadd.s32 %s280, 1
    %p284 = scmp.eq.s32.totalorder %s31, 1
    %p285 = scmp.ne.s32.totalorder %s280, %s282
    %p286 = scmp.eq.s32.totalorder %s31, 0
    %p287 = por %p285, %p286
    %p288 = scmp.ne.s32.totalorder %s280, %s282
    %p289 = scmp.eq.s32.totalorder %s36, 1
    %p290 = por %p288, %p289
    %p291 = scmp.ne.s32.totalorder %s282, %s283
    %p292 = scmp.eq.s32.totalorder %s36, 0
    %p293 = por %p291, %p292
    %p294 = scmp.ne.s32.totalorder %s282, %s283
    %p295 = scmp.eq.s32.totalorder %s37, 1
    %p296 = por %p294, %p295
    %p298 = scmp.ne.s32.totalorder %s283, %s297
    %p299 = scmp.eq.s32.totalorder %s37, 0
    %p300 = por %p298, %p299
    %s302 = sadd.s32 %s301, 1
    %p305 = scmp.eq.s32.totalorder %s31, 1
    %p306 = scmp.ne.s32.totalorder %s301, %s303
    %p307 = scmp.eq.s32.totalorder %s31, 0
    %p308 = por %p306, %p307
    %p309 = scmp.ne.s32.totalorder %s301, %s303
    %p310 = scmp.eq.s32.totalorder %s36, 1
    %p311 = por %p309, %p310
    %p312 = scmp.ne.s32.totalorder %s303, %s304
    %p313 = scmp.eq.s32.totalorder %s36, 0
    %p314 = por %p312, %p313
    %p315 = scmp.ne.s32.totalorder %s303, %s304
    %p316 = scmp.eq.s32.totalorder %s37, 1
    %p317 = por %p315, %p316
    %p319 = scmp.ne.s32.totalorder %s304, %s318
    %p320 = scmp.eq.s32.totalorder %s37, 0
    %p321 = por %p319, %p320
    %s323 = sadd.s32 %s322, 1
    %p326 = scmp.eq.s32.totalorder %s31, 1
    %p327 = scmp.ne.s32.totalorder %s322, %s324
    %p328 = scmp.eq.s32.totalorder %s31, 0
    %p329 = por %p327, %p328
    %p330 = scmp.ne.s32.totalorder %s322, %s324
    %p331 = scmp.eq.s32.totalorder %s36, 1
    %p332 = por %p330, %p331
    %p333 = scmp.ne.s32.totalorder %s324, %s325
    %p334 = scmp.eq.s32.totalorder %s36, 0
    %p335 = por %p333, %p334
    %p336 = scmp.ne.s32.totalorder %s324, %s325
    %p337 = scmp.eq.s32.totalorder %s37, 1
    %p338 = por %p336, %p337
    %p340 = scmp.ne.s32.totalorder %s325, %s339
    %p341 = scmp.eq.s32.totalorder %s37, 0
    %p342 = por %p340, %p341
    %s344 = sadd.s32 %s343, 1
    %p347 = scmp.eq.s32.totalorder %s31, 1
    %p348 = scmp.ne.s32.totalorder %s343, %s345
    %p349 = scmp.eq.s32.totalorder %s31, 0
    %p350 = por %p348, %p349
    %p351 = scmp.ne.s32.totalorder %s343, %s345
    %p352 = scmp.eq.s32.totalorder %s36, 1
    %p353 = por %p351, %p352
    %p354 = scmp.ne.s32.totalorder %s345, %s346
    %p355 = scmp.eq.s32.totalorder %s36, 0
    %p356 = por %p354, %p355
    %p357 = scmp.ne.s32.totalorder %s345, %s346
    %p358 = scmp.eq.s32.totalorder %s37, 1
    %p359 = por %p357, %p358
    %p361 = scmp.ne.s32.totalorder %s346, %s360
    %p362 = scmp.eq.s32.totalorder %s37, 0
    %p363 = por %p361, %p362
    %s365 = sadd.s32 %s364, 1
    %p368 = scmp.eq.s32.totalorder %s31, 1
    %p369 = scmp.ne.s32.totalorder %s364, %s366
    %p370 = scmp.eq.s32.totalorder %s31, 0
    %p371 = por %p369, %p370
    %p372 = scmp.ne.s32.totalorder %s364, %s366
    %p373 = scmp.eq.s32.totalorder %s36, 1
    %p374 = por %p372, %p373
    %p375 = scmp.ne.s32.totalorder %s366, %s367
    %p376 = scmp.eq.s32.totalorder %s36, 0
    %p377 = por %p375, %p376
    %p378 = scmp.ne.s32.totalorder %s366, %s367
    %p379 = scmp.eq.s32.totalorder %s37, 1
    %p380 = por %p378, %p379
    %p382 = scmp.ne.s32.totalorder %s367, %s381
    %p383 = scmp.eq.s32.totalorder %s37, 0
    %p384 = por %p382, %p383
    %s386 = sadd.s32 %s385, 1
    %p389 = scmp.eq.s32.totalorder %s31, 1
    %p390 = scmp.ne.s32.totalorder %s385, %s387
    %p391 = scmp.eq.s32.totalorder %s31, 0
    %p392 = por %p390, %p391
    %p393 = scmp.ne.s32.totalorder %s385, %s387
    %p394 = scmp.eq.s32.totalorder %s36, 1
    %p395 = por %p393, %p394
    %p396 = scmp.ne.s32.totalorder %s387, %s388
    %p397 = scmp.eq.s32.totalorder %s36, 0
    %p398 = por %p396, %p397
    %p399 = scmp.ne.s32.totalorder %s387, %s388
    %p400 = scmp.eq.s32.totalorder %s37, 1
    %p401 = por %p399, %p400
    %p403 = scmp.ne.s32.totalorder %s388, %s402
    %p404 = scmp.eq.s32.totalorder %s37, 0
    %p405 = por %p403, %p404
    %s407 = sadd.s32 %s406, 1
    %p410 = scmp.eq.s32.totalorder %s31, 1
    %p411 = scmp.ne.s32.totalorder %s406, %s408
    %p412 = scmp.eq.s32.totalorder %s31, 0
    %p413 = por %p411, %p412
    %p414 = scmp.ne.s32.totalorder %s406, %s408
    %p415 = scmp.eq.s32.totalorder %s36, 1
    %p416 = por %p414, %p415
    %p417 = scmp.ne.s32.totalorder %s408, %s409
    %p418 = scmp.eq.s32.totalorder %s36, 0
    %p419 = por %p417, %p418
    %p420 = scmp.ne.s32.totalorder %s408, %s409
    %p421 = scmp.eq.s32.totalorder %s37, 1
    %p422 = por %p420, %p421
    %p424 = scmp.ne.s32.totalorder %s409, %s423
    %p425 = scmp.eq.s32.totalorder %s37, 0
    %p426 = por %p424, %p425
    %s428 = sadd.s32 %s427, 1
    %p431 = scmp.eq.s32.totalorder %s31, 1
    %p432 = scmp.ne.s32.totalorder %s427, %s429
    %p433 = scmp.eq.s32.totalorder %s31, 0
    %p434 = por %p432, %p433
    %p435 = scmp.ne.s32.totalorder %s427, %s429
    %p436 = scmp.eq.s32.totalorder %s36, 1
    %p437 = por %p435, %p436
    %p438 = scmp.ne.s32.totalorder %s429, %s430
    %p439 = scmp.eq.s32.totalorder %s36, 0
    %p440 = por %p438, %p439
    %p441 = scmp.ne.s32.totalorder %s429, %s430
    %p442 = scmp.eq.s32.totalorder %s37, 1
    %p443 = por %p441, %p442
    %p445 = scmp.ne.s32.totalorder %s430, %s444
    %p446 = scmp.eq.s32.totalorder %s37, 0
    %p447 = por %p445, %p446
    %s449 = sadd.s32 %s448, 1
    %p452 = scmp.eq.s32.totalorder %s31, 1
    %p453 = scmp.ne.s32.totalorder %s448, %s450
    %p454 = scmp.eq.s32.totalorder %s31, 0
    %p455 = por %p453, %p454
    %p456 = scmp.ne.s32.totalorder %s448, %s450
    %p457 = scmp.eq.s32.totalorder %s36, 1
    %p458 = por %p456, %p457
    %p459 = scmp.ne.s32.totalorder %s450, %s451
    %p460 = scmp.eq.s32.totalorder %s36, 0
    %p461 = por %p459, %p460
    %p462 = scmp.ne.s32.totalorder %s450, %s451
    %p463 = scmp.eq.s32.totalorder %s37, 1
    %p464 = por %p462, %p463
    %p466 = scmp.ne.s32.totalorder %s451, %s465
    %p467 = scmp.eq.s32.totalorder %s37, 0
    %p468 = por %p466, %p467
    %s469 = ssub.s32 %s31, %s38
    %p470 = scmp.eq.s32.totalorder %s469, 0
    %s472 = sadd.s32 %s471, 1
    %s473 = scalar_select %p470, %s471, %s472
    %p476 = pneg %p470
    %p477 = scmp.eq.s32.totalorder %s31, 1
    %p478 = por %p476, %p477
    %p479 = scmp.ne.s32.totalorder %s471, %s474
    %p480 = scmp.eq.s32.totalorder %s31, 0
    %p481 = por %p479, %p480
    %p482 = scmp.ne.s32.totalorder %s471, %s474
    %p483 = scmp.eq.s32.totalorder %s36, 1
    %p484 = por %p482, %p483
    %p485 = scmp.ne.s32.totalorder %s474, %s475
    %p486 = scmp.eq.s32.totalorder %s36, 0
    %p487 = por %p485, %p486
    %p488 = scmp.ne.s32.totalorder %s474, %s475
    %p489 = scmp.eq.s32.totalorder %s37, 1
    %p490 = por %p488, %p489
    %p492 = scmp.ne.s32.totalorder %s475, %s491
    %p493 = scmp.eq.s32.totalorder %s37, 0
    %p494 = por %p492, %p493
    %s496 = sadd.s32 %s495, 1
    %p499 = scmp.eq.s32.totalorder %s31, 1
    %p500 = scmp.ne.s32.totalorder %s495, %s497
    %p501 = scmp.eq.s32.totalorder %s31, 0
    %p502 = por %p500, %p501
    %p503 = scmp.ne.s32.totalorder %s495, %s497
    %p504 = scmp.eq.s32.totalorder %s36, 1
    %p505 = por %p503, %p504
    %p506 = scmp.ne.s32.totalorder %s497, %s498
    %p507 = scmp.eq.s32.totalorder %s36, 0
    %p508 = por %p506, %p507
    %p509 = scmp.ne.s32.totalorder %s497, %s498
    %p510 = scmp.eq.s32.totalorder %s37, 1
    %p511 = por %p509, %p510
    %p513 = scmp.ne.s32.totalorder %s498, %s512
    %p514 = scmp.eq.s32.totalorder %s37, 0
    %p515 = por %p513, %p514
    %s517 = sadd.s32 %s516, 1
    %p520 = scmp.eq.s32.totalorder %s31, 1
    %p521 = scmp.ne.s32.totalorder %s516, %s518
    %p522 = scmp.eq.s32.totalorder %s31, 0
    %p523 = por %p521, %p522
    %p524 = scmp.ne.s32.totalorder %s516, %s518
    %p525 = scmp.eq.s32.totalorder %s36, 1
    %p526 = por %p524, %p525
    %p527 = scmp.ne.s32.totalorder %s518, %s519
    %p528 = scmp.eq.s32.totalorder %s36, 0
    %p529 = por %p527, %p528
    %p530 = scmp.ne.s32.totalorder %s518, %s519
    %p531 = scmp.eq.s32.totalorder %s37, 1
    %p532 = por %p530, %p531
    %p534 = scmp.ne.s32.totalorder %s519, %s533
    %p535 = scmp.eq.s32.totalorder %s37, 0
    %p536 = por %p534, %p535
    %s538 = sadd.s32 %s537, 1
    %p541 = scmp.eq.s32.totalorder %s31, 1
    %p542 = scmp.ne.s32.totalorder %s537, %s539
    %p543 = scmp.eq.s32.totalorder %s31, 0
    %p544 = por %p542, %p543
    %p545 = scmp.ne.s32.totalorder %s537, %s539
    %p546 = scmp.eq.s32.totalorder %s36, 1
    %p547 = por %p545, %p546
    %p548 = scmp.ne.s32.totalorder %s539, %s540
    %p549 = scmp.eq.s32.totalorder %s36, 0
    %p550 = por %p548, %p549
    %p551 = scmp.ne.s32.totalorder %s539, %s540
    %p552 = scmp.eq.s32.totalorder %s37, 1
    %p553 = por %p551, %p552
    %p555 = scmp.ne.s32.totalorder %s540, %s554
    %p556 = scmp.eq.s32.totalorder %s37, 0
    %p557 = por %p555, %p556
    %s559 = sadd.s32 %s558, 1
    %p562 = scmp.eq.s32.totalorder %s31, 1
    %p563 = scmp.ne.s32.totalorder %s558, %s560
    %p564 = scmp.eq.s32.totalorder %s31, 0
    %p565 = por %p563, %p564
    %p566 = scmp.ne.s32.totalorder %s558, %s560
    %p567 = scmp.eq.s32.totalorder %s36, 1
    %p568 = por %p566, %p567
    %p569 = scmp.ne.s32.totalorder %s560, %s561
    %p570 = scmp.eq.s32.totalorder %s36, 0
    %p571 = por %p569, %p570
    %p572 = scmp.ne.s32.totalorder %s560, %s561
    %p573 = scmp.eq.s32.totalorder %s37, 1
    %p574 = por %p572, %p573
    %p576 = scmp.ne.s32.totalorder %s561, %s575
    %p577 = scmp.eq.s32.totalorder %s37, 0
    %p578 = por %p576, %p577
    %s579 = ssub.s32 %s31, %s38
    %p580 = scmp.eq.s32.totalorder %s579, 0
    %s582 = sadd.s32 %s581, 1
    %s583 = scalar_select %p580, %s581, %s582
    %p586 = pneg %p580
    %p587 = scmp.eq.s32.totalorder %s31, 1
    %p588 = por %p586, %p587
    %p589 = scmp.ne.s32.totalorder %s581, %s584
    %p590 = scmp.eq.s32.totalorder %s31, 0
    %p591 = por %p589, %p590
    %p592 = scmp.ne.s32.totalorder %s581, %s584
    %p593 = scmp.eq.s32.totalorder %s36, 1
    %p594 = por %p592, %p593
    %p595 = scmp.ne.s32.totalorder %s584, %s585
    %p596 = scmp.eq.s32.totalorder %s36, 0
    %p597 = por %p595, %p596
    %p598 = scmp.ne.s32.totalorder %s584, %s585
    %p599 = scmp.eq.s32.totalorder %s37, 1
    %p600 = por %p598, %p599
    %p602 = scmp.ne.s32.totalorder %s585, %s601
    %p603 = scmp.eq.s32.totalorder %s37, 0
    %p604 = por %p602, %p603
    %p605 = scmp.le.s32.totalorder 1, %s31
    %p606 = scmp.lt.s32.totalorder %s31, 3
    %p607 = pnand %p605, %p606
    %p608 = pneg %p607
    // Predicated region
    $region9: #{upconv_forward.1} parent=5 // pred_check
      _
    $region10: #{upconv_forward.1} parent=5 // pred_check_branch
      %610 = sbr.rel (%p607) target = $region12
    $region11: #{upconv_forward.1} parent=5 // pred_region
      %s611 = ssub.s32 %s31, 1
      // Predicated region
      $region13: #{upconv_forward.1} parent=11 // pred_check
        %p612 = pneg %p104
      $region14: #{upconv_forward.1} parent=11 // pred_check_branch
        %614 = sbr.rel (%p612) target = $region16
      $region15: #{upconv_forward.1} parent=11 // pred_region
        _
      $region16: #{upconv_forward.1} parent=11 // pred_fallthru
        _
      // Predicated region
      $region17: #{upconv_forward.1} parent=11 // pred_check
        %p615 = pneg %p125
      $region18: #{upconv_forward.1} parent=11 // pred_check_branch
        %617 = sbr.rel (%p615) target = $region20
      $region19: #{upconv_forward.1} parent=11 // pred_region
        _
      $region20: #{upconv_forward.1} parent=11 // pred_fallthru
        _
      // Predicated region
      $region21: #{upconv_forward.1} parent=11 // pred_check
        %p618 = pneg %p146
      $region22: #{upconv_forward.1} parent=11 // pred_check_branch
        %620 = sbr.rel (%p618) target = $region24
      $region23: #{upconv_forward.1} parent=11 // pred_region
        _
      $region24: #{upconv_forward.1} parent=11 // pred_fallthru
        _
      // Predicated region
      $region25: #{upconv_forward.1} parent=11 // pred_check
        %p621 = pneg %p167
      $region26: #{upconv_forward.1} parent=11 // pred_check_branch
        %623 = sbr.rel (%p621) target = $region28
      $region27: #{upconv_forward.1} parent=11 // pred_region
        _
      $region28: #{upconv_forward.1} parent=11 // pred_fallthru
        _
      // Predicated region
      $region29: #{upconv_forward.1} parent=11 // pred_check
        %p624 = pneg %p188
      $region30: #{upconv_forward.1} parent=11 // pred_check_branch
        %626 = sbr.rel (%p624) target = $region32
      $region31: #{upconv_forward.1} parent=11 // pred_region
        _
      $region32: #{upconv_forward.1} parent=11 // pred_fallthru
        _
      // Predicated region
      $region33: #{upconv_forward.1} parent=11 // pred_check
        %p627 = pneg %p209
      $region34: #{upconv_forward.1} parent=11 // pred_check_branch
        %629 = sbr.rel (%p627) target = $region36
      $region35: #{upconv_forward.1} parent=11 // pred_region
        _
      $region36: #{upconv_forward.1} parent=11 // pred_fallthru
        _
      // Predicated region
      $region37: #{upconv_forward.1} parent=11 // pred_check
        %p630 = pneg %p230
      $region38: #{upconv_forward.1} parent=11 // pred_check_branch
        %632 = sbr.rel (%p630) target = $region40
      $region39: #{upconv_forward.1} parent=11 // pred_region
        _
      $region40: #{upconv_forward.1} parent=11 // pred_fallthru
        _
      // Predicated region
      $region41: #{upconv_forward.1} parent=11 // pred_check
        %p633 = pneg %p251
      $region42: #{upconv_forward.1} parent=11 // pred_check_branch
        %635 = sbr.rel (%p633) target = $region44
      $region43: #{upconv_forward.1} parent=11 // pred_region
        _
      $region44: #{upconv_forward.1} parent=11 // pred_fallthru
        _
      // Predicated region
      $region45: #{upconv_forward.1} parent=11 // pred_check
        %p636 = pneg %p272
      $region46: #{upconv_forward.1} parent=11 // pred_check_branch
        %638 = sbr.rel (%p636) target = $region48
      $region47: #{upconv_forward.1} parent=11 // pred_region
        _
      $region48: #{upconv_forward.1} parent=11 // pred_fallthru
        _
      // Predicated region
      $region49: #{upconv_forward.1} parent=11 // pred_check
        %p639 = pneg %p293
      $region50: #{upconv_forward.1} parent=11 // pred_check_branch
        %641 = sbr.rel (%p639) target = $region52
      $region51: #{upconv_forward.1} parent=11 // pred_region
        _
      $region52: #{upconv_forward.1} parent=11 // pred_fallthru
        _
      // Predicated region
      $region53: #{upconv_forward.1} parent=11 // pred_check
        %p642 = pneg %p314
      $region54: #{upconv_forward.1} parent=11 // pred_check_branch
        %644 = sbr.rel (%p642) target = $region56
      $region55: #{upconv_forward.1} parent=11 // pred_region
        _
      $region56: #{upconv_forward.1} parent=11 // pred_fallthru
        _
      // Predicated region
      $region57: #{upconv_forward.1} parent=11 // pred_check
        %p645 = pneg %p335
      $region58: #{upconv_forward.1} parent=11 // pred_check_branch
        %647 = sbr.rel (%p645) target = $region60
      $region59: #{upconv_forward.1} parent=11 // pred_region
        _
      $region60: #{upconv_forward.1} parent=11 // pred_fallthru
        _
      // Predicated region
      $region61: #{upconv_forward.1} parent=11 // pred_check
        %p648 = pneg %p356
      $region62: #{upconv_forward.1} parent=11 // pred_check_branch
        %650 = sbr.rel (%p648) target = $region64
      $region63: #{upconv_forward.1} parent=11 // pred_region
        _
      $region64: #{upconv_forward.1} parent=11 // pred_fallthru
        _
      // Predicated region
      $region65: #{upconv_forward.1} parent=11 // pred_check
        %p651 = pneg %p377
      $region66: #{upconv_forward.1} parent=11 // pred_check_branch
        %653 = sbr.rel (%p651) target = $region68
      $region67: #{upconv_forward.1} parent=11 // pred_region
        _
      $region68: #{upconv_forward.1} parent=11 // pred_fallthru
        _
      // Predicated region
      $region69: #{upconv_forward.1} parent=11 // pred_check
        %p654 = pneg %p398
      $region70: #{upconv_forward.1} parent=11 // pred_check_branch
        %656 = sbr.rel (%p654) target = $region72
      $region71: #{upconv_forward.1} parent=11 // pred_region
        _
      $region72: #{upconv_forward.1} parent=11 // pred_fallthru
        _
      // Predicated region
      $region73: #{upconv_forward.1} parent=11 // pred_check
        %p657 = pneg %p419
      $region74: #{upconv_forward.1} parent=11 // pred_check_branch
        %659 = sbr.rel (%p657) target = $region76
      $region75: #{upconv_forward.1} parent=11 // pred_region
        _
      $region76: #{upconv_forward.1} parent=11 // pred_fallthru
        _
      // Predicated region
      $region77: #{upconv_forward.1} parent=11 // pred_check
        %p660 = pneg %p440
      $region78: #{upconv_forward.1} parent=11 // pred_check_branch
        %662 = sbr.rel (%p660) target = $region80
      $region79: #{upconv_forward.1} parent=11 // pred_region
        _
      $region80: #{upconv_forward.1} parent=11 // pred_fallthru
        _
      // Predicated region
      $region81: #{upconv_forward.1} parent=11 // pred_check
        %p663 = pneg %p461
      $region82: #{upconv_forward.1} parent=11 // pred_check_branch
        %665 = sbr.rel (%p663) target = $region84
      $region83: #{upconv_forward.1} parent=11 // pred_region
        _
      $region84: #{upconv_forward.1} parent=11 // pred_fallthru
        _
      // Predicated region
      $region85: #{upconv_forward.1} parent=11 // pred_check
        %p666 = pneg %p508
      $region86: #{upconv_forward.1} parent=11 // pred_check_branch
        %668 = sbr.rel (%p666) target = $region88
      $region87: #{upconv_forward.1} parent=11 // pred_region
        _
      $region88: #{upconv_forward.1} parent=11 // pred_fallthru
        _
      // Predicated region
      $region89: #{upconv_forward.1} parent=11 // pred_check
        %p669 = pneg %p529
      $region90: #{upconv_forward.1} parent=11 // pred_check_branch
        %671 = sbr.rel (%p669) target = $region92
      $region91: #{upconv_forward.1} parent=11 // pred_region
        _
      $region92: #{upconv_forward.1} parent=11 // pred_fallthru
        _
      // Predicated region
      $region93: #{upconv_forward.1} parent=11 // pred_check
        %p672 = pneg %p550
      $region94: #{upconv_forward.1} parent=11 // pred_check_branch
        %674 = sbr.rel (%p672) target = $region96
      $region95: #{upconv_forward.1} parent=11 // pred_region
        _
      $region96: #{upconv_forward.1} parent=11 // pred_fallthru
        _
      // Predicated region
      $region97: #{upconv_forward.1} parent=11 // pred_check
        %p675 = pneg %p571
      $region98: #{upconv_forward.1} parent=11 // pred_check_branch
        %677 = sbr.rel (%p675) target = $region100
      $region99: #{upconv_forward.1} parent=11 // pred_region
        _
      $region100: #{upconv_forward.1} parent=11 // pred_fallthru
        _
    $region12: #{upconv_forward.1} parent=5 // pred_fallthru
      _
    %p678 = scmp.lt.s32.totalorder %s31, 2
    // Predicated region
    $region101: #{upconv_forward.1} parent=5 // pred_check
      %p679 = pneg %p678
    $region102: #{upconv_forward.1} parent=5 // pred_check_branch
      %681 = sbr.rel (%p679) target = $region104
    $region103: #{upconv_forward.1} parent=5 // pred_region
      // Predicated region
      $region105: #{upconv_forward.1} parent=103 // pred_check
        %p682 = pneg %p51
      $region106: #{upconv_forward.1} parent=103 // pred_check_branch
        %684 = sbr.rel (%p682) target = $region108
      $region107: #{upconv_forward.1} parent=103 // pred_region
        %p685 = scmp.lt.s32.totalorder %s31, 1
        %s686 = scalar_select %p685, %s31, 1
        %s687 = smul.addr %s686, 8
        %s688 = scalar_lea.vmem %s0, %s687
      $region108: #{upconv_forward.1} parent=103 // pred_fallthru
        _
      // Predicated region
      $region109: #{upconv_forward.1} parent=103 // pred_check
        %p689 = pneg %p77
      $region110: #{upconv_forward.1} parent=103 // pred_check_branch
        %691 = sbr.rel (%p689) target = $region112
      $region111: #{upconv_forward.1} parent=103 // pred_region
        %p692 = scmp.lt.s32.totalorder %s31, 1
        %s693 = scalar_select %p692, %s31, 1
        %s694 = smul.addr %s693, 2
        %s695 = smul.addr %s694, 8
        %s696 = scalar_lea.vmem %s1, %s695
      $region112: #{upconv_forward.1} parent=103 // pred_fallthru
        _
      // Predicated region
      $region113: #{upconv_forward.1} parent=103 // pred_check
        %p697 = pneg %p481
      $region114: #{upconv_forward.1} parent=103 // pred_check_branch
        %699 = sbr.rel (%p697) target = $region116
      $region115: #{upconv_forward.1} parent=103 // pred_region
        %p700 = scmp.lt.s32.totalorder %s31, 1
        %s701 = scalar_select %p700, %s31, 1
        %s702 = scalar_lea.vmem %s20, %s701
      $region116: #{upconv_forward.1} parent=103 // pred_fallthru
        _
    $region104: #{upconv_forward.1} parent=5 // pred_fallthru
      _
    %p703 = scmp.le.s32.totalorder 1, %s31
    %p704 = scmp.lt.s32.totalorder %s31, 3
    %p705 = pnand %p703, %p704
    %p706 = pneg %p705
    // Predicated region
    $region117: #{upconv_forward.1} parent=5 // pred_check
      _
    $region118: #{upconv_forward.1} parent=5 // pred_check_branch
      %708 = sbr.rel (%p705) target = $region120
    $region119: #{upconv_forward.1} parent=5 // pred_region
      %s709 = ssub.s32 %s31, 1
      %p710 = scmp.lt.s32.totalorder %s36, 1
      %s711 = scalar_select %p710, %s36, 1
      %s712 = smul.addr %s711, 8
      %s713 = scalar_lea.vmem %s0, %s712
      %p714 = pneg %p57
      %p715 = pneg %p54
      %p716 = scmp.lt.s32.totalorder %s36, 1
      %s717 = scalar_select %p716, %s36, 1
      %s718 = smul.addr %s717, 2
      %s719 = smul.addr %s718, 8
      %s720 = scalar_lea.vmem %s1, %s719
      %p721 = pneg %p83
      %p722 = pneg %p80
      %p723 = pneg %p104
      %p724 = pneg %p101
      %p725 = pneg %p125
      %p726 = pneg %p122
      %p727 = pneg %p146
      %p728 = pneg %p143
      %p729 = pneg %p167
      %p730 = pneg %p164
      %p731 = pneg %p188
      %p732 = pneg %p185
      %p733 = pneg %p209
      %p734 = pneg %p206
      %p735 = pneg %p230
      %p736 = pneg %p227
      %p737 = pneg %p251
      %p738 = pneg %p248
      %p739 = pneg %p272
      %p740 = pneg %p269
      %p741 = pneg %p293
      %p742 = pneg %p290
      %p743 = pneg %p314
      %p744 = pneg %p311
      %p745 = pneg %p335
      %p746 = pneg %p332
      %p747 = pneg %p356
      %p748 = pneg %p353
      %p749 = pneg %p377
      %p750 = pneg %p374
      %p751 = pneg %p398
      %p752 = pneg %p395
      %p753 = pneg %p419
      %p754 = pneg %p416
      %p755 = pneg %p440
      %p756 = pneg %p437
      %p757 = pneg %p461
      %p758 = pneg %p458
      %p759 = scmp.lt.s32.totalorder %s36, 1
      %s760 = scalar_select %p759, %s36, 1
      %s761 = scalar_lea.vmem %s20, %s760
      %p762 = pneg %p487
      %p763 = pneg %p484
      %p764 = pneg %p508
      %p765 = pneg %p505
      %p766 = pneg %p529
      %p767 = pneg %p526
      %p768 = pneg %p550
      %p769 = pneg %p547
      %p770 = pneg %p571
      %p771 = pneg %p568
      %p772 = pneg %p597
      %p773 = pneg %p594
      %p774 = scmp.lt.s32.totalorder %s36, 1
      %s775 = scalar_select %p774, %s36, 1
      %s776 = smul.addr %s775, 2
      %s777 = smul.addr %s776, 8
      %s778 = scalar_lea.vmem %s25, %s777
      %p779 = scmp.lt.s32.totalorder %s36, 1
      %s780 = scalar_select %p779, %s36, 1
      %s781 = smul.addr %s780, 8
      %s782 = scalar_lea.vmem %s0, %s781
      %p783 = scmp.lt.s32.totalorder %s36, 1
      %s784 = scalar_select %p783, %s36, 1
      %s785 = smul.addr %s784, 2
      %s786 = smul.addr %s785, 8
      %s787 = scalar_lea.vmem %s1, %s786
      %p788 = scmp.lt.s32.totalorder %s36, 1
      %s789 = scalar_select %p788, %s36, 1
      %s790 = scalar_lea.vmem %s20, %s789
      %p791 = scmp.lt.s32.totalorder %s36, 1
      %s792 = scalar_select %p791, %s36, 1
      %s793 = smul.addr %s792, 2
      %s794 = smul.addr %s793, 8
      %s795 = scalar_lea.vmem %s25, %s794
      %v796 = vld [vmem:[%s790] sm:$0x1]
      %vm797 = vcmask 253952
      %v798 = vsel %vm797, %v796, 0.0
      %799 = vadd.xlane.f32.xlu0 %v798
      %v800 = vpop.xlane.xlu0 %799
      %v801 = vrcp.pop 32.0
      %v802 = vmul.f32 %v800, %v801
      %v803 = vsub.f32 %v796, %v802
      %v804 = vmul.f32 %v803, %v803
      %v805 = vsel %vm797, %v804, 0.0
      %806 = vadd.xlane.f32.xlu0 %v805
      %v807 = vpop.xlane.xlu0 %806
      %v808 = vmul.f32 %v807, %v801
      %v809 = vadd.f32 %v808, 1e-05
      %v810 = vrsqrt.pop %v809
      %v811 = vmul.f32 %v803, %v810
      %v812 = vld [vmem:[%s21] sm:$0x1]
      %v813 = vmul.f32 %v811, %v812
      %v814 = vld [vmem:[%s22] sm:$0x1]
      %v815 = vadd.f32 %v813, %v814
      %v816 = vld [vmem:[%s23] sm:$0xff]
      %v818 = vlaneseq
      %v819 = vshrl.u32 %v818, 7
      %v820 = vsub.s32 0, %v819
      %v821 = vrot.slane %v815, %v820
      %v823 = vmul.f32 %v816, %v821
      %vm824 = vcmask 261120
      %v825 = vsel %vm824, %v823, 0.0
      %826 = vadd.xlane.f32.xlu0 %v825
      %v827 = vpop.xlane.xlu0 %826
      %v828 = vld [vmem:[%s24] sm:$0xff]
      %v829 = vadd.f32 %v827, %v828
      %v830 = vsub.f32 0.0, %v829
      %v831 = vmul.f32 %v830, 1.442695
      %v832 = vpow.pop %v831
      %v833 = vadd.f32 %v832, 1.0
      %v834 = vrcp.pop %v833
      %v835 = vmul.f32 1.0, %v834
      %v836 = vmul.f32 %v829, %v835
      %v837 = vld [vmem:[%s782] sm:$0xff]
      %v838 = vld [vmem:[%s2] sm:$0xff]
      %v839 = vld [vmem:[%s2 + $0x8] sm:$0xff]
      %v840 = vld [vmem:[%s2 + $0x10] sm:$0xff]
      %v841 = vld [vmem:[%s2 + $0x18] sm:$0xff]
      %v842 = vld [vmem:[%s2 + $0x20] sm:$0xff]
      %v843 = vld [vmem:[%s2 + $0x28] sm:$0xff]
      %v844 = vld [vmem:[%s2 + $0x30] sm:$0xff]
      %v845 = vld [vmem:[%s2 + $0x38] sm:$0xff]
      %v846 = vld [vmem:[%s2 + $0x40] sm:$0xff]
      %v847 = vld [vmem:[%s2 + $0x48] sm:$0xff]
      %v848 = vld [vmem:[%s2 + $0x50] sm:$0xff]
      %v849 = vld [vmem:[%s2 + $0x58] sm:$0xff]
      %v850 = vld [vmem:[%s2 + $0x60] sm:$0xff]
      %v851 = vld [vmem:[%s2 + $0x68] sm:$0xff]
      %v852 = vld [vmem:[%s2 + $0x70] sm:$0xff]
      %v853 = vld [vmem:[%s2 + $0x78] sm:$0xff]
      %vm854 = vcmask 523264
      %v856 = vsel %vm854, %v837, 0
      %858 = vmatprep.subr.mxu0 %v839
      %859 = vmatpush1.msra.mxu0 %v838
      %860 = vmatprep.subr.mxu0 %v841
      %861 = vmatpush1.msra.mxu0 %v840
      %862 = vmatprep.subr.mxu0 %v843
      %863 = vmatpush1.msra.mxu0 %v842
      %864 = vmatprep.subr.mxu0 %v845
      %865 = vmatpush1.msra.mxu0 %v844
      %866 = vmatprep.subr.mxu0 %v847
      %867 = vmatpush1.msra.mxu0 %v846
      %868 = vmatprep.subr.mxu0 %v849
      %869 = vmatpush1.msra.mxu0 %v848
      %870 = vmatprep.subr.mxu0 %v851
      %871 = vmatpush1.msra.mxu0 %v850
      %872 = vmatprep.subr.mxu0 %v853
      %873 = vmatpush1.msra.mxu0 %v852
      %874 = vmatprep.subr.mxu0 0.0
      %875 = vmatpush1.msra.mxu0 0.0
      %876 = vmatprep.subr.mxu0 0.0
      %877 = vmatpush1.msra.mxu0 0.0
      %878 = vmatprep.subr.mxu0 0.0
      %879 = vmatpush1.msra.mxu0 0.0
      %880 = vmatprep.subr.mxu0 0.0
      %881 = vmatpush1.msra.mxu0 0.0
      %882 = vmatprep.subr.mxu0 0.0
      %883 = vmatpush1.msra.mxu0 0.0
      %884 = vmatprep.subr.mxu0 0.0
      %885 = vmatpush1.msra.mxu0 0.0
      %886 = vmatprep.subr.mxu0 0.0
      %887 = vmatpush1.msra.mxu0 0.0
      %888 = vmatprep.subr.mxu0 0.0
      %889 = vmatpush1.msra.mxu0 0.0
      %890 = vmatprep.subr.mxu0 0.0
      %891 = vmatpush1.msra.mxu0 0.0
      %892 = vmatprep.subr.mxu0 0.0
      %893 = vmatpush1.msra.mxu0 0.0
      %894 = vmatprep.subr.mxu0 0.0
      %895 = vmatpush1.msra.mxu0 0.0
      %896 = vmatprep.subr.mxu0 0.0
      %897 = vmatpush1.msra.mxu0 0.0
      %898 = vmatprep.subr.mxu0 0.0
      %899 = vmatpush1.msra.mxu0 0.0
      %900 = vmatprep.subr.mxu0 0.0
      %901 = vmatpush1.msra.mxu0 0.0
      %902 = vmatprep.subr.mxu0 0.0
      %903 = vmatpush1.msra.mxu0 0.0
      %904 = vmatprep.subr.mxu0 0.0
      %905 = vmatpush1.msra.mxu0 0.0
      %906 = vmatprep.subr.mxu0 0.0
      %907 = vmatpush1.msra.mxu0 0.0
      %908 = vmatprep.subr.mxu0 0.0
      %909 = vmatpush1.msra.mxu0 0.0
      %910 = vmatprep.subr.mxu0 0.0
      %911 = vmatpush1.msra.mxu0 0.0
      %912 = vmatprep.subr.mxu0 0.0
      %913 = vmatpush1.msra.mxu0 0.0
      %914 = vmatprep.subr.mxu0 0.0
      %915 = vmatpush1.msra.mxu0 0.0
      %916 = vmatprep.subr.mxu0 0.0
      %917 = vmatpush1.msra.mxu0 0.0
      %918 = vmatprep.subr.mxu0 0.0
      %919 = vmatpush1.msra.mxu0 0.0
      %920 = vmatprep.subr.mxu0 0.0
      %921 = vmatpush1.msra.mxu0 0.0
      %922 = vmatprep.mubr.f32.mxu0 0.0
      %923 = vmatmul.mubr.f32.gmra.mrb[0].mxu0 %v856
      %v924 = vpop.f32.mrb[0].mxu0
      %v925 = vadd.f32 0.0, %v924
      %v926 = vpop.f32.mrb[0].mxu0
      %v927 = vadd.f32 0.0, %v926
      %928 = vdwg.mxu0
      %v929 = vld [vmem:[%s787] sm:$0xff]
      %v930 = vld [vmem:[%s787 + $0x8] sm:$0xff]
      %v931 = vadd.f32 %v925, %v927
      %v932 = vadd.f32 %v931, %v929
      %v933 = vadd.f32 %v932, %v930
      %934 = vadd.xlane.f32.xlu0 %v933
      %v935 = vpop.xlane.xlu0 %934
      %v936 = vrot.slane %v935, 4
      %v937 = vadd.f32 %v935, %v936
      %v938 = vrot.slane %v937, 2
      %v939 = vadd.f32 %v937, %v938
      %v940 = vrot.slane %v939, 1
      %v941 = vadd.f32 %v939, %v940
      %s942 = vtos %v941
      %v943 = vstv %s942
      %v944 = vmul.f32 %v925, %v925
      %v945 = vmul.f32 %v927, %v927
      %v946 = vmul.f32 %v929, %v929
      %v947 = vmul.f32 %v930, %v930
      %v948 = vadd.f32 %v944, %v945
      %v949 = vadd.f32 %v948, %v946
      %v950 = vadd.f32 %v949, %v947
      %951 = vadd.xlane.f32.xlu0 %v950
      %v952 = vpop.xlane.xlu0 %951
      %v953 = vrot.slane %v952, 4
      %v954 = vadd.f32 %v952, %v953
      %v955 = vrot.slane %v954, 2
      %v956 = vadd.f32 %v954, %v955
      %v957 = vrot.slane %v956, 1
      %v958 = vadd.f32 %v956, %v957
      %s959 = vtos %v958
      %v960 = vstv %s959
      %v961 = vrcp.pop 4096.0
      %v962 = vmul.f32 %v943, %v961
      %v963 = vmul.f32 %v960, %v961
      %v964 = vmul.f32 %v962, %v962
      %v965 = vsub.f32 %v963, %v964
      %v966 = vmax.f32 %v965, 0.0
      %v967 = vsub.f32 %v925, %v962
      %v968 = vsub.f32 %v927, %v962
      %v969 = vsub.f32 %v929, %v962
      %v970 = vsub.f32 %v930, %v962
      %v971 = vadd.f32 %v966, 1e-05
      %v972 = vrsqrt.pop %v971
      %v973 = vmul.f32 %v967, %v972
      %v974 = vmul.f32 %v968, %v972
      %v975 = vmul.f32 %v969, %v972
      %v976 = vmul.f32 %v970, %v972
      %v977 = vld [vmem:[%s4] sm:$0xff]
      %v978 = vld [vmem:[%s4 + $0x8] sm:$0xff]
      %980 = vset.pattern.permute.xlu0 0
      %981 = vperm.xlu0 %980, %v977
      %v982 = vpop.permute.xlu0 %981
      %985 = vset.pattern.permute.xlu0 0
      %986 = vperm.xlu0 %985, %v978
      %v987 = vpop.permute.xlu0 %986
      %v989 = vmul.f32 %v973, %v982
      %v990 = vmul.f32 %v974, %v982
      %v991 = vmul.f32 %v975, %v987
      %v992 = vmul.f32 %v976, %v987
      %v993 = vld [vmem:[%s5] sm:$0xff]
      %v994 = vld [vmem:[%s5 + $0x8] sm:$0xff]
      %996 = vset.pattern.permute.xlu0 0
      %997 = vperm.xlu0 %996, %v993
      %v998 = vpop.permute.xlu0 %997
      %1001 = vset.pattern.permute.xlu0 0
      %1002 = vperm.xlu0 %1001, %v994
      %v1003 = vpop.permute.xlu0 %1002
      %v1005 = vadd.f32 %v989, %v998
      %v1006 = vadd.f32 %v990, %v998
      %v1007 = vadd.f32 %v991, %v1003
      %v1008 = vadd.f32 %v992, %v1003
      %1009 = vrot.lane.b32.xlu0 %v1005, 17
      %v1010 = vpop.permute.xlu0 %1009
      %1011 = vrot.lane.b32.xlu0 %v1007, 17
      %v1012 = vpop.permute.xlu0 %1011
      %1013 = vrot.lane.b32.xlu0 %v1006, 17
      %v1014 = vpop.permute.xlu0 %1013
      %1015 = vrot.lane.b32.xlu0 %v1008, 17
      %v1016 = vpop.permute.xlu0 %1015
      %v1017 = vlaneseq
      %v1018 = vand.u32 %v1017, 127
      %vm1019 = vcmp.lt.s32.totalorder %v1018, 17
      %v1020 = vsel %vm1019, %v1010, %v1014
      %v1021 = vsel %vm1019, %v1012, %v1016
      %v1022 = vsel %vm1019, %v1014, %v1010
      %v1023 = vsel %vm1019, %v1016, %v1012
      %v1024 = vld [vmem:[%s3] sm:$0x3]
      %v1026 = vlaneseq
      %v1027 = vshrl.u32 %v1026, 7
      %v1028 = vsub.s32 0, %v1027
      %v1029 = vrot.slane %v1024, %v1028
      %v1030 = vlaneseq
      %v1031 = vshrl.u32 %v1030, 7
      %v1032 = vsub.s32 1, %v1031
      %v1033 = vrot.slane %v1024, %v1032
      %v1036 = vmul.f32 %v1022, %v1029
      %v1037 = vmul.f32 %v1020, %v1033
      %v1038 = vmul.f32 %v1023, %v1029
      %v1039 = vmul.f32 %v1021, %v1033
      %1040 = vrot.lane.b32.xlu0 %v1005, 16
      %v1041 = vpop.permute.xlu0 %1040
      %1042 = vrot.lane.b32.xlu0 %v1007, 16
      %v1043 = vpop.permute.xlu0 %1042
      %1044 = vrot.lane.b32.xlu0 %v1006, 16
      %v1045 = vpop.permute.xlu0 %1044
      %1046 = vrot.lane.b32.xlu0 %v1008, 16
      %v1047 = vpop.permute.xlu0 %1046
      %vm1048 = vcmp.lt.s32.totalorder %v1018, 16
      %v1049 = vsel %vm1048, %v1041, %v1045
      %v1050 = vsel %vm1048, %v1043, %v1047
      %v1051 = vsel %vm1048, %v1045, %v1041
      %v1052 = vsel %vm1048, %v1047, %v1043
      %s1053 = scalar_lea.vmem %s3, 2
      %v1054 = vld [vmem:[%s1053] sm:$0x3]
      %v1056 = vlaneseq
      %v1057 = vshrl.u32 %v1056, 7
      %v1058 = vsub.s32 0, %v1057
      %v1059 = vrot.slane %v1054, %v1058
      %v1060 = vlaneseq
      %v1061 = vshrl.u32 %v1060, 7
      %v1062 = vsub.s32 1, %v1061
      %v1063 = vrot.slane %v1054, %v1062
      %v1066 = vmul.f32 %v1051, %v1059
      %v1067 = vmul.f32 %v1049, %v1063
      %v1068 = vmul.f32 %v1052, %v1059
      %v1069 = vmul.f32 %v1050, %v1063
      %1070 = vrot.lane.b32.xlu0 %v1005, 15
      %v1071 = vpop.permute.xlu0 %1070
      %1072 = vrot.lane.b32.xlu0 %v1007, 15
      %v1073 = vpop.permute.xlu0 %1072
      %1074 = vrot.lane.b32.xlu0 %v1006, 15
      %v1075 = vpop.permute.xlu0 %1074
      %1076 = vrot.lane.b32.xlu0 %v1008, 15
      %v1077 = vpop.permute.xlu0 %1076
      %vm1078 = vcmp.lt.s32.totalorder %v1018, 15
      %v1079 = vsel %vm1078, %v1071, %v1075
      %v1080 = vsel %vm1078, %v1073, %v1077
      %v1081 = vsel %vm1078, %v1075, %v1071
      %v1082 = vsel %vm1078, %v1077, %v1073
      %s1083 = scalar_lea.vmem %s3, 4
      %v1084 = vld [vmem:[%s1083] sm:$0x3]
      %v1086 = vlaneseq
      %v1087 = vshrl.u32 %v1086, 7
      %v1088 = vsub.s32 0, %v1087
      %v1089 = vrot.slane %v1084, %v1088
      %v1090 = vlaneseq
      %v1091 = vshrl.u32 %v1090, 7
      %v1092 = vsub.s32 1, %v1091
      %v1093 = vrot.slane %v1084, %v1092
      %v1096 = vmul.f32 %v1081, %v1089
      %v1097 = vmul.f32 %v1079, %v1093
      %v1098 = vmul.f32 %v1082, %v1089
      %v1099 = vmul.f32 %v1080, %v1093
      %1100 = vrot.lane.b32.xlu0 %v1005, 1
      %v1101 = vpop.permute.xlu0 %1100
      %1102 = vrot.lane.b32.xlu0 %v1007, 1
      %v1103 = vpop.permute.xlu0 %1102
      %1104 = vrot.lane.b32.xlu0 %v1006, 1
      %v1105 = vpop.permute.xlu0 %1104
      %1106 = vrot.lane.b32.xlu0 %v1008, 1
      %v1107 = vpop.permute.xlu0 %1106
      %vm1108 = vcmp.lt.s32.totalorder %v1018, 1
      %v1109 = vsel %vm1108, %v1101, %v1105
      %v1110 = vsel %vm1108, %v1103, %v1107
      %v1111 = vsel %vm1108, %v1105, %v1101
      %v1112 = vsel %vm1108, %v1107, %v1103
      %s1113 = scalar_lea.vmem %s3, 6
      %v1114 = vld [vmem:[%s1113] sm:$0x3]
      %v1116 = vlaneseq
      %v1117 = vshrl.u32 %v1116, 7
      %v1118 = vsub.s32 0, %v1117
      %v1119 = vrot.slane %v1114, %v1118
      %v1120 = vlaneseq
      %v1121 = vshrl.u32 %v1120, 7
      %v1122 = vsub.s32 1, %v1121
      %v1123 = vrot.slane %v1114, %v1122
      %v1126 = vmul.f32 %v1111, %v1119
      %v1127 = vmul.f32 %v1109, %v1123
      %v1128 = vmul.f32 %v1112, %v1119
      %v1129 = vmul.f32 %v1110, %v1123
      %1130 = vrot.lane.b32.xlu0 %v1005, 127
      %v1131 = vpop.permute.xlu0 %1130
      %1132 = vrot.lane.b32.xlu0 %v1007, 127
      %v1133 = vpop.permute.xlu0 %1132
      %1134 = vrot.lane.b32.xlu0 %v1006, 127
      %v1135 = vpop.permute.xlu0 %1134
      %1136 = vrot.lane.b32.xlu0 %v1008, 127
      %v1137 = vpop.permute.xlu0 %1136
      %vm1138 = vcmp.lt.s32.totalorder %v1018, 127
      %v1139 = vsel %vm1138, %v1131, %v1135
      %v1140 = vsel %vm1138, %v1133, %v1137
      %v1141 = vsel %vm1138, %v1135, %v1131
      %v1142 = vsel %vm1138, %v1137, %v1133
      %s1143 = scalar_lea.vmem %s3, 10
      %v1144 = vld [vmem:[%s1143] sm:$0x3]
      %v1146 = vlaneseq
      %v1147 = vshrl.u32 %v1146, 7
      %v1148 = vsub.s32 0, %v1147
      %v1149 = vrot.slane %v1144, %v1148
      %v1150 = vlaneseq
      %v1151 = vshrl.u32 %v1150, 7
      %v1152 = vsub.s32 1, %v1151
      %v1153 = vrot.slane %v1144, %v1152
      %v1156 = vmul.f32 %v1139, %v1149
      %v1157 = vmul.f32 %v1141, %v1153
      %v1158 = vmul.f32 %v1140, %v1149
      %v1159 = vmul.f32 %v1142, %v1153
      %1160 = vrot.lane.b32.xlu0 %v1005, 113
      %v1161 = vpop.permute.xlu0 %1160
      %1162 = vrot.lane.b32.xlu0 %v1007, 113
      %v1163 = vpop.permute.xlu0 %1162
      %1164 = vrot.lane.b32.xlu0 %v1006, 113
      %v1165 = vpop.permute.xlu0 %1164
      %1166 = vrot.lane.b32.xlu0 %v1008, 113
      %v1167 = vpop.permute.xlu0 %1166
      %vm1168 = vcmp.lt.s32.totalorder %v1018, 113
      %v1169 = vsel %vm1168, %v1161, %v1165
      %v1170 = vsel %vm1168, %v1163, %v1167
      %v1171 = vsel %vm1168, %v1165, %v1161
      %v1172 = vsel %vm1168, %v1167, %v1163
      %s1173 = scalar_lea.vmem %s3, 12
      %v1174 = vld [vmem:[%s1173] sm:$0x3]
      %v1176 = vlaneseq
      %v1177 = vshrl.u32 %v1176, 7
      %v1178 = vsub.s32 0, %v1177
      %v1179 = vrot.slane %v1174, %v1178
      %v1180 = vlaneseq
      %v1181 = vshrl.u32 %v1180, 7
      %v1182 = vsub.s32 1, %v1181
      %v1183 = vrot.slane %v1174, %v1182
      %v1186 = vmul.f32 %v1169, %v1179
      %v1187 = vmul.f32 %v1171, %v1183
      %v1188 = vmul.f32 %v1170, %v1179
      %v1189 = vmul.f32 %v1172, %v1183
      %1190 = vrot.lane.b32.xlu0 %v1005, 112
      %v1191 = vpop.permute.xlu0 %1190
      %1192 = vrot.lane.b32.xlu0 %v1007, 112
      %v1193 = vpop.permute.xlu0 %1192
      %1194 = vrot.lane.b32.xlu0 %v1006, 112
      %v1195 = vpop.permute.xlu0 %1194
      %1196 = vrot.lane.b32.xlu0 %v1008, 112
      %v1197 = vpop.permute.xlu0 %1196
      %vm1198 = vcmp.lt.s32.totalorder %v1018, 112
      %v1199 = vsel %vm1198, %v1191, %v1195
      %v1200 = vsel %vm1198, %v1193, %v1197
      %v1201 = vsel %vm1198, %v1195, %v1191
      %v1202 = vsel %vm1198, %v1197, %v1193
      %s1203 = scalar_lea.vmem %s3, 14
      %v1204 = vld [vmem:[%s1203] sm:$0x3]
      %v1206 = vlaneseq
      %v1207 = vshrl.u32 %v1206, 7
      %v1208 = vsub.s32 0, %v1207
      %v1209 = vrot.slane %v1204, %v1208
      %v1210 = vlaneseq
      %v1211 = vshrl.u32 %v1210, 7
      %v1212 = vsub.s32 1, %v1211
      %v1213 = vrot.slane %v1204, %v1212
      %v1216 = vmul.f32 %v1199, %v1209
      %v1217 = vmul.f32 %v1201, %v1213
      %v1218 = vmul.f32 %v1200, %v1209
      %v1219 = vmul.f32 %v1202, %v1213
      %1220 = vrot.lane.b32.xlu0 %v1005, 111
      %v1221 = vpop.permute.xlu0 %1220
      %1222 = vrot.lane.b32.xlu0 %v1007, 111
      %v1223 = vpop.permute.xlu0 %1222
      %1224 = vrot.lane.b32.xlu0 %v1006, 111
      %v1225 = vpop.permute.xlu0 %1224
      %1226 = vrot.lane.b32.xlu0 %v1008, 111
      %v1227 = vpop.permute.xlu0 %1226
      %vm1228 = vcmp.lt.s32.totalorder %v1018, 111
      %v1229 = vsel %vm1228, %v1221, %v1225
      %v1230 = vsel %vm1228, %v1223, %v1227
      %v1231 = vsel %vm1228, %v1225, %v1221
      %v1232 = vsel %vm1228, %v1227, %v1223
      %s1233 = scalar_lea.vmem %s3, 16
      %v1234 = vld [vmem:[%s1233] sm:$0x3]
      %v1236 = vlaneseq
      %v1237 = vshrl.u32 %v1236, 7
      %v1238 = vsub.s32 0, %v1237
      %v1239 = vrot.slane %v1234, %v1238
      %v1240 = vlaneseq
      %v1241 = vshrl.u32 %v1240, 7
      %v1242 = vsub.s32 1, %v1241
      %v1243 = vrot.slane %v1234, %v1242
      %v1246 = vmul.f32 %v1229, %v1239
      %v1247 = vmul.f32 %v1231, %v1243
      %v1248 = vmul.f32 %v1230, %v1239
      %v1249 = vmul.f32 %v1232, %v1243
      %v1250 = vld [vmem:[%s6] sm:$0xff]
      %v1251 = vld [vmem:[%s6 + $0x8] sm:$0xff]
      %v1252 = vld [vmem:[%s7] sm:$0xff]
      %1254 = vset.pattern.permute.xlu0 0
      %1255 = vperm.xlu0 %1254, %v1252
      %v1256 = vpop.permute.xlu0 %1255
      %vm1258 = vcmask 130048
      %v1260 = vsel %vm1258, %v1251, 0
      %1262 = vmatprep.subr.mxu0 %v1037
      %1263 = vmatpush1.msra.mxu0 %v1036
      %1264 = vmatprep.subr.mxu0 %v1039
      %1265 = vmatpush1.msra.mxu0 %v1038
      %1266 = vmatprep.subr.mxu0 %v1067
      %1267 = vmatpush1.msra.mxu0 %v1066
      %1268 = vmatprep.subr.mxu0 %v1069
      %1269 = vmatpush1.msra.mxu0 %v1068
      %1270 = vmatprep.subr.mxu0 %v1097
      %1271 = vmatpush1.msra.mxu0 %v1096
      %1272 = vmatprep.subr.mxu0 %v1099
      %1273 = vmatpush1.msra.mxu0 %v1098
      %1274 = vmatprep.subr.mxu0 %v1127
      %1275 = vmatpush1.msra.mxu0 %v1126
      %1276 = vmatprep.subr.mxu0 %v1129
      %1277 = vmatpush1.msra.mxu0 %v1128
      %1278 = vmatprep.subr.mxu0 %v1006
      %1279 = vmatpush1.msra.mxu0 %v1005
      %1280 = vmatprep.subr.mxu0 %v1008
      %1281 = vmatpush1.msra.mxu0 %v1007
      %1282 = vmatprep.subr.mxu0 %v1157
      %1283 = vmatpush1.msra.mxu0 %v1156
      %1284 = vmatprep.subr.mxu0 %v1159
      %1285 = vmatpush1.msra.mxu0 %v1158
      %1286 = vmatprep.subr.mxu0 %v1187
      %1287 = vmatpush1.msra.mxu0 %v1186
      %1288 = vmatprep.subr.mxu0 %v1189
      %1289 = vmatpush1.msra.mxu0 %v1188
      %1290 = vmatprep.subr.mxu0 %v1217
      %1291 = vmatpush1.msra.mxu0 %v1216
      %1292 = vmatprep.subr.mxu0 %v1219
      %1293 = vmatpush1.msra.mxu0 %v1218
      %1294 = vmatprep.subr.mxu0 %v1247
      %1295 = vmatpush1.msra.mxu0 %v1246
      %1296 = vmatprep.subr.mxu0 %v1249
      %1297 = vmatpush1.msra.mxu0 %v1248
      %1298 = vmatprep.subr.mxu0 0.0
      %1299 = vmatpush1.msra.mxu0 0.0
      %1300 = vmatprep.subr.mxu0 0.0
      %1301 = vmatpush1.msra.mxu0 0.0
      %1302 = vmatprep.subr.mxu0 0.0
      %1303 = vmatpush1.msra.mxu0 0.0
      %1304 = vmatprep.subr.mxu0 0.0
      %1305 = vmatpush1.msra.mxu0 0.0
      %1306 = vmatprep.subr.mxu0 0.0
      %1307 = vmatpush1.msra.mxu0 0.0
      %1308 = vmatprep.subr.mxu0 0.0
      %1309 = vmatpush1.msra.mxu0 0.0
      %1310 = vmatprep.subr.mxu0 0.0
      %1311 = vmatpush1.msra.mxu0 0.0
      %1312 = vmatprep.subr.mxu0 0.0
      %1313 = vmatpush1.msra.mxu0 0.0
      %1314 = vmatprep.subr.mxu0 0.0
      %1315 = vmatpush1.msra.mxu0 0.0
      %1316 = vmatprep.subr.mxu0 0.0
      %1317 = vmatpush1.msra.mxu0 0.0
      %1318 = vmatprep.subr.mxu0 0.0
      %1319 = vmatpush1.msra.mxu0 0.0
      %1320 = vmatprep.subr.mxu0 0.0
      %1321 = vmatpush1.msra.mxu0 0.0
      %1322 = vmatprep.subr.mxu0 0.0
      %1323 = vmatpush1.msra.mxu0 0.0
      %1324 = vmatprep.subr.mxu0 0.0
      %1325 = vmatpush1.msra.mxu0 0.0
      %1326 = vmatprep.mubr.f32.mxu0 %v1260
      %1327 = vmatmul.mubr.f32.gmra.mrb[0].mxu0 %v1250
      %v1328 = vpop.f32.mrb[0].mxu0
      %v1329 = vadd.f32 %v1256, %v1328
      %v1330 = vpop.f32.mrb[0].mxu0
      %v1331 = vadd.f32 %v1256, %v1330
      %1332 = vdwg.mxu0
      %v1333 = vmul.f32 %v1329, 0.5
      %v1334 = vmul.f32 %v1331, 0.5
      %v1335 = vmul.f32 %v1329, 0.70710677
      %v1336 = vmul.f32 %v1331, 0.70710677
      %vm1337 = vcmp.ge.f32.partialorder %v1335, 0.0
      %vm1338 = vcmp.ge.f32.partialorder %v1336, 0.0
      %v1339 = vsel %vm1337, 1.0, -1.0
      %v1340 = vsel %vm1338, 1.0, -1.0
      %v1341 = vand.u32 2147483647, %v1335
      %v1342 = vand.u32 2147483647, %v1336
      %v1343 = vmul.f32 %v1341, 0.3275911
      %v1344 = vmul.f32 %v1342, 0.3275911
      %v1345 = vadd.f32 %v1343, 1.0
      %v1346 = vadd.f32 %v1344, 1.0
      %v1347 = vrcp.pop %v1345
      %v1348 = vmul.f32 1.0, %v1347
      %v1349 = vrcp.pop %v1346
      %v1350 = vmul.f32 1.0, %v1349
      %v1351 = vmul.f32 %v1348, 1.0614054
      %v1352 = vmul.f32 %v1350, 1.0614054
      %v1353 = vadd.f32 %v1351, -1.4531521
      %v1354 = vadd.f32 %v1352, -1.4531521
      %v1355 = vmul.f32 %v1353, %v1348
      %v1356 = vmul.f32 %v1354, %v1350
      %v1357 = vadd.f32 %v1355, 1.4214138
      %v1358 = vadd.f32 %v1356, 1.4214138
      %v1359 = vmul.f32 %v1357, %v1348
      %v1360 = vmul.f32 %v1358, %v1350
      %v1361 = vadd.f32 %v1359, -0.28449672
      %v1362 = vadd.f32 %v1360, -0.28449672
      %v1363 = vmul.f32 %v1361, %v1348
      %v1364 = vmul.f32 %v1362, %v1350
      %v1365 = vadd.f32 %v1363, 0.2548296
      %v1366 = vadd.f32 %v1364, 0.2548296
      %v1367 = vmul.f32 %v1365, %v1348
      %v1368 = vmul.f32 %v1366, %v1350
      %v1369 = vsub.f32 0.0, %v1341
      %v1370 = vsub.f32 0.0, %v1342
      %v1371 = vmul.f32 %v1369, %v1341
      %v1372 = vmul.f32 %v1370, %v1342
      %v1373 = vmul.f32 %v1371, 1.442695
      %v1374 = vpow.pop %v1373
      %v1375 = vmul.f32 %v1372, 1.442695
      %v1376 = vpow.pop %v1375
      %v1377 = vmul.f32 %v1367, %v1374
      %v1378 = vmul.f32 %v1368, %v1376
      %v1379 = vsub.f32 1.0, %v1377
      %v1380 = vsub.f32 1.0, %v1378
      %v1381 = vmul.f32 %v1339, %v1379
      %v1382 = vmul.f32 %v1340, %v1380
      %v1383 = vadd.f32 %v1381, 1.0
      %v1384 = vadd.f32 %v1382, 1.0
      %v1385 = vmul.f32 %v1333, %v1383
      %v1386 = vmul.f32 %v1334, %v1384
      %v1387 = vadd.f32 %v1385, %v1386
      %1388 = vadd.xlane.f32.xlu0 %v1387
      %v1389 = vpop.xlane.xlu0 %1388
      %v1390 = vrot.slane %v1389, 4
      %v1391 = vadd.f32 %v1389, %v1390
      %v1392 = vrot.slane %v1391, 2
      %v1393 = vadd.f32 %v1391, %v1392
      %v1394 = vrot.slane %v1393, 1
      %v1395 = vadd.f32 %v1393, %v1394
      %s1396 = vtos %v1395
      %v1397 = vstv %s1396
      %v1398 = vmul.f32 %v1385, %v1385
      %v1399 = vmul.f32 %v1386, %v1386
      %v1400 = vadd.f32 %v1398, %v1399
      %1401 = vadd.xlane.f32.xlu0 %v1400
      %v1402 = vpop.xlane.xlu0 %1401
      %v1403 = vrot.slane %v1402, 4
      %v1404 = vadd.f32 %v1402, %v1403
      %v1405 = vrot.slane %v1404, 2
      %v1406 = vadd.f32 %v1404, %v1405
      %v1407 = vrot.slane %v1406, 1
      %v1408 = vadd.f32 %v1406, %v1407
      %s1409 = vtos %v1408
      %v1410 = vstv %s1409
      %v1411 = vrcp.pop 2048.0
      %v1412 = vmul.f32 %v1397, %v1411
      %v1413 = vmul.f32 %v1410, %v1411
      %v1414 = vmul.f32 %v1412, %v1412
      %v1415 = vsub.f32 %v1413, %v1414
      %v1416 = vmax.f32 %v1415, 0.0
      %v1417 = vsub.f32 %v1385, %v1412
      %v1418 = vsub.f32 %v1386, %v1412
      %v1419 = vadd.f32 %v1416, 1e-05
      %v1420 = vrsqrt.pop %v1419
      %v1421 = vmul.f32 %v1417, %v1420
      %v1422 = vmul.f32 %v1418, %v1420
      %v1423 = vld [vmem:[%s8] sm:$0xff]
      %1425 = vset.pattern.permute.xlu0 0
      %1426 = vperm.xlu0 %1425, %v1423
      %v1427 = vpop.permute.xlu0 %1426
      %v1429 = vmul.f32 %v1421, %v1427
      %v1430 = vmul.f32 %v1422, %v1427
      %v1431 = vld [vmem:[%s9] sm:$0xff]
      %1433 = vset.pattern.permute.xlu0 0
      %1434 = vperm.xlu0 %1433, %v1431
      %v1435 = vpop.permute.xlu0 %1434
      %v1437 = vadd.f32 %v1429, %v1435
      %v1438 = vadd.f32 %v1430, %v1435
      %1439 = vrot.lane.b32.xlu0 %v1437, 17
      %v1440 = vpop.permute.xlu0 %1439
      %1441 = vrot.lane.b32.xlu0 %v1438, 17
      %v1442 = vpop.permute.xlu0 %1441
      %v1443 = vsel %vm1019, %v1440, %v1442
      %v1444 = vsel %vm1019, %v1442, %v1440
      %v1445 = vmul.f32 %v1444, %v1029
      %v1446 = vmul.f32 %v1443, %v1033
      %1447 = vrot.lane.b32.xlu0 %v1437, 16
      %v1448 = vpop.permute.xlu0 %1447
      %1449 = vrot.lane.b32.xlu0 %v1438, 16
      %v1450 = vpop.permute.xlu0 %1449
      %v1451 = vsel %vm1048, %v1448, %v1450
      %v1452 = vsel %vm1048, %v1450, %v1448
      %v1453 = vmul.f32 %v1452, %v1059
      %v1454 = vmul.f32 %v1451, %v1063
      %1455 = vrot.lane.b32.xlu0 %v1437, 15
      %v1456 = vpop.permute.xlu0 %1455
      %1457 = vrot.lane.b32.xlu0 %v1438, 15
      %v1458 = vpop.permute.xlu0 %1457
      %v1459 = vsel %vm1078, %v1456, %v1458
      %v1460 = vsel %vm1078, %v1458, %v1456
      %v1461 = vmul.f32 %v1460, %v1089
      %v1462 = vmul.f32 %v1459, %v1093
      %1463 = vrot.lane.b32.xlu0 %v1437, 1
      %v1464 = vpop.permute.xlu0 %1463
      %1465 = vrot.lane.b32.xlu0 %v1438, 1
      %v1466 = vpop.permute.xlu0 %1465
      %v1467 = vsel %vm1108, %v1464, %v1466
      %v1468 = vsel %vm1108, %v1466, %v1464
      %v1469 = vmul.f32 %v1468, %v1119
      %v1470 = vmul.f32 %v1467, %v1123
      %1471 = vrot.lane.b32.xlu0 %v1437, 127
      %v1472 = vpop.permute.xlu0 %1471
      %1473 = vrot.lane.b32.xlu0 %v1438, 127
      %v1474 = vpop.permute.xlu0 %1473
      %v1475 = vsel %vm1138, %v1472, %v1474
      %v1476 = vsel %vm1138, %v1474, %v1472
      %v1477 = vmul.f32 %v1475, %v1149
      %v1478 = vmul.f32 %v1476, %v1153
      %1479 = vrot.lane.b32.xlu0 %v1437, 113
      %v1480 = vpop.permute.xlu0 %1479
      %1481 = vrot.lane.b32.xlu0 %v1438, 113
      %v1482 = vpop.permute.xlu0 %1481
      %v1483 = vsel %vm1168, %v1480, %v1482
      %v1484 = vsel %vm1168, %v1482, %v1480
      %v1485 = vmul.f32 %v1483, %v1179
      %v1486 = vmul.f32 %v1484, %v1183
      %1487 = vrot.lane.b32.xlu0 %v1437, 112
      %v1488 = vpop.permute.xlu0 %1487
      %1489 = vrot.lane.b32.xlu0 %v1438, 112
      %v1490 = vpop.permute.xlu0 %1489
      %v1491 = vsel %vm1198, %v1488, %v1490
      %v1492 = vsel %vm1198, %v1490, %v1488
      %v1493 = vmul.f32 %v1491, %v1209
      %v1494 = vmul.f32 %v1492, %v1213
      %1495 = vrot.lane.b32.xlu0 %v1437, 111
      %v1496 = vpop.permute.xlu0 %1495
      %1497 = vrot.lane.b32.xlu0 %v1438, 111
      %v1498 = vpop.permute.xlu0 %1497
      %v1499 = vsel %vm1228, %v1496, %v1498
      %v1500 = vsel %vm1228, %v1498, %v1496
      %v1501 = vmul.f32 %v1499, %v1239
      %v1502 = vmul.f32 %v1500, %v1243
      %v1503 = vld [vmem:[%s10] sm:$0xff]
      %v1504 = vld [vmem:[%s11] sm:$0xff]
      %1506 = vset.pattern.permute.xlu0 0
      %1507 = vperm.xlu0 %1506, %v1504
      %v1508 = vpop.permute.xlu0 %1507
      %vm1510 = vcmask 588800
      %v1512 = vsel %vm1510, %v1503, 0
      %1514 = vmatprep.subr.mxu0 %v1446
      %1515 = vmatpush1.msra.mxu0 %v1445
      %1516 = vmatprep.subr.mxu0 %v1454
      %1517 = vmatpush1.msra.mxu0 %v1453
      %1518 = vmatprep.subr.mxu0 %v1462
      %1519 = vmatpush1.msra.mxu0 %v1461
      %1520 = vmatprep.subr.mxu0 %v1470
      %1521 = vmatpush1.msra.mxu0 %v1469
      %1522 = vmatprep.subr.mxu0 %v1438
      %1523 = vmatpush1.msra.mxu0 %v1437
      %1524 = vmatprep.subr.mxu0 %v1478
      %1525 = vmatpush1.msra.mxu0 %v1477
      %1526 = vmatprep.subr.mxu0 %v1486
      %1527 = vmatpush1.msra.mxu0 %v1485
      %1528 = vmatprep.subr.mxu0 %v1494
      %1529 = vmatpush1.msra.mxu0 %v1493
      %1530 = vmatprep.subr.mxu0 %v1502
      %1531 = vmatpush1.msra.mxu0 %v1501
      %1532 = vmatprep.subr.mxu0 0.0
      %1533 = vmatpush1.msra.mxu0 0.0
      %1534 = vmatprep.subr.mxu0 0.0
      %1535 = vmatpush1.msra.mxu0 0.0
      %1536 = vmatprep.subr.mxu0 0.0
      %1537 = vmatpush1.msra.mxu0 0.0
      %1538 = vmatprep.subr.mxu0 0.0
      %1539 = vmatpush1.msra.mxu0 0.0
      %1540 = vmatprep.subr.mxu0 0.0
      %1541 = vmatpush1.msra.mxu0 0.0
      %1542 = vmatprep.subr.mxu0 0.0
      %1543 = vmatpush1.msra.mxu0 0.0
      %1544 = vmatprep.subr.mxu0 0.0
      %1545 = vmatpush1.msra.mxu0 0.0
      %1546 = vmatprep.subr.mxu0 0.0
      %1547 = vmatpush1.msra.mxu0 0.0
      %1548 = vmatprep.subr.mxu0 0.0
      %1549 = vmatpush1.msra.mxu0 0.0
      %1550 = vmatprep.subr.mxu0 0.0
      %1551 = vmatpush1.msra.mxu0 0.0
      %1552 = vmatprep.subr.mxu0 0.0
      %1553 = vmatpush1.msra.mxu0 0.0
      %1554 = vmatprep.subr.mxu0 0.0
      %1555 = vmatpush1.msra.mxu0 0.0
      %1556 = vmatprep.subr.mxu0 0.0
      %1557 = vmatpush1.msra.mxu0 0.0
      %1558 = vmatprep.subr.mxu0 0.0
      %1559 = vmatpush1.msra.mxu0 0.0
      %1560 = vmatprep.subr.mxu0 0.0
      %1561 = vmatpush1.msra.mxu0 0.0
      %1562 = vmatprep.subr.mxu0 0.0
      %1563 = vmatpush1.msra.mxu0 0.0
      %1564 = vmatprep.subr.mxu0 0.0
      %1565 = vmatpush1.msra.mxu0 0.0
      %1566 = vmatprep.subr.mxu0 0.0
      %1567 = vmatpush1.msra.mxu0 0.0
      %1568 = vmatprep.subr.mxu0 0.0
      %1569 = vmatpush1.msra.mxu0 0.0
      %1570 = vmatprep.subr.mxu0 0.0
      %1571 = vmatpush1.msra.mxu0 0.0
      %1572 = vmatprep.subr.mxu0 0.0
      %1573 = vmatpush1.msra.mxu0 0.0
      %1574 = vmatprep.subr.mxu0 0.0
      %1575 = vmatpush1.msra.mxu0 0.0
      %1576 = vmatprep.subr.mxu0 0.0
      %1577 = vmatpush1.msra.mxu0 0.0
      %1578 = vmatprep.mubr.f32.mxu0 0.0
      %1579 = vmatmul.mubr.f32.gmra.mrb[0].mxu0 %v1512
      %v1580 = vpop.f32.mrb[0].mxu0
      %v1581 = vadd.f32 %v1508, %v1580
      %v1582 = vpop.f32.mrb[0].mxu0
      %v1583 = vadd.f32 %v1508, %v1582
      %1584 = vdwg.mxu0
      %v1585 = vmul.f32 %v1581, 0.5
      %v1586 = vmul.f32 %v1583, 0.5
      %v1587 = vmul.f32 %v1581, 0.70710677
      %v1588 = vmul.f32 %v1583, 0.70710677
      %vm1589 = vcmp.ge.f32.partialorder %v1587, 0.0
      %vm1590 = vcmp.ge.f32.partialorder %v1588, 0.0
      %v1591 = vsel %vm1589, 1.0, -1.0
      %v1592 = vsel %vm1590, 1.0, -1.0
      %v1593 = vand.u32 2147483647, %v1587
      %v1594 = vand.u32 2147483647, %v1588
      %v1595 = vmul.f32 %v1593, 0.3275911
      %v1596 = vmul.f32 %v1594, 0.3275911
      %v1597 = vadd.f32 %v1595, 1.0
      %v1598 = vadd.f32 %v1596, 1.0
      %v1599 = vrcp.pop %v1597
      %v1600 = vmul.f32 1.0, %v1599
      %v1601 = vrcp.pop %v1598
      %v1602 = vmul.f32 1.0, %v1601
      %v1603 = vmul.f32 %v1600, 1.0614054
      %v1604 = vmul.f32 %v1602, 1.0614054
      %v1605 = vadd.f32 %v1603, -1.4531521
      %v1606 = vadd.f32 %v1604, -1.4531521
      %v1607 = vmul.f32 %v1605, %v1600
      %v1608 = vmul.f32 %v1606, %v1602
      %v1609 = vadd.f32 %v1607, 1.4214138
      %v1610 = vadd.f32 %v1608, 1.4214138
      %v1611 = vmul.f32 %v1609, %v1600
      %v1612 = vmul.f32 %v1610, %v1602
      %v1613 = vadd.f32 %v1611, -0.28449672
      %v1614 = vadd.f32 %v1612, -0.28449672
      %v1615 = vmul.f32 %v1613, %v1600
      %v1616 = vmul.f32 %v1614, %v1602
      %v1617 = vadd.f32 %v1615, 0.2548296
      %v1618 = vadd.f32 %v1616, 0.2548296
      %v1619 = vmul.f32 %v1617, %v1600
      %v1620 = vmul.f32 %v1618, %v1602
      %v1621 = vsub.f32 0.0, %v1593
      %v1622 = vsub.f32 0.0, %v1594
      %v1623 = vmul.f32 %v1621, %v1593
      %v1624 = vmul.f32 %v1622, %v1594
      %v1625 = vmul.f32 %v1623, 1.442695
      %v1626 = vpow.pop %v1625
      %v1627 = vmul.f32 %v1624, 1.442695
      %v1628 = vpow.pop %v1627
      %v1629 = vmul.f32 %v1619, %v1626
      %v1630 = vmul.f32 %v1620, %v1628
      %v1631 = vsub.f32 1.0, %v1629
      %v1632 = vsub.f32 1.0, %v1630
      %v1633 = vmul.f32 %v1591, %v1631
      %v1634 = vmul.f32 %v1592, %v1632
      %v1635 = vadd.f32 %v1633, 1.0
      %v1636 = vadd.f32 %v1634, 1.0
      %v1637 = vmul.f32 %v1585, %v1635
      %v1638 = vmul.f32 %v1586, %v1636
      %v1639 = vadd.f32 %v1637, %v1638
      %1640 = vadd.xlane.f32.xlu0 %v1639
      %v1641 = vpop.xlane.xlu0 %1640
      %v1642 = vrot.slane %v1641, 4
      %v1643 = vadd.f32 %v1641, %v1642
      %v1644 = vrot.slane %v1643, 2
      %v1645 = vadd.f32 %v1643, %v1644
      %v1646 = vrot.slane %v1645, 1
      %v1647 = vadd.f32 %v1645, %v1646
      %s1648 = vtos %v1647
      %v1649 = vstv %s1648
      %v1650 = vmul.f32 %v1637, %v1637
      %v1651 = vmul.f32 %v1638, %v1638
      %v1652 = vadd.f32 %v1650, %v1651
      %1653 = vadd.xlane.f32.xlu0 %v1652
      %v1654 = vpop.xlane.xlu0 %1653
      %v1655 = vrot.slane %v1654, 4
      %v1656 = vadd.f32 %v1654, %v1655
      %v1657 = vrot.slane %v1656, 2
      %v1658 = vadd.f32 %v1656, %v1657
      %v1659 = vrot.slane %v1658, 1
      %v1660 = vadd.f32 %v1658, %v1659
      %s1661 = vtos %v1660
      %v1662 = vstv %s1661
      %v1663 = vmul.f32 %v1649, %v1411
      %v1664 = vmul.f32 %v1662, %v1411
      %v1665 = vmul.f32 %v1663, %v1663
      %v1666 = vsub.f32 %v1664, %v1665
      %v1667 = vmax.f32 %v1666, 0.0
      %v1668 = vsub.f32 %v1637, %v1663
      %v1669 = vsub.f32 %v1638, %v1663
      %v1670 = vadd.f32 %v1667, 1e-05
      %v1671 = vrsqrt.pop %v1670
      %v1672 = vmul.f32 %v1668, %v1671
      %v1673 = vmul.f32 %v1669, %v1671
      %v1674 = vld [vmem:[%s12] sm:$0xff]
      %1676 = vset.pattern.permute.xlu0 0
      %1677 = vperm.xlu0 %1676, %v1674
      %v1678 = vpop.permute.xlu0 %1677
      %v1680 = vmul.f32 %v1672, %v1678
      %v1681 = vmul.f32 %v1673, %v1678
      %v1682 = vld [vmem:[%s13] sm:$0xff]
      %1684 = vset.pattern.permute.xlu0 0
      %1685 = vperm.xlu0 %1684, %v1682
      %v1686 = vpop.permute.xlu0 %1685
      %v1688 = vadd.f32 %v1680, %v1686
      %v1689 = vadd.f32 %v1681, %v1686
      %1690 = vrot.lane.b32.xlu0 %v1688, 17
      %v1691 = vpop.permute.xlu0 %1690
      %1692 = vrot.lane.b32.xlu0 %v1689, 17
      %v1693 = vpop.permute.xlu0 %1692
      %v1694 = vsel %vm1019, %v1691, %v1693
      %v1695 = vsel %vm1019, %v1693, %v1691
      %v1696 = vmul.f32 %v1695, %v1029
      %v1697 = vmul.f32 %v1694, %v1033
      %1698 = vrot.lane.b32.xlu0 %v1688, 16
      %v1699 = vpop.permute.xlu0 %1698
      %1700 = vrot.lane.b32.xlu0 %v1689, 16
      %v1701 = vpop.permute.xlu0 %1700
      %v1702 = vsel %vm1048, %v1699, %v1701
      %v1703 = vsel %vm1048, %v1701, %v1699
      %v1704 = vmul.f32 %v1703, %v1059
      %v1705 = vmul.f32 %v1702, %v1063
      %1706 = vrot.lane.b32.xlu0 %v1688, 15
      %v1707 = vpop.permute.xlu0 %1706
      %1708 = vrot.lane.b32.xlu0 %v1689, 15
      %v1709 = vpop.permute.xlu0 %1708
      %v1710 = vsel %vm1078, %v1707, %v1709
      %v1711 = vsel %vm1078, %v1709, %v1707
      %v1712 = vmul.f32 %v1711, %v1089
      %v1713 = vmul.f32 %v1710, %v1093
      %1714 = vrot.lane.b32.xlu0 %v1688, 1
      %v1715 = vpop.permute.xlu0 %1714
      %1716 = vrot.lane.b32.xlu0 %v1689, 1
      %v1717 = vpop.permute.xlu0 %1716
      %v1718 = vsel %vm1108, %v1715, %v1717
      %v1719 = vsel %vm1108, %v1717, %v1715
      %v1720 = vmul.f32 %v1719, %v1119
      %v1721 = vmul.f32 %v1718, %v1123
      %1722 = vrot.lane.b32.xlu0 %v1688, 127
      %v1723 = vpop.permute.xlu0 %1722
      %1724 = vrot.lane.b32.xlu0 %v1689, 127
      %v1725 = vpop.permute.xlu0 %1724
      %v1726 = vsel %vm1138, %v1723, %v1725
      %v1727 = vsel %vm1138, %v1725, %v1723
      %v1728 = vmul.f32 %v1726, %v1149
      %v1729 = vmul.f32 %v1727, %v1153
      %1730 = vrot.lane.b32.xlu0 %v1688, 113
      %v1731 = vpop.permute.xlu0 %1730
      %1732 = vrot.lane.b32.xlu0 %v1689, 113
      %v1733 = vpop.permute.xlu0 %1732
      %v1734 = vsel %vm1168, %v1731, %v1733
      %v1735 = vsel %vm1168, %v1733, %v1731
      %v1736 = vmul.f32 %v1734, %v1179
      %v1737 = vmul.f32 %v1735, %v1183
      %1738 = vrot.lane.b32.xlu0 %v1688, 112
      %v1739 = vpop.permute.xlu0 %1738
      %1740 = vrot.lane.b32.xlu0 %v1689, 112
      %v1741 = vpop.permute.xlu0 %1740
      %v1742 = vsel %vm1198, %v1739, %v1741
      %v1743 = vsel %vm1198, %v1741, %v1739
      %v1744 = vmul.f32 %v1742, %v1209
      %v1745 = vmul.f32 %v1743, %v1213
      %1746 = vrot.lane.b32.xlu0 %v1688, 111
      %v1747 = vpop.permute.xlu0 %1746
      %1748 = vrot.lane.b32.xlu0 %v1689, 111
      %v1749 = vpop.permute.xlu0 %1748
      %v1750 = vsel %vm1228, %v1747, %v1749
      %v1751 = vsel %vm1228, %v1749, %v1747
      %v1752 = vmul.f32 %v1750, %v1239
      %v1753 = vmul.f32 %v1751, %v1243
      %v1754 = vld [vmem:[%s14] sm:$0xff]
      %v1755 = vld [vmem:[%s15] sm:$0xff]
      %1757 = vset.pattern.permute.xlu0 0
      %1758 = vperm.xlu0 %1757, %v1755
      %v1759 = vpop.permute.xlu0 %1758
      %v1762 = vsel %vm1510, %v1754, 0
      %1764 = vmatprep.subr.mxu0 %v1697
      %1765 = vmatpush1.msra.mxu0 %v1696
      %1766 = vmatprep.subr.mxu0 %v1705
      %1767 = vmatpush1.msra.mxu0 %v1704
      %1768 = vmatprep.subr.mxu0 %v1713
      %1769 = vmatpush1.msra.mxu0 %v1712
      %1770 = vmatprep.subr.mxu0 %v1721
      %1771 = vmatpush1.msra.mxu0 %v1720
      %1772 = vmatprep.subr.mxu0 %v1689
      %1773 = vmatpush1.msra.mxu0 %v1688
      %1774 = vmatprep.subr.mxu0 %v1729
      %1775 = vmatpush1.msra.mxu0 %v1728
      %1776 = vmatprep.subr.mxu0 %v1737
      %1777 = vmatpush1.msra.mxu0 %v1736
      %1778 = vmatprep.subr.mxu0 %v1745
      %1779 = vmatpush1.msra.mxu0 %v1744
      %1780 = vmatprep.subr.mxu0 %v1753
      %1781 = vmatpush1.msra.mxu0 %v1752
      %1782 = vmatprep.subr.mxu0 0.0
      %1783 = vmatpush1.msra.mxu0 0.0
      %1784 = vmatprep.subr.mxu0 0.0
      %1785 = vmatpush1.msra.mxu0 0.0
      %1786 = vmatprep.subr.mxu0 0.0
      %1787 = vmatpush1.msra.mxu0 0.0
      %1788 = vmatprep.subr.mxu0 0.0
      %1789 = vmatpush1.msra.mxu0 0.0
      %1790 = vmatprep.subr.mxu0 0.0
      %1791 = vmatpush1.msra.mxu0 0.0
      %1792 = vmatprep.subr.mxu0 0.0
      %1793 = vmatpush1.msra.mxu0 0.0
      %1794 = vmatprep.subr.mxu0 0.0
      %1795 = vmatpush1.msra.mxu0 0.0
      %1796 = vmatprep.subr.mxu0 0.0
      %1797 = vmatpush1.msra.mxu0 0.0
      %1798 = vmatprep.subr.mxu0 0.0
      %1799 = vmatpush1.msra.mxu0 0.0
      %1800 = vmatprep.subr.mxu0 0.0
      %1801 = vmatpush1.msra.mxu0 0.0
      %1802 = vmatprep.subr.mxu0 0.0
      %1803 = vmatpush1.msra.mxu0 0.0
      %1804 = vmatprep.subr.mxu0 0.0
      %1805 = vmatpush1.msra.mxu0 0.0
      %1806 = vmatprep.subr.mxu0 0.0
      %1807 = vmatpush1.msra.mxu0 0.0
      %1808 = vmatprep.subr.mxu0 0.0
      %1809 = vmatpush1.msra.mxu0 0.0
      %1810 = vmatprep.subr.mxu0 0.0
      %1811 = vmatpush1.msra.mxu0 0.0
      %1812 = vmatprep.subr.mxu0 0.0
      %1813 = vmatpush1.msra.mxu0 0.0
      %1814 = vmatprep.subr.mxu0 0.0
      %1815 = vmatpush1.msra.mxu0 0.0
      %1816 = vmatprep.subr.mxu0 0.0
      %1817 = vmatpush1.msra.mxu0 0.0
      %1818 = vmatprep.subr.mxu0 0.0
      %1819 = vmatpush1.msra.mxu0 0.0
      %1820 = vmatprep.subr.mxu0 0.0
      %1821 = vmatpush1.msra.mxu0 0.0
      %1822 = vmatprep.subr.mxu0 0.0
      %1823 = vmatpush1.msra.mxu0 0.0
      %1824 = vmatprep.subr.mxu0 0.0
      %1825 = vmatpush1.msra.mxu0 0.0
      %1826 = vmatprep.subr.mxu0 0.0
      %1827 = vmatpush1.msra.mxu0 0.0
      %1828 = vmatprep.mubr.f32.mxu0 0.0
      %1829 = vmatmul.mubr.f32.gmra.mrb[0].mxu0 %v1762
      %v1830 = vpop.f32.mrb[0].mxu0
      %v1831 = vadd.f32 %v1759, %v1830
      %v1832 = vpop.f32.mrb[0].mxu0
      %v1833 = vadd.f32 %v1759, %v1832
      %1834 = vdwg.mxu0
      %v1835 = vmul.f32 %v1831, 0.5
      %v1836 = vmul.f32 %v1833, 0.5
      %v1837 = vmul.f32 %v1831, 0.70710677
      %v1838 = vmul.f32 %v1833, 0.70710677
      %vm1839 = vcmp.ge.f32.partialorder %v1837, 0.0
      %vm1840 = vcmp.ge.f32.partialorder %v1838, 0.0
      %v1841 = vsel %vm1839, 1.0, -1.0
      %v1842 = vsel %vm1840, 1.0, -1.0
      %v1843 = vand.u32 2147483647, %v1837
      %v1844 = vand.u32 2147483647, %v1838
      %v1845 = vmul.f32 %v1843, 0.3275911
      %v1846 = vmul.f32 %v1844, 0.3275911
      %v1847 = vadd.f32 %v1845, 1.0
      %v1848 = vadd.f32 %v1846, 1.0
      %v1849 = vrcp.pop %v1847
      %v1850 = vmul.f32 1.0, %v1849
      %v1851 = vrcp.pop %v1848
      %v1852 = vmul.f32 1.0, %v1851
      %v1853 = vmul.f32 %v1850, 1.0614054
      %v1854 = vmul.f32 %v1852, 1.0614054
      %v1855 = vadd.f32 %v1853, -1.4531521
      %v1856 = vadd.f32 %v1854, -1.4531521
      %v1857 = vmul.f32 %v1855, %v1850
      %v1858 = vmul.f32 %v1856, %v1852
      %v1859 = vadd.f32 %v1857, 1.4214138
      %v1860 = vadd.f32 %v1858, 1.4214138
      %v1861 = vmul.f32 %v1859, %v1850
      %v1862 = vmul.f32 %v1860, %v1852
      %v1863 = vadd.f32 %v1861, -0.28449672
      %v1864 = vadd.f32 %v1862, -0.28449672
      %v1865 = vmul.f32 %v1863, %v1850
      %v1866 = vmul.f32 %v1864, %v1852
      %v1867 = vadd.f32 %v1865, 0.2548296
      %v1868 = vadd.f32 %v1866, 0.2548296
      %v1869 = vmul.f32 %v1867, %v1850
      %v1870 = vmul.f32 %v1868, %v1852
      %v1871 = vsub.f32 0.0, %v1843
      %v1872 = vsub.f32 0.0, %v1844
      %v1873 = vmul.f32 %v1871, %v1843
      %v1874 = vmul.f32 %v1872, %v1844
      %v1875 = vmul.f32 %v1873, 1.442695
      %v1876 = vpow.pop %v1875
      %v1877 = vmul.f32 %v1874, 1.442695
      %v1878 = vpow.pop %v1877
      %v1879 = vmul.f32 %v1869, %v1876
      %v1880 = vmul.f32 %v1870, %v1878
      %v1881 = vsub.f32 1.0, %v1879
      %v1882 = vsub.f32 1.0, %v1880
      %v1883 = vmul.f32 %v1841, %v1881
      %v1884 = vmul.f32 %v1842, %v1882
      %v1885 = vadd.f32 %v1883, 1.0
      %v1886 = vadd.f32 %v1884, 1.0
      %v1887 = vmul.f32 %v1835, %v1885
      %v1888 = vmul.f32 %v1836, %v1886
      %v1889 = vadd.f32 %v1887, %v1888
      %1890 = vadd.xlane.f32.xlu0 %v1889
      %v1891 = vpop.xlane.xlu0 %1890
      %v1892 = vrot.slane %v1891, 4
      %v1893 = vadd.f32 %v1891, %v1892
      %v1894 = vrot.slane %v1893, 2
      %v1895 = vadd.f32 %v1893, %v1894
      %v1896 = vrot.slane %v1895, 1
      %v1897 = vadd.f32 %v1895, %v1896
      %s1898 = vtos %v1897
      %v1899 = vstv %s1898
      %v1900 = vmul.f32 %v1887, %v1887
      %v1901 = vmul.f32 %v1888, %v1888
      %v1902 = vadd.f32 %v1900, %v1901
      %1903 = vadd.xlane.f32.xlu0 %v1902
      %v1904 = vpop.xlane.xlu0 %1903
      %v1905 = vrot.slane %v1904, 4
      %v1906 = vadd.f32 %v1904, %v1905
      %v1907 = vrot.slane %v1906, 2
      %v1908 = vadd.f32 %v1906, %v1907
      %v1909 = vrot.slane %v1908, 1
      %v1910 = vadd.f32 %v1908, %v1909
      %s1911 = vtos %v1910
      %v1912 = vstv %s1911
      %v1913 = vmul.f32 %v1899, %v1411
      %v1914 = vmul.f32 %v1912, %v1411
      %v1915 = vmul.f32 %v1913, %v1913
      %v1916 = vsub.f32 %v1914, %v1915
      %v1917 = vmax.f32 %v1916, 0.0
      %v1918 = vsub.f32 %v1887, %v1913
      %v1919 = vsub.f32 %v1888, %v1913
      %v1920 = vadd.f32 %v1917, 1e-05
      %v1921 = vrsqrt.pop %v1920
      %v1922 = vmul.f32 %v1918, %v1921
      %v1923 = vmul.f32 %v1919, %v1921
      %v1924 = vld [vmem:[%s16] sm:$0xff]
      %1926 = vset.pattern.permute.xlu0 0
      %1927 = vperm.xlu0 %1926, %v1924
      %v1928 = vpop.permute.xlu0 %1927
      %v1930 = vmul.f32 %v1922, %v1928
      %v1931 = vmul.f32 %v1923, %v1928
      %v1932 = vld [vmem:[%s17] sm:$0xff]
      %1934 = vset.pattern.permute.xlu0 0
      %1935 = vperm.xlu0 %1934, %v1932
      %v1936 = vpop.permute.xlu0 %1935
      %v1938 = vadd.f32 %v1930, %v1936
      %v1939 = vadd.f32 %v1931, %v1936
      %1940 = vrot.lane.b32.xlu0 %v1938, 17
      %v1941 = vpop.permute.xlu0 %1940
      %1942 = vrot.lane.b32.xlu0 %v1939, 17
      %v1943 = vpop.permute.xlu0 %1942
      %v1944 = vsel %vm1019, %v1941, %v1943
      %v1945 = vsel %vm1019, %v1943, %v1941
      %v1946 = vmul.f32 %v1945, %v1029
      %v1947 = vmul.f32 %v1944, %v1033
      %1948 = vrot.lane.b32.xlu0 %v1938, 16
      %v1949 = vpop.permute.xlu0 %1948
      %1950 = vrot.lane.b32.xlu0 %v1939, 16
      %v1951 = vpop.permute.xlu0 %1950
      %v1952 = vsel %vm1048, %v1949, %v1951
      %v1953 = vsel %vm1048, %v1951, %v1949
      %v1954 = vmul.f32 %v1953, %v1059
      %v1955 = vmul.f32 %v1952, %v1063
      %1956 = vrot.lane.b32.xlu0 %v1938, 15
      %v1957 = vpop.permute.xlu0 %1956
      %1958 = vrot.lane.b32.xlu0 %v1939, 15
      %v1959 = vpop.permute.xlu0 %1958
      %v1960 = vsel %vm1078, %v1957, %v1959
      %v1961 = vsel %vm1078, %v1959, %v1957
      %v1962 = vmul.f32 %v1961, %v1089
      %v1963 = vmul.f32 %v1960, %v1093
      %1964 = vrot.lane.b32.xlu0 %v1938, 1
      %v1965 = vpop.permute.xlu0 %1964
      %1966 = vrot.lane.b32.xlu0 %v1939, 1
      %v1967 = vpop.permute.xlu0 %1966
      %v1968 = vsel %vm1108, %v1965, %v1967
      %v1969 = vsel %vm1108, %v1967, %v1965
      %v1970 = vmul.f32 %v1969, %v1119
      %v1971 = vmul.f32 %v1968, %v1123
      %1972 = vrot.lane.b32.xlu0 %v1938, 127
      %v1973 = vpop.permute.xlu0 %1972
      %1974 = vrot.lane.b32.xlu0 %v1939, 127
      %v1975 = vpop.permute.xlu0 %1974
      %v1976 = vsel %vm1138, %v1973, %v1975
      %v1977 = vsel %vm1138, %v1975, %v1973
      %v1978 = vmul.f32 %v1976, %v1149
      %v1979 = vmul.f32 %v1977, %v1153
      %1980 = vrot.lane.b32.xlu0 %v1938, 113
      %v1981 = vpop.permute.xlu0 %1980
      %1982 = vrot.lane.b32.xlu0 %v1939, 113
      %v1983 = vpop.permute.xlu0 %1982
      %v1984 = vsel %vm1168, %v1981, %v1983
      %v1985 = vsel %vm1168, %v1983, %v1981
      %v1986 = vmul.f32 %v1984, %v1179
      %v1987 = vmul.f32 %v1985, %v1183
      %1988 = vrot.lane.b32.xlu0 %v1938, 112
      %v1989 = vpop.permute.xlu0 %1988
      %1990 = vrot.lane.b32.xlu0 %v1939, 112
      %v1991 = vpop.permute.xlu0 %1990
      %v1992 = vsel %vm1198, %v1989, %v1991
      %v1993 = vsel %vm1198, %v1991, %v1989
      %v1994 = vmul.f32 %v1992, %v1209
      %v1995 = vmul.f32 %v1993, %v1213
      %1996 = vrot.lane.b32.xlu0 %v1938, 111
      %v1997 = vpop.permute.xlu0 %1996
      %1998 = vrot.lane.b32.xlu0 %v1939, 111
      %v1999 = vpop.permute.xlu0 %1998
      %v2000 = vsel %vm1228, %v1997, %v1999
      %v2001 = vsel %vm1228, %v1999, %v1997
      %v2002 = vmul.f32 %v2000, %v1239
      %v2003 = vmul.f32 %v2001, %v1243
      %v2004 = vld [vmem:[%s18] sm:$0xff]
      %v2005 = vld [vmem:[%s19] sm:$0xff]
      %2007 = vset.pattern.permute.xlu0 0
      %2008 = vperm.xlu0 %2007, %v2005
      %v2009 = vpop.permute.xlu0 %2008
      %v2012 = vsel %vm1510, %v2004, 0
      %2014 = vmatprep.subr.mxu0 %v1947
      %2015 = vmatpush1.msra.mxu0 %v1946
      %2016 = vmatprep.subr.mxu0 %v1955
      %2017 = vmatpush1.msra.mxu0 %v1954
      %2018 = vmatprep.subr.mxu0 %v1963
      %2019 = vmatpush1.msra.mxu0 %v1962
      %2020 = vmatprep.subr.mxu0 %v1971
      %2021 = vmatpush1.msra.mxu0 %v1970
      %2022 = vmatprep.subr.mxu0 %v1939
      %2023 = vmatpush1.msra.mxu0 %v1938
      %2024 = vmatprep.subr.mxu0 %v1979
      %2025 = vmatpush1.msra.mxu0 %v1978
      %2026 = vmatprep.subr.mxu0 %v1987
      %2027 = vmatpush1.msra.mxu0 %v1986
      %2028 = vmatprep.subr.mxu0 %v1995
      %2029 = vmatpush1.msra.mxu0 %v1994
      %2030 = vmatprep.subr.mxu0 %v2003
      %2031 = vmatpush1.msra.mxu0 %v2002
      %2032 = vmatprep.subr.mxu0 0.0
      %2033 = vmatpush1.msra.mxu0 0.0
      %2034 = vmatprep.subr.mxu0 0.0
      %2035 = vmatpush1.msra.mxu0 0.0
      %2036 = vmatprep.subr.mxu0 0.0
      %2037 = vmatpush1.msra.mxu0 0.0
      %2038 = vmatprep.subr.mxu0 0.0
      %2039 = vmatpush1.msra.mxu0 0.0
      %2040 = vmatprep.subr.mxu0 0.0
      %2041 = vmatpush1.msra.mxu0 0.0
      %2042 = vmatprep.subr.mxu0 0.0
      %2043 = vmatpush1.msra.mxu0 0.0
      %2044 = vmatprep.subr.mxu0 0.0
      %2045 = vmatpush1.msra.mxu0 0.0
      %2046 = vmatprep.subr.mxu0 0.0
      %2047 = vmatpush1.msra.mxu0 0.0
      %2048 = vmatprep.subr.mxu0 0.0
      %2049 = vmatpush1.msra.mxu0 0.0
      %2050 = vmatprep.subr.mxu0 0.0
      %2051 = vmatpush1.msra.mxu0 0.0
      %2052 = vmatprep.subr.mxu0 0.0
      %2053 = vmatpush1.msra.mxu0 0.0
      %2054 = vmatprep.subr.mxu0 0.0
      %2055 = vmatpush1.msra.mxu0 0.0
      %2056 = vmatprep.subr.mxu0 0.0
      %2057 = vmatpush1.msra.mxu0 0.0
      %2058 = vmatprep.subr.mxu0 0.0
      %2059 = vmatpush1.msra.mxu0 0.0
      %2060 = vmatprep.subr.mxu0 0.0
      %2061 = vmatpush1.msra.mxu0 0.0
      %2062 = vmatprep.subr.mxu0 0.0
      %2063 = vmatpush1.msra.mxu0 0.0
      %2064 = vmatprep.subr.mxu0 0.0
      %2065 = vmatpush1.msra.mxu0 0.0
      %2066 = vmatprep.subr.mxu0 0.0
      %2067 = vmatpush1.msra.mxu0 0.0
      %2068 = vmatprep.subr.mxu0 0.0
      %2069 = vmatpush1.msra.mxu0 0.0
      %2070 = vmatprep.subr.mxu0 0.0
      %2071 = vmatpush1.msra.mxu0 0.0
      %2072 = vmatprep.subr.mxu0 0.0
      %2073 = vmatpush1.msra.mxu0 0.0
      %2074 = vmatprep.subr.mxu0 0.0
      %2075 = vmatpush1.msra.mxu0 0.0
      %2076 = vmatprep.subr.mxu0 0.0
      %2077 = vmatpush1.msra.mxu0 0.0
      %2078 = vmatprep.mubr.f32.mxu0 0.0
      %2079 = vmatmul.mubr.f32.gmra.mrb[0].mxu0 %v2012
      %v2080 = vpop.f32.mrb[0].mxu0
      %v2081 = vadd.f32 %v2009, %v2080
      %v2082 = vpop.f32.mrb[0].mxu0
      %v2083 = vadd.f32 %v2009, %v2082
      %2084 = vdwg.mxu0
      %v2085 = vmul.f32 %v2081, 0.5
      %v2086 = vmul.f32 %v2083, 0.5
      %v2087 = vmul.f32 %v2081, 0.70710677
      %v2088 = vmul.f32 %v2083, 0.70710677
      %vm2089 = vcmp.ge.f32.partialorder %v2087, 0.0
      %vm2090 = vcmp.ge.f32.partialorder %v2088, 0.0
      %v2091 = vsel %vm2089, 1.0, -1.0
      %v2092 = vsel %vm2090, 1.0, -1.0
      %v2093 = vand.u32 2147483647, %v2087
      %v2094 = vand.u32 2147483647, %v2088
      %v2095 = vmul.f32 %v2093, 0.3275911
      %v2096 = vmul.f32 %v2094, 0.3275911
      %v2097 = vadd.f32 %v2095, 1.0
      %v2098 = vadd.f32 %v2096, 1.0
      %v2099 = vrcp.pop %v2097
      %v2100 = vmul.f32 1.0, %v2099
      %v2101 = vrcp.pop %v2098
      %v2102 = vmul.f32 1.0, %v2101
      %v2103 = vmul.f32 %v2100, 1.0614054
      %v2104 = vmul.f32 %v2102, 1.0614054
      %v2105 = vadd.f32 %v2103, -1.4531521
      %v2106 = vadd.f32 %v2104, -1.4531521
      %v2107 = vmul.f32 %v2105, %v2100
      %v2108 = vmul.f32 %v2106, %v2102
      %v2109 = vadd.f32 %v2107, 1.4214138
      %v2110 = vadd.f32 %v2108, 1.4214138
      %v2111 = vmul.f32 %v2109, %v2100
      %v2112 = vmul.f32 %v2110, %v2102
      %v2113 = vadd.f32 %v2111, -0.28449672
      %v2114 = vadd.f32 %v2112, -0.28449672
      %v2115 = vmul.f32 %v2113, %v2100
      %v2116 = vmul.f32 %v2114, %v2102
      %v2117 = vadd.f32 %v2115, 0.2548296
      %v2118 = vadd.f32 %v2116, 0.2548296
      %v2119 = vmul.f32 %v2117, %v2100
      %v2120 = vmul.f32 %v2118, %v2102
      %v2121 = vsub.f32 0.0, %v2093
      %v2122 = vsub.f32 0.0, %v2094
      %v2123 = vmul.f32 %v2121, %v2093
      %v2124 = vmul.f32 %v2122, %v2094
      %v2125 = vmul.f32 %v2123, 1.442695
      %v2126 = vpow.pop %v2125
      %v2127 = vmul.f32 %v2124, 1.442695
      %v2128 = vpow.pop %v2127
      %v2129 = vmul.f32 %v2119, %v2126
      %v2130 = vmul.f32 %v2120, %v2128
      %v2131 = vsub.f32 1.0, %v2129
      %v2132 = vsub.f32 1.0, %v2130
      %v2133 = vmul.f32 %v2091, %v2131
      %v2134 = vmul.f32 %v2092, %v2132
      %v2135 = vadd.f32 %v2133, 1.0
      %v2136 = vadd.f32 %v2134, 1.0
      %v2137 = vmul.f32 %v2085, %v2135
      %v2138 = vmul.f32 %v2086, %v2136
      %2140 = vset.pattern.permute.xlu0 0
      %2141 = vperm.xlu0 %2140, %v836
      %v2142 = vpop.permute.xlu0 %2141
      %v2144 = vadd.f32 %v2137, %v2142
      %v2145 = vadd.f32 %v2138, %v2142
      %2146 = vst [vmem:[%s795] sm:$0xff] %v2144
      %2147 = vst [vmem:[%s795 + $0x8] sm:$0xff] %v2145
      %p2148 = scmp.lt.s32.totalorder %s36, 1
      %s2149 = scalar_select %p2148, %s36, 1
      %s2150 = smul.addr %s2149, 2
      %s2151 = smul.addr %s2150, 8
      %s2152 = scalar_lea.vmem %s25, %s2151
      // Predicated region
      $region121: #{upconv_forward.1} parent=119 // pred_check
        %p2153 = pneg %p594
      $region122: #{upconv_forward.1} parent=119 // pred_check_branch
        %2155 = sbr.rel (%p2153) target = $region124
      $region123: #{upconv_forward.1} parent=119 // pred_region
        _
      $region124: #{upconv_forward.1} parent=119 // pred_fallthru
        _
    $region120: #{upconv_forward.1} parent=5 // pred_fallthru
      _
    %p2156 = scmp.le.s32.totalorder 2, %s31
    // Predicated region
    $region125: #{upconv_forward.1} parent=5 // pred_check
      %p2157 = pneg %p2156
    $region126: #{upconv_forward.1} parent=5 // pred_check_branch
      %2159 = sbr.rel (%p2157) target = $region128
    $region127: #{upconv_forward.1} parent=5 // pred_region
      %s2160 = ssub.s32 %s31, 2
      // Predicated region
      $region129: #{upconv_forward.1} parent=127 // pred_check
        %p2161 = pneg %p600
      $region130: #{upconv_forward.1} parent=127 // pred_check_branch
        %2163 = sbr.rel (%p2161) target = $region132
      $region131: #{upconv_forward.1} parent=127 // pred_region
        %p2164 = scmp.lt.s32.totalorder %s37, 1
        %s2165 = scalar_select %p2164, %s37, 1
        %s2166 = smul.addr %s2165, 2
        %s2167 = smul.addr %s2166, 8
        %s2168 = scalar_lea.vmem %s25, %s2167
      $region132: #{upconv_forward.1} parent=127 // pred_fallthru
        _
    $region128: #{upconv_forward.1} parent=5 // pred_fallthru
      _
  $region6: #{upconv_forward.1} parent=0 // loop_footer
    %s35 = sadd.s32 1, %s31
  $region7: #{upconv_forward.1} parent=0 // loop_footer_branch
    %30 = sbr.rel target = $region3
  $region8: #{upconv_forward.1} parent=0 // loop_exit
    _

</llo_original>
